<compile_context>
chip_gen: v5e
topology: v5e:2x2
jax: 0.10.0
libtpu: 0.0.40
codegen_flags: <defaults>
</compile_context>

<pallas_src>
import functools

import jax
import jax.numpy as jnp
from jax import lax
from jax.experimental import pallas as pl
from jax.experimental.pallas import tpu as pltpu

EPS = 1e-5  # PyTorch BatchNorm2d default eps


# ------------------------------- Pallas kernel --------------------------------

def basic_block_kernel(xp_ref, w1_ref, b1_ref, w2_ref, b2_ref, wsc_ref, bsc_ref,
                       out_ref, t1pad_ref, *, W, PADR):
    # xp_ref:    (R, Cin)    flat NHWC rows of one image, zero-padded by PADR rows
    #                        above and below (R = H*W + 2*PADR, PADR >= W+1).
    # out_ref:   (P, planes) flat NHWC rows of the block output (P = H*W).
    # t1pad_ref: (R, planes) VMEM scratch for the padded conv1 activation.
    R, _ = xp_ref.shape
    P, planes = out_ref.shape

    # Width-boundary masks (height boundaries are physically zero-padded rows).
    col = lax.broadcasted_iota(jnp.int32, (P, 1), 0) % W
    m_left = (col > 0).astype(jnp.float32)        # tap kx=0 reads pixel (h', w-1)
    m_right = (col < W - 1).astype(jnp.float32)   # tap kx=2 reads pixel (h', w+1)
    masks = (m_left, None, m_right)

    def conv3x3(src_ref, w_ref):
        # out[p] = sum_{ky,kx} src[PADR + p + (ky-1)*W + (kx-1)] @ w[ky, kx]
        acc = jnp.zeros((P, planes), jnp.float32)
        for ky in range(3):
            for kx in range(3):
                start = PADR + (ky - 1) * W + (kx - 1)   # static int in [PADR-W-1, PADR+W+1]
                patch = src_ref[pl.ds(start, P), :]       # contiguous shifted load
                if masks[kx] is not None:
                    patch = patch * masks[kx]             # zero W-wrapped rows
                acc = acc + jnp.dot(patch, w_ref[ky, kx, :, :],
                                    preferred_element_type=jnp.float32)
        return acc

    # conv1 (3x3, stride 1, pad 1) with bn1 folded into w1; bias + ReLU.
    t1 = jnp.maximum(conv3x3(xp_ref, w1_ref) + b1_ref[...], 0.0)

    # Stage conv1 activation into H-padded scratch (zero pad rows) for conv2.
    t1pad_ref[:PADR, :] = jnp.zeros((PADR, planes), jnp.float32)
    t1pad_ref[PADR + P:, :] = jnp.zeros((R - PADR - P, planes), jnp.float32)
    t1pad_ref[PADR:PADR + P, :] = t1

    # conv2 (3x3) with bn2 folded into w2; bias.
    y = conv3x3(t1pad_ref, w2_ref) + b2_ref[...]

    # shortcut: 1x1 conv (bn_sc folded) + bias.
    x = xp_ref[pl.ds(PADR, P), :]
    sc = jnp.dot(x, wsc_ref[...], preferred_element_type=jnp.float32) + bsc_ref[...]

    out_ref[...] = jnp.maximum(y + sc, 0.0)


# --------------------------------- Wrapper -------------------------------------

def fold_bn_into_conv(w, bn_p):
    """Fold inference-mode BN (following a bias-free conv) into the conv weight."""
    gamma, beta, mean, var = bn_p
    s = gamma / jnp.sqrt(var + EPS)           # per output channel (last weight dim)
    return w * s, (beta - mean * s).reshape(1, -1)


def basic_block_forward(x_nchw, params):
    w1f, b1 = fold_bn_into_conv(params["w1"], params["bn1"])
    w2f, b2 = fold_bn_into_conv(params["w2"], params["bn2"])
    wscf, bsc = fold_bn_into_conv(params["wsc"], params["bnsc"])

    N, Cin, H, W = x_nchw.shape
    planes = w1f.shape[-1]
    P = H * W
    PADR = ((W + 1 + 7) // 8) * 8     # >= W+1 zero rows above/below, sublane-aligned
    R = P + 2 * PADR

    # Layout glue done once by XLA outside the kernel:
    # NCHW -> flat NHWC rows (N, H*W, C), zero-padded along rows for the H boundary.
    x_rows = jnp.transpose(x_nchw, (0, 2, 3, 1)).reshape(N, P, Cin)
    xp = jnp.pad(x_rows, ((0, 0), (PADR, PADR), (0, 0)))

    kernel = functools.partial(basic_block_kernel, W=W, PADR=PADR)

    out_rows = pl.pallas_call(
        kernel,
        out_shape=jax.ShapeDtypeStruct((N, P, planes), jnp.float32),
        grid_spec=pltpu.PrefetchScalarGridSpec(
            num_scalar_prefetch=0,
            grid=(N,),
            in_specs=[
                pl.BlockSpec((pl.Squeezed(), R, Cin), lambda n: (n, 0, 0)),
                pl.BlockSpec((3, 3, Cin, planes), lambda n: (0, 0, 0, 0)),
                pl.BlockSpec((1, planes), lambda n: (0, 0)),
                pl.BlockSpec((3, 3, planes, planes), lambda n: (0, 0, 0, 0)),
                pl.BlockSpec((1, planes), lambda n: (0, 0)),
                pl.BlockSpec((Cin, planes), lambda n: (0, 0)),
                pl.BlockSpec((1, planes), lambda n: (0, 0)),
            ],
            out_specs=pl.BlockSpec((pl.Squeezed(), P, planes), lambda n: (n, 0, 0)),
            scratch_shapes=[
                pltpu.VMEM((R, planes), jnp.float32),   # padded relu(bn1(conv1(x)))
            ],
        ),
        compiler_params=pltpu.CompilerParams(
            dimension_semantics=("parallel",)),
    )(xp, w1f, b1, w2f, b2, wscf, bsc)

    out_nhwc = out_rows.reshape(N, H, W, planes)
    return jnp.transpose(out_nhwc, (0, 3, 1, 2))   # layout glue: NHWC -> NCHW


# ------------------------ Deterministic parameter init -------------------------

def init_params(key, in_planes, planes):
    ks = jax.random.split(key, 6)

    def bn_params(k, c):
        kg, kb, km, kv = jax.random.split(k, 4)
        gamma = jax.random.normal(kg, (c,), jnp.float32) * 0.1 + 1.0
        beta = jax.random.normal(kb, (c,), jnp.float32) * 0.1
        mean = jax.random.normal(km, (c,), jnp.float32) * 0.1
        var = jax.random.uniform(kv, (c,), jnp.float32, minval=0.5, maxval=1.5)
        return gamma, beta, mean, var

    return {
        # conv weights in HWIO / (Cin, Cout) matmul form (PyTorch OIHW transposed).
        "w1": jax.random.normal(ks[0], (3, 3, in_planes, planes), jnp.float32) * 0.1,
        "w2": jax.random.normal(ks[1], (3, 3, planes, planes), jnp.float32) * 0.1,
        "wsc": jax.random.normal(ks[2], (in_planes, planes), jnp.float32) * 0.1,
        "bn1": bn_params(ks[3], planes),
        "bn2": bn_params(ks[4], planes),
        "bnsc": bn_params(ks[5], planes),
    }


# ------------------------------ Pure-JAX reference -----------------------------

def reference_forward(x_nchw, params):
    def bn(z, p):
        gamma, beta, mean, var = p
        return (z - mean) / jnp.sqrt(var + EPS) * gamma + beta

    x = jnp.transpose(x_nchw, (0, 2, 3, 1))
    c1 = lax.conv_general_dilated(x, params["w1"], (1, 1), ((1, 1), (1, 1)),
                                  dimension_numbers=("NHWC", "HWIO", "NHWC"))
    t1 = jax.nn.relu(bn(c1, params["bn1"]))
    c2 = lax.conv_general_dilated(t1, params["w2"], (1, 1), ((1, 1), (1, 1)),
                                  dimension_numbers=("NHWC", "HWIO", "NHWC"))
    y = bn(c2, params["bn2"])
    sc = bn(jnp.einsum("nhwc,co->nhwo", x, params["wsc"]), params["bnsc"])
    out = jax.nn.relu(y + sc)
    return jnp.transpose(out, (0, 3, 1, 2))


if __name__ == "__main__":
    key = jax.random.PRNGKey(0)
    kx, kp = jax.random.split(key)

    # stride = 1; in_planes != expansion*planes -> conv shortcut path is exercised.
    N, in_planes, planes, H, W = 2, 24, 32, 16, 16
    x = jax.random.normal(kx, (N, in_planes, H, W), jnp.float32)   # NCHW like PyTorch
    params = init_params(kp, in_planes, planes)

    out = jax.block_until_ready(basic_block_forward(x, params))
    ref = reference_forward(x, params)

    assert out.shape == (N, planes, H, W), out.shape
    max_err = float(jnp.max(jnp.abs(out - ref)))
    assert jnp.allclose(out, ref, atol=1e-3, rtol=1e-3), max_err

    print("KERNEL_OK")
</pallas_src>

<mosaic_0001>
module attributes {stable_mosaic.version = 11 : i64} {
  func.func @basic_block_kernel(%arg0: i32, %arg1: memref<1x304x24xf32, #tpu.memory_space<vmem>>, %arg2: memref<3x3x24x32xf32, #tpu.memory_space<vmem>>, %arg3: memref<1x32xf32, #tpu.memory_space<vmem>>, %arg4: memref<3x3x32x32xf32, #tpu.memory_space<vmem>>, %arg5: memref<1x32xf32, #tpu.memory_space<vmem>>, %arg6: memref<24x32xf32, #tpu.memory_space<vmem>>, %arg7: memref<1x32xf32, #tpu.memory_space<vmem>>, %arg8: memref<1x256x32xf32, #tpu.memory_space<vmem>>, %arg9: memref<304x32xf32, #tpu.memory_space<vmem>>) attributes {dimension_semantics = [#tpu.dimension_semantics<parallel>], iteration_bounds = array<i64: 2>, scalar_prefetch = 0 : i64, scratch_operands = 1 : i64, tpu.core_type = #tpu.core_type<tc>, window_params = [{transform_indices = @transform_0, window_bounds = array<i64: 1, 304, 24>}, {pipeline_mode = #tpu.pipeline_mode<synchronous>, transform_indices = @transform_1, window_bounds = array<i64: 3, 3, 24, 32>}, {pipeline_mode = #tpu.pipeline_mode<synchronous>, transform_indices = @transform_2, window_bounds = array<i64: 1, 32>}, {pipeline_mode = #tpu.pipeline_mode<synchronous>, transform_indices = @transform_3, window_bounds = array<i64: 3, 3, 32, 32>}, {pipeline_mode = #tpu.pipeline_mode<synchronous>, transform_indices = @transform_4, window_bounds = array<i64: 1, 32>}, {pipeline_mode = #tpu.pipeline_mode<synchronous>, transform_indices = @transform_5, window_bounds = array<i64: 24, 32>}, {pipeline_mode = #tpu.pipeline_mode<synchronous>, transform_indices = @transform_6, window_bounds = array<i64: 1, 32>}, {transform_indices = @transform_7, window_bounds = array<i64: 1, 256, 32>}]} {
    %0 = tpu.iota {dimensions = array<i32: 0>} : vector<256x1xi32>
    %c16_i32 = arith.constant 16 : i32
    %c0_i32 = arith.constant 0 : i32
    %1 = arith.cmpi eq, %c16_i32, %c0_i32 : i32
    %c1_i32 = arith.constant 1 : i32
    %2 = arith.select %1, %c1_i32, %c16_i32 : i32
    %3 = vector.broadcast %2 : i32 to vector<256x1xi32>
    %4 = arith.remsi %0, %3 : vector<256x1xi32>
    %c0_i32_0 = arith.constant 0 : i32
    %5 = vector.broadcast %c0_i32_0 : i32 to vector<256x1xi32>
    %6 = arith.cmpi ne, %4, %5 : vector<256x1xi32>
    %c0_i32_1 = arith.constant 0 : i32
    %7 = vector.broadcast %c0_i32_1 : i32 to vector<256x1xi32>
    %8 = arith.cmpi slt, %4, %7 : vector<256x1xi32>
    %c0_i32_2 = arith.constant 0 : i32
    %9 = arith.cmpi slt, %2, %c0_i32_2 : i32
    %10 = vector.broadcast %9 : i1 to vector<256x1xi1>
    %11 = vector.broadcast %10 : vector<256x1xi1> to vector<256x1xi1>
    %12 = arith.xori %8, %11 : vector<256x1xi1>
    %13 = arith.andi %12, %6 : vector<256x1xi1>
    %14 = vector.broadcast %2 : i32 to vector<256x1xi32>
    %15 = arith.addi %4, %14 : vector<256x1xi32>
    %16 = arith.select %13, %15, %4 : vector<256x1xi1>, vector<256x1xi32>
    %c0_i32_3 = arith.constant 0 : i32
    %17 = vector.broadcast %c0_i32_3 : i32 to vector<256x1xi32>
    %18 = arith.cmpi sgt, %16, %17 : vector<256x1xi32>
    %19 = arith.extui %18 : vector<256x1xi1> to vector<256x1xi32>
    %20 = arith.sitofp %19 : vector<256x1xi32> to vector<256x1xf32>
    %c15_i32 = arith.constant 15 : i32
    %21 = vector.broadcast %c15_i32 : i32 to vector<256x1xi32>
    %22 = arith.cmpi slt, %16, %21 : vector<256x1xi32>
    %23 = arith.extui %22 : vector<256x1xi1> to vector<256x1xi32>
    %24 = arith.sitofp %23 : vector<256x1xi32> to vector<256x1xf32>
    %cst = arith.constant 0.000000e+00 : f32
    %25 = vector.broadcast %cst : f32 to vector<256x32xf32>
    %c0 = arith.constant 0 : index
    %c7 = arith.constant 7 : index
    %c0_4 = arith.constant 0 : index
    %26 = vector.load %arg1[%c0, %c7, %c0_4] : memref<1x304x24xf32, #tpu.memory_space<vmem>>, vector<1x256x24xf32>
    %27 = vector.shape_cast %26 : vector<1x256x24xf32> to vector<256x24xf32>
    %28 = vector.broadcast %20 : vector<256x1xf32> to vector<256x24xf32>
    %29 = arith.mulf %27, %28 : vector<256x24xf32>
    %c0_5 = arith.constant 0 : index
    %c0_6 = arith.constant 0 : index
    %c0_7 = arith.constant 0 : index
    %c0_8 = arith.constant 0 : index
    %30 = vector.load %arg2[%c0_5, %c0_6, %c0_7, %c0_8] : memref<3x3x24x32xf32, #tpu.memory_space<vmem>>, vector<1x1x24x32xf32>
    %31 = vector.shape_cast %30 : vector<1x1x24x32xf32> to vector<24x32xf32>
    %cst_9 = arith.constant dense<0.000000e+00> : vector<256x32xf32>
    %32 = tpu.matmul %29, %31, %cst_9 {dimension_numbers = #tpu.dot_dimension_numbers<[1], [0], [0], [1], [0, 0, 1, 1], [], []>} : vector<256x24xf32>, vector<24x32xf32>, vector<256x32xf32> -> vector<256x32xf32>
    %33 = arith.addf %25, %32 : vector<256x32xf32>
    %c0_10 = arith.constant 0 : index
    %c8 = arith.constant 8 : index
    %c0_11 = arith.constant 0 : index
    %34 = vector.load %arg1[%c0_10, %c8, %c0_11] : memref<1x304x24xf32, #tpu.memory_space<vmem>>, vector<1x256x24xf32>
    %35 = vector.shape_cast %34 : vector<1x256x24xf32> to vector<256x24xf32>
    %c0_12 = arith.constant 0 : index
    %c1 = arith.constant 1 : index
    %c0_13 = arith.constant 0 : index
    %c0_14 = arith.constant 0 : index
    %36 = vector.load %arg2[%c0_12, %c1, %c0_13, %c0_14] : memref<3x3x24x32xf32, #tpu.memory_space<vmem>>, vector<1x1x24x32xf32>
    %37 = vector.shape_cast %36 : vector<1x1x24x32xf32> to vector<24x32xf32>
    %cst_15 = arith.constant dense<0.000000e+00> : vector<256x32xf32>
    %38 = tpu.matmul %35, %37, %cst_15 {dimension_numbers = #tpu.dot_dimension_numbers<[1], [0], [0], [1], [0, 0, 1, 1], [], []>} : vector<256x24xf32>, vector<24x32xf32>, vector<256x32xf32> -> vector<256x32xf32>
    %39 = arith.addf %33, %38 : vector<256x32xf32>
    %c0_16 = arith.constant 0 : index
    %c9 = arith.constant 9 : index
    %c0_17 = arith.constant 0 : index
    %40 = vector.load %arg1[%c0_16, %c9, %c0_17] : memref<1x304x24xf32, #tpu.memory_space<vmem>>, vector<1x256x24xf32>
    %41 = vector.shape_cast %40 : vector<1x256x24xf32> to vector<256x24xf32>
    %42 = vector.broadcast %24 : vector<256x1xf32> to vector<256x24xf32>
    %43 = arith.mulf %41, %42 : vector<256x24xf32>
    %c0_18 = arith.constant 0 : index
    %c2 = arith.constant 2 : index
    %c0_19 = arith.constant 0 : index
    %c0_20 = arith.constant 0 : index
    %44 = vector.load %arg2[%c0_18, %c2, %c0_19, %c0_20] : memref<3x3x24x32xf32, #tpu.memory_space<vmem>>, vector<1x1x24x32xf32>
    %45 = vector.shape_cast %44 : vector<1x1x24x32xf32> to vector<24x32xf32>
    %cst_21 = arith.constant dense<0.000000e+00> : vector<256x32xf32>
    %46 = tpu.matmul %43, %45, %cst_21 {dimension_numbers = #tpu.dot_dimension_numbers<[1], [0], [0], [1], [0, 0, 1, 1], [], []>} : vector<256x24xf32>, vector<24x32xf32>, vector<256x32xf32> -> vector<256x32xf32>
    %47 = arith.addf %39, %46 : vector<256x32xf32>
    %c0_22 = arith.constant 0 : index
    %c23 = arith.constant 23 : index
    %c0_23 = arith.constant 0 : index
    %48 = vector.load %arg1[%c0_22, %c23, %c0_23] : memref<1x304x24xf32, #tpu.memory_space<vmem>>, vector<1x256x24xf32>
    %49 = vector.shape_cast %48 : vector<1x256x24xf32> to vector<256x24xf32>
    %50 = vector.broadcast %20 : vector<256x1xf32> to vector<256x24xf32>
    %51 = arith.mulf %49, %50 : vector<256x24xf32>
    %c1_24 = arith.constant 1 : index
    %c0_25 = arith.constant 0 : index
    %c0_26 = arith.constant 0 : index
    %c0_27 = arith.constant 0 : index
    %52 = vector.load %arg2[%c1_24, %c0_25, %c0_26, %c0_27] : memref<3x3x24x32xf32, #tpu.memory_space<vmem>>, vector<1x1x24x32xf32>
    %53 = vector.shape_cast %52 : vector<1x1x24x32xf32> to vector<24x32xf32>
    %cst_28 = arith.constant dense<0.000000e+00> : vector<256x32xf32>
    %54 = tpu.matmul %51, %53, %cst_28 {dimension_numbers = #tpu.dot_dimension_numbers<[1], [0], [0], [1], [0, 0, 1, 1], [], []>} : vector<256x24xf32>, vector<24x32xf32>, vector<256x32xf32> -> vector<256x32xf32>
    %55 = arith.addf %47, %54 : vector<256x32xf32>
    %c0_29 = arith.constant 0 : index
    %c24 = arith.constant 24 : index
    %c0_30 = arith.constant 0 : index
    %56 = vector.load %arg1[%c0_29, %c24, %c0_30] : memref<1x304x24xf32, #tpu.memory_space<vmem>>, vector<1x256x24xf32>
    %57 = vector.shape_cast %56 : vector<1x256x24xf32> to vector<256x24xf32>
    %c1_31 = arith.constant 1 : index
    %c1_32 = arith.constant 1 : index
    %c0_33 = arith.constant 0 : index
    %c0_34 = arith.constant 0 : index
    %58 = vector.load %arg2[%c1_31, %c1_32, %c0_33, %c0_34] : memref<3x3x24x32xf32, #tpu.memory_space<vmem>>, vector<1x1x24x32xf32>
    %59 = vector.shape_cast %58 : vector<1x1x24x32xf32> to vector<24x32xf32>
    %cst_35 = arith.constant dense<0.000000e+00> : vector<256x32xf32>
    %60 = tpu.matmul %57, %59, %cst_35 {dimension_numbers = #tpu.dot_dimension_numbers<[1], [0], [0], [1], [0, 0, 1, 1], [], []>} : vector<256x24xf32>, vector<24x32xf32>, vector<256x32xf32> -> vector<256x32xf32>
    %61 = arith.addf %55, %60 : vector<256x32xf32>
    %c0_36 = arith.constant 0 : index
    %c25 = arith.constant 25 : index
    %c0_37 = arith.constant 0 : index
    %62 = vector.load %arg1[%c0_36, %c25, %c0_37] : memref<1x304x24xf32, #tpu.memory_space<vmem>>, vector<1x256x24xf32>
    %63 = vector.shape_cast %62 : vector<1x256x24xf32> to vector<256x24xf32>
    %64 = vector.broadcast %24 : vector<256x1xf32> to vector<256x24xf32>
    %65 = arith.mulf %63, %64 : vector<256x24xf32>
    %c1_38 = arith.constant 1 : index
    %c2_39 = arith.constant 2 : index
    %c0_40 = arith.constant 0 : index
    %c0_41 = arith.constant 0 : index
    %66 = vector.load %arg2[%c1_38, %c2_39, %c0_40, %c0_41] : memref<3x3x24x32xf32, #tpu.memory_space<vmem>>, vector<1x1x24x32xf32>
    %67 = vector.shape_cast %66 : vector<1x1x24x32xf32> to vector<24x32xf32>
    %cst_42 = arith.constant dense<0.000000e+00> : vector<256x32xf32>
    %68 = tpu.matmul %65, %67, %cst_42 {dimension_numbers = #tpu.dot_dimension_numbers<[1], [0], [0], [1], [0, 0, 1, 1], [], []>} : vector<256x24xf32>, vector<24x32xf32>, vector<256x32xf32> -> vector<256x32xf32>
    %69 = arith.addf %61, %68 : vector<256x32xf32>
    %c0_43 = arith.constant 0 : index
    %c39 = arith.constant 39 : index
    %c0_44 = arith.constant 0 : index
    %70 = vector.load %arg1[%c0_43, %c39, %c0_44] : memref<1x304x24xf32, #tpu.memory_space<vmem>>, vector<1x256x24xf32>
    %71 = vector.shape_cast %70 : vector<1x256x24xf32> to vector<256x24xf32>
    %72 = vector.broadcast %20 : vector<256x1xf32> to vector<256x24xf32>
    %73 = arith.mulf %71, %72 : vector<256x24xf32>
    %c2_45 = arith.constant 2 : index
    %c0_46 = arith.constant 0 : index
    %c0_47 = arith.constant 0 : index
    %c0_48 = arith.constant 0 : index
    %74 = vector.load %arg2[%c2_45, %c0_46, %c0_47, %c0_48] : memref<3x3x24x32xf32, #tpu.memory_space<vmem>>, vector<1x1x24x32xf32>
    %75 = vector.shape_cast %74 : vector<1x1x24x32xf32> to vector<24x32xf32>
    %cst_49 = arith.constant dense<0.000000e+00> : vector<256x32xf32>
    %76 = tpu.matmul %73, %75, %cst_49 {dimension_numbers = #tpu.dot_dimension_numbers<[1], [0], [0], [1], [0, 0, 1, 1], [], []>} : vector<256x24xf32>, vector<24x32xf32>, vector<256x32xf32> -> vector<256x32xf32>
    %77 = arith.addf %69, %76 : vector<256x32xf32>
    %c0_50 = arith.constant 0 : index
    %c40 = arith.constant 40 : index
    %c0_51 = arith.constant 0 : index
    %78 = vector.load %arg1[%c0_50, %c40, %c0_51] : memref<1x304x24xf32, #tpu.memory_space<vmem>>, vector<1x256x24xf32>
    %79 = vector.shape_cast %78 : vector<1x256x24xf32> to vector<256x24xf32>
    %c2_52 = arith.constant 2 : index
    %c1_53 = arith.constant 1 : index
    %c0_54 = arith.constant 0 : index
    %c0_55 = arith.constant 0 : index
    %80 = vector.load %arg2[%c2_52, %c1_53, %c0_54, %c0_55] : memref<3x3x24x32xf32, #tpu.memory_space<vmem>>, vector<1x1x24x32xf32>
    %81 = vector.shape_cast %80 : vector<1x1x24x32xf32> to vector<24x32xf32>
    %cst_56 = arith.constant dense<0.000000e+00> : vector<256x32xf32>
    %82 = tpu.matmul %79, %81, %cst_56 {dimension_numbers = #tpu.dot_dimension_numbers<[1], [0], [0], [1], [0, 0, 1, 1], [], []>} : vector<256x24xf32>, vector<24x32xf32>, vector<256x32xf32> -> vector<256x32xf32>
    %83 = arith.addf %77, %82 : vector<256x32xf32>
    %c0_57 = arith.constant 0 : index
    %c41 = arith.constant 41 : index
    %c0_58 = arith.constant 0 : index
    %84 = vector.load %arg1[%c0_57, %c41, %c0_58] : memref<1x304x24xf32, #tpu.memory_space<vmem>>, vector<1x256x24xf32>
    %85 = vector.shape_cast %84 : vector<1x256x24xf32> to vector<256x24xf32>
    %86 = vector.broadcast %24 : vector<256x1xf32> to vector<256x24xf32>
    %87 = arith.mulf %85, %86 : vector<256x24xf32>
    %c2_59 = arith.constant 2 : index
    %c2_60 = arith.constant 2 : index
    %c0_61 = arith.constant 0 : index
    %c0_62 = arith.constant 0 : index
    %88 = vector.load %arg2[%c2_59, %c2_60, %c0_61, %c0_62] : memref<3x3x24x32xf32, #tpu.memory_space<vmem>>, vector<1x1x24x32xf32>
    %89 = vector.shape_cast %88 : vector<1x1x24x32xf32> to vector<24x32xf32>
    %cst_63 = arith.constant dense<0.000000e+00> : vector<256x32xf32>
    %90 = tpu.matmul %87, %89, %cst_63 {dimension_numbers = #tpu.dot_dimension_numbers<[1], [0], [0], [1], [0, 0, 1, 1], [], []>} : vector<256x24xf32>, vector<24x32xf32>, vector<256x32xf32> -> vector<256x32xf32>
    %91 = arith.addf %83, %90 : vector<256x32xf32>
    %c0_64 = arith.constant 0 : index
    %c0_65 = arith.constant 0 : index
    %92 = vector.load %arg3[%c0_64, %c0_65] : memref<1x32xf32, #tpu.memory_space<vmem>>, vector<1x32xf32>
    %93 = vector.broadcast %92 : vector<1x32xf32> to vector<256x32xf32>
    %94 = arith.addf %91, %93 : vector<256x32xf32>
    %cst_66 = arith.constant 0.000000e+00 : f32
    %95 = vector.broadcast %cst_66 : f32 to vector<256x32xf32>
    %96 = arith.maximumf %94, %95 : vector<256x32xf32>
    %cst_67 = arith.constant 0.000000e+00 : f32
    %97 = vector.broadcast %cst_67 : f32 to vector<24x32xf32>
    %c0_68 = arith.constant 0 : index
    %c0_69 = arith.constant 0 : index
    %98 = vector.load %arg9[%c0_68, %c0_69] : memref<304x32xf32, #tpu.memory_space<vmem>>, vector<24x32xf32>
    tpu.vector_store %arg9[%c0_68, %c0_69], %97 {strides = array<i32>} : memref<304x32xf32, #tpu.memory_space<vmem>>, vector<24x32xf32>,
    %cst_70 = arith.constant 0.000000e+00 : f32
    %99 = vector.broadcast %cst_70 : f32 to vector<24x32xf32>
    %c280 = arith.constant 280 : index
    %c0_71 = arith.constant 0 : index
    %100 = vector.load %arg9[%c280, %c0_71] : memref<304x32xf32, #tpu.memory_space<vmem>>, vector<24x32xf32>
    tpu.vector_store %arg9[%c280, %c0_71], %99 {strides = array<i32>} : memref<304x32xf32, #tpu.memory_space<vmem>>, vector<24x32xf32>,
    %c24_72 = arith.constant 24 : index
    %c0_73 = arith.constant 0 : index
    %101 = vector.load %arg9[%c24_72, %c0_73] : memref<304x32xf32, #tpu.memory_space<vmem>>, vector<256x32xf32>
    tpu.vector_store %arg9[%c24_72, %c0_73], %96 {strides = array<i32>} : memref<304x32xf32, #tpu.memory_space<vmem>>, vector<256x32xf32>,
    %cst_74 = arith.constant 0.000000e+00 : f32
    %102 = vector.broadcast %cst_74 : f32 to vector<256x32xf32>
    %c7_75 = arith.constant 7 : index
    %c0_76 = arith.constant 0 : index
    %103 = vector.load %arg9[%c7_75, %c0_76] : memref<304x32xf32, #tpu.memory_space<vmem>>, vector<256x32xf32>
    %104 = vector.broadcast %20 : vector<256x1xf32> to vector<256x32xf32>
    %105 = arith.mulf %103, %104 : vector<256x32xf32>
    %c0_77 = arith.constant 0 : index
    %c0_78 = arith.constant 0 : index
    %c0_79 = arith.constant 0 : index
    %c0_80 = arith.constant 0 : index
    %106 = vector.load %arg4[%c0_77, %c0_78, %c0_79, %c0_80] : memref<3x3x32x32xf32, #tpu.memory_space<vmem>>, vector<1x1x32x32xf32>
    %107 = vector.shape_cast %106 : vector<1x1x32x32xf32> to vector<32x32xf32>
    %cst_81 = arith.constant dense<0.000000e+00> : vector<256x32xf32>
    %108 = tpu.matmul %105, %107, %cst_81 {dimension_numbers = #tpu.dot_dimension_numbers<[1], [0], [0], [1], [0, 0, 1, 1], [], []>} : vector<256x32xf32>, vector<32x32xf32>, vector<256x32xf32> -> vector<256x32xf32>
    %109 = arith.addf %102, %108 : vector<256x32xf32>
    %c8_82 = arith.constant 8 : index
    %c0_83 = arith.constant 0 : index
    %110 = vector.load %arg9[%c8_82, %c0_83] : memref<304x32xf32, #tpu.memory_space<vmem>>, vector<256x32xf32>
    %c0_84 = arith.constant 0 : index
    %c1_85 = arith.constant 1 : index
    %c0_86 = arith.constant 0 : index
    %c0_87 = arith.constant 0 : index
    %111 = vector.load %arg4[%c0_84, %c1_85, %c0_86, %c0_87] : memref<3x3x32x32xf32, #tpu.memory_space<vmem>>, vector<1x1x32x32xf32>
    %112 = vector.shape_cast %111 : vector<1x1x32x32xf32> to vector<32x32xf32>
    %cst_88 = arith.constant dense<0.000000e+00> : vector<256x32xf32>
    %113 = tpu.matmul %110, %112, %cst_88 {dimension_numbers = #tpu.dot_dimension_numbers<[1], [0], [0], [1], [0, 0, 1, 1], [], []>} : vector<256x32xf32>, vector<32x32xf32>, vector<256x32xf32> -> vector<256x32xf32>
    %114 = arith.addf %109, %113 : vector<256x32xf32>
    %c9_89 = arith.constant 9 : index
    %c0_90 = arith.constant 0 : index
    %115 = vector.load %arg9[%c9_89, %c0_90] : memref<304x32xf32, #tpu.memory_space<vmem>>, vector<256x32xf32>
    %116 = vector.broadcast %24 : vector<256x1xf32> to vector<256x32xf32>
    %117 = arith.mulf %115, %116 : vector<256x32xf32>
    %c0_91 = arith.constant 0 : index
    %c2_92 = arith.constant 2 : index
    %c0_93 = arith.constant 0 : index
    %c0_94 = arith.constant 0 : index
    %118 = vector.load %arg4[%c0_91, %c2_92, %c0_93, %c0_94] : memref<3x3x32x32xf32, #tpu.memory_space<vmem>>, vector<1x1x32x32xf32>
    %119 = vector.shape_cast %118 : vector<1x1x32x32xf32> to vector<32x32xf32>
    %cst_95 = arith.constant dense<0.000000e+00> : vector<256x32xf32>
    %120 = tpu.matmul %117, %119, %cst_95 {dimension_numbers = #tpu.dot_dimension_numbers<[1], [0], [0], [1], [0, 0, 1, 1], [], []>} : vector<256x32xf32>, vector<32x32xf32>, vector<256x32xf32> -> vector<256x32xf32>
    %121 = arith.addf %114, %120 : vector<256x32xf32>
    %c23_96 = arith.constant 23 : index
    %c0_97 = arith.constant 0 : index
    %122 = vector.load %arg9[%c23_96, %c0_97] : memref<304x32xf32, #tpu.memory_space<vmem>>, vector<256x32xf32>
    %123 = vector.broadcast %20 : vector<256x1xf32> to vector<256x32xf32>
    %124 = arith.mulf %122, %123 : vector<256x32xf32>
    %c1_98 = arith.constant 1 : index
    %c0_99 = arith.constant 0 : index
    %c0_100 = arith.constant 0 : index
    %c0_101 = arith.constant 0 : index
    %125 = vector.load %arg4[%c1_98, %c0_99, %c0_100, %c0_101] : memref<3x3x32x32xf32, #tpu.memory_space<vmem>>, vector<1x1x32x32xf32>
    %126 = vector.shape_cast %125 : vector<1x1x32x32xf32> to vector<32x32xf32>
    %cst_102 = arith.constant dense<0.000000e+00> : vector<256x32xf32>
    %127 = tpu.matmul %124, %126, %cst_102 {dimension_numbers = #tpu.dot_dimension_numbers<[1], [0], [0], [1], [0, 0, 1, 1], [], []>} : vector<256x32xf32>, vector<32x32xf32>, vector<256x32xf32> -> vector<256x32xf32>
    %128 = arith.addf %121, %127 : vector<256x32xf32>
    %c24_103 = arith.constant 24 : index
    %c0_104 = arith.constant 0 : index
    %129 = vector.load %arg9[%c24_103, %c0_104] : memref<304x32xf32, #tpu.memory_space<vmem>>, vector<256x32xf32>
    %c1_105 = arith.constant 1 : index
    %c1_106 = arith.constant 1 : index
    %c0_107 = arith.constant 0 : index
    %c0_108 = arith.constant 0 : index
    %130 = vector.load %arg4[%c1_105, %c1_106, %c0_107, %c0_108] : memref<3x3x32x32xf32, #tpu.memory_space<vmem>>, vector<1x1x32x32xf32>
    %131 = vector.shape_cast %130 : vector<1x1x32x32xf32> to vector<32x32xf32>
    %cst_109 = arith.constant dense<0.000000e+00> : vector<256x32xf32>
    %132 = tpu.matmul %129, %131, %cst_109 {dimension_numbers = #tpu.dot_dimension_numbers<[1], [0], [0], [1], [0, 0, 1, 1], [], []>} : vector<256x32xf32>, vector<32x32xf32>, vector<256x32xf32> -> vector<256x32xf32>
    %133 = arith.addf %128, %132 : vector<256x32xf32>
    %c25_110 = arith.constant 25 : index
    %c0_111 = arith.constant 0 : index
    %134 = vector.load %arg9[%c25_110, %c0_111] : memref<304x32xf32, #tpu.memory_space<vmem>>, vector<256x32xf32>
    %135 = vector.broadcast %24 : vector<256x1xf32> to vector<256x32xf32>
    %136 = arith.mulf %134, %135 : vector<256x32xf32>
    %c1_112 = arith.constant 1 : index
    %c2_113 = arith.constant 2 : index
    %c0_114 = arith.constant 0 : index
    %c0_115 = arith.constant 0 : index
    %137 = vector.load %arg4[%c1_112, %c2_113, %c0_114, %c0_115] : memref<3x3x32x32xf32, #tpu.memory_space<vmem>>, vector<1x1x32x32xf32>
    %138 = vector.shape_cast %137 : vector<1x1x32x32xf32> to vector<32x32xf32>
    %cst_116 = arith.constant dense<0.000000e+00> : vector<256x32xf32>
    %139 = tpu.matmul %136, %138, %cst_116 {dimension_numbers = #tpu.dot_dimension_numbers<[1], [0], [0], [1], [0, 0, 1, 1], [], []>} : vector<256x32xf32>, vector<32x32xf32>, vector<256x32xf32> -> vector<256x32xf32>
    %140 = arith.addf %133, %139 : vector<256x32xf32>
    %c39_117 = arith.constant 39 : index
    %c0_118 = arith.constant 0 : index
    %141 = vector.load %arg9[%c39_117, %c0_118] : memref<304x32xf32, #tpu.memory_space<vmem>>, vector<256x32xf32>
    %142 = vector.broadcast %20 : vector<256x1xf32> to vector<256x32xf32>
    %143 = arith.mulf %141, %142 : vector<256x32xf32>
    %c2_119 = arith.constant 2 : index
    %c0_120 = arith.constant 0 : index
    %c0_121 = arith.constant 0 : index
    %c0_122 = arith.constant 0 : index
    %144 = vector.load %arg4[%c2_119, %c0_120, %c0_121, %c0_122] : memref<3x3x32x32xf32, #tpu.memory_space<vmem>>, vector<1x1x32x32xf32>
    %145 = vector.shape_cast %144 : vector<1x1x32x32xf32> to vector<32x32xf32>
    %cst_123 = arith.constant dense<0.000000e+00> : vector<256x32xf32>
    %146 = tpu.matmul %143, %145, %cst_123 {dimension_numbers = #tpu.dot_dimension_numbers<[1], [0], [0], [1], [0, 0, 1, 1], [], []>} : vector<256x32xf32>, vector<32x32xf32>, vector<256x32xf32> -> vector<256x32xf32>
    %147 = arith.addf %140, %146 : vector<256x32xf32>
    %c40_124 = arith.constant 40 : index
    %c0_125 = arith.constant 0 : index
    %148 = vector.load %arg9[%c40_124, %c0_125] : memref<304x32xf32, #tpu.memory_space<vmem>>, vector<256x32xf32>
    %c2_126 = arith.constant 2 : index
    %c1_127 = arith.constant 1 : index
    %c0_128 = arith.constant 0 : index
    %c0_129 = arith.constant 0 : index
    %149 = vector.load %arg4[%c2_126, %c1_127, %c0_128, %c0_129] : memref<3x3x32x32xf32, #tpu.memory_space<vmem>>, vector<1x1x32x32xf32>
    %150 = vector.shape_cast %149 : vector<1x1x32x32xf32> to vector<32x32xf32>
    %cst_130 = arith.constant dense<0.000000e+00> : vector<256x32xf32>
    %151 = tpu.matmul %148, %150, %cst_130 {dimension_numbers = #tpu.dot_dimension_numbers<[1], [0], [0], [1], [0, 0, 1, 1], [], []>} : vector<256x32xf32>, vector<32x32xf32>, vector<256x32xf32> -> vector<256x32xf32>
    %152 = arith.addf %147, %151 : vector<256x32xf32>
    %c41_131 = arith.constant 41 : index
    %c0_132 = arith.constant 0 : index
    %153 = vector.load %arg9[%c41_131, %c0_132] : memref<304x32xf32, #tpu.memory_space<vmem>>, vector<256x32xf32>
    %154 = vector.broadcast %24 : vector<256x1xf32> to vector<256x32xf32>
    %155 = arith.mulf %153, %154 : vector<256x32xf32>
    %c2_133 = arith.constant 2 : index
    %c2_134 = arith.constant 2 : index
    %c0_135 = arith.constant 0 : index
    %c0_136 = arith.constant 0 : index
    %156 = vector.load %arg4[%c2_133, %c2_134, %c0_135, %c0_136] : memref<3x3x32x32xf32, #tpu.memory_space<vmem>>, vector<1x1x32x32xf32>
    %157 = vector.shape_cast %156 : vector<1x1x32x32xf32> to vector<32x32xf32>
    %cst_137 = arith.constant dense<0.000000e+00> : vector<256x32xf32>
    %158 = tpu.matmul %155, %157, %cst_137 {dimension_numbers = #tpu.dot_dimension_numbers<[1], [0], [0], [1], [0, 0, 1, 1], [], []>} : vector<256x32xf32>, vector<32x32xf32>, vector<256x32xf32> -> vector<256x32xf32>
    %159 = arith.addf %152, %158 : vector<256x32xf32>
    %c0_138 = arith.constant 0 : index
    %c0_139 = arith.constant 0 : index
    %160 = vector.load %arg5[%c0_138, %c0_139] : memref<1x32xf32, #tpu.memory_space<vmem>>, vector<1x32xf32>
    %161 = vector.broadcast %160 : vector<1x32xf32> to vector<256x32xf32>
    %162 = arith.addf %159, %161 : vector<256x32xf32>
    %c0_140 = arith.constant 0 : index
    %c24_141 = arith.constant 24 : index
    %c0_142 = arith.constant 0 : index
    %163 = vector.load %arg1[%c0_140, %c24_141, %c0_142] : memref<1x304x24xf32, #tpu.memory_space<vmem>>, vector<1x256x24xf32>
    %164 = vector.shape_cast %163 : vector<1x256x24xf32> to vector<256x24xf32>
    %c0_143 = arith.constant 0 : index
    %c0_144 = arith.constant 0 : index
    %165 = vector.load %arg6[%c0_143, %c0_144] : memref<24x32xf32, #tpu.memory_space<vmem>>, vector<24x32xf32>
    %cst_145 = arith.constant dense<0.000000e+00> : vector<256x32xf32>
    %166 = tpu.matmul %164, %165, %cst_145 {dimension_numbers = #tpu.dot_dimension_numbers<[1], [0], [0], [1], [0, 0, 1, 1], [], []>} : vector<256x24xf32>, vector<24x32xf32>, vector<256x32xf32> -> vector<256x32xf32>
    %c0_146 = arith.constant 0 : index
    %c0_147 = arith.constant 0 : index
    %167 = vector.load %arg7[%c0_146, %c0_147] : memref<1x32xf32, #tpu.memory_space<vmem>>, vector<1x32xf32>
    %168 = vector.broadcast %167 : vector<1x32xf32> to vector<256x32xf32>
    %169 = arith.addf %166, %168 : vector<256x32xf32>
    %170 = arith.addf %162, %169 : vector<256x32xf32>
    %cst_148 = arith.constant 0.000000e+00 : f32
    %171 = vector.broadcast %cst_148 : f32 to vector<256x32xf32>
    %172 = arith.maximumf %170, %171 : vector<256x32xf32>
    %c0_149 = arith.constant 0 : index
    %c0_150 = arith.constant 0 : index
    %c0_151 = arith.constant 0 : index
    %173 = vector.load %arg8[%c0_149, %c0_150, %c0_151] : memref<1x256x32xf32, #tpu.memory_space<vmem>>, vector<1x256x32xf32>
    %174 = vector.shape_cast %173 : vector<1x256x32xf32> to vector<256x32xf32>
    %175 = vector.shape_cast %172 : vector<256x32xf32> to vector<1x256x32xf32>
    tpu.vector_store %arg8[%c0_149, %c0_150, %c0_151], %175 {strides = array<i32>} : memref<1x256x32xf32, #tpu.memory_space<vmem>>, vector<1x256x32xf32>,
    return
  }
  func.func @transform_0(%arg0: i32) -> (i32, i32, i32) {
    %c0_i32 = arith.constant 0 : i32
    %c0_i32_0 = arith.constant 0 : i32
    %c0_i32_1 = arith.constant 0 : i32
    return %arg0, %c0_i32, %c0_i32_0 : i32, i32, i32
  }
  func.func @transform_1(%arg0: i32) -> (i32, i32, i32, i32) {
    %c0_i32 = arith.constant 0 : i32
    %c0_i32_0 = arith.constant 0 : i32
    %c0_i32_1 = arith.constant 0 : i32
    %c0_i32_2 = arith.constant 0 : i32
    %c0_i32_3 = arith.constant 0 : i32
    return %c0_i32, %c0_i32_0, %c0_i32_1, %c0_i32_2 : i32, i32, i32, i32
  }
  func.func @transform_2(%arg0: i32) -> (i32, i32) {
    %c0_i32 = arith.constant 0 : i32
    %c0_i32_0 = arith.constant 0 : i32
    %c0_i32_1 = arith.constant 0 : i32
    return %c0_i32, %c0_i32_0 : i32, i32
  }
  func.func @transform_3(%arg0: i32) -> (i32, i32, i32, i32) {
    %c0_i32 = arith.constant 0 : i32
    %c0_i32_0 = arith.constant 0 : i32
    %c0_i32_1 = arith.constant 0 : i32
    %c0_i32_2 = arith.constant 0 : i32
    %c0_i32_3 = arith.constant 0 : i32
    return %c0_i32, %c0_i32_0, %c0_i32_1, %c0_i32_2 : i32, i32, i32, i32
  }
  func.func @transform_4(%arg0: i32) -> (i32, i32) {
    %c0_i32 = arith.constant 0 : i32
    %c0_i32_0 = arith.constant 0 : i32
    %c0_i32_1 = arith.constant 0 : i32
    return %c0_i32, %c0_i32_0 : i32, i32
  }
  func.func @transform_5(%arg0: i32) -> (i32, i32) {
    %c0_i32 = arith.constant 0 : i32
    %c0_i32_0 = arith.constant 0 : i32
    %c0_i32_1 = arith.constant 0 : i32
    return %c0_i32, %c0_i32_0 : i32, i32
  }
  func.func @transform_6(%arg0: i32) -> (i32, i32) {
    %c0_i32 = arith.constant 0 : i32
    %c0_i32_0 = arith.constant 0 : i32
    %c0_i32_1 = arith.constant 0 : i32
    return %c0_i32, %c0_i32_0 : i32, i32
  }
  func.func @transform_7(%arg0: i32) -> (i32, i32, i32) {
    %c0_i32 = arith.constant 0 : i32
    %c0_i32_0 = arith.constant 0 : i32
    %c0_i32_1 = arith.constant 0 : i32
    return %arg0, %c0_i32, %c0_i32_0 : i32, i32, i32
  }
}

</mosaic_0001>

<llo_original>
// kernel: tpu_custom_call.1
$region0: #{tpu_custom_call.1}
  #allocation0 [shape = 'u32[]', space=smem, size = 0x4, offset = 0x4, fixed_abs, tag = 'smem constant byte address 0x4 - core index']
  #allocation1 [shape = 'u32[72,128]{1,0:T(1,128)}', space=vmem, size = 0x9000, scoped, tag = 'internal scratch']
  #allocation2 [shape = 'f32[304,32]{1,0:T(8,128)}', space=vmem, size = 0x26000, scoped, tag = 'scratch operand']
  %s0 = inlined_call_operand.vmem [shape: f32[2,304,24], index: 0, kind: input, shape index: {}]
  %s1 = inlined_call_operand.vmem [shape: f32[3,3,24,32], index: 1, kind: input, shape index: {}]
  %s2 = inlined_call_operand.vmem [shape: f32[1,32], index: 2, kind: input, shape index: {}]
  %s3 = inlined_call_operand.vmem [shape: f32[3,3,32,32], index: 3, kind: input, shape index: {}]
  %s4 = inlined_call_operand.vmem [shape: f32[1,32], index: 4, kind: input, shape index: {}]
  %s5 = inlined_call_operand.vmem [shape: f32[24,32], index: 5, kind: input, shape index: {}]
  %s6 = inlined_call_operand.vmem [shape: f32[1,32], index: 6, kind: input, shape index: {}]
  %s7 = inlined_call_operand.vmem [shape: f32[2,256,32], index: 7, kind: output, shape index: {}]
  %s8 = sld [smem:[#allocation0]]
  $region61: #{tpu_custom_call.1} parent=0
    _
  %s10 = ssub.s32 1, %s8
  %s11 = scalar_select 0, %s10, %s8
  loop: start=0, step=1, limit=4
  $region2: #{tpu_custom_call.1} parent=0 // loop_pre_header
    _
  $region3: #{tpu_custom_call.1} parent=0 // loop_header
    %s13 = sphi 0, %s17
    %p14 = scmp.ge.s32.totalorder %s13, 4
    %s23 = sphi 0, %s25
    %s26 = sphi 0, %s23
    %s27 = sphi 0, %s26
    %s43 = sphi 0, %s27
    %s47 = sphi 0, %s47
    %s49 = sphi 0, %s47
    %s50 = sphi 0, %s49
    %s64 = sphi 0, %s50
    %s68 = sphi 0, %s68
    %s70 = sphi 0, %s68
    %s71 = sphi 0, %s70
    %s85 = sphi 0, %s71
    %s89 = sphi 0, %s89
    %s91 = sphi 0, %s89
    %s92 = sphi 0, %s91
    %s106 = sphi 0, %s92
    %s110 = sphi 0, %s110
    %s112 = sphi 0, %s110
    %s113 = sphi 0, %s112
    %s127 = sphi 0, %s113
    %s131 = sphi 0, %s131
    %s133 = sphi 0, %s131
    %s134 = sphi 0, %s133
    %s148 = sphi 0, %s134
    %s152 = sphi 0, %s152
    %s154 = sphi 0, %s152
    %s155 = sphi 0, %s154
    %s169 = sphi 0, %s155
    %s175 = sphi 0, %s177
    %s178 = sphi 0, %s175
    %s179 = sphi 0, %s178
    %s195 = sphi 0, %s179
  $region4: #{tpu_custom_call.1} parent=0 // loop_header_branch
    %16 = sbr.rel (%p14) target = $region8
  $region5: #{tpu_custom_call.1} parent=0 // loop_body
    %s18 = ssub.s32 %s13, 1
    %s19 = ssub.s32 %s13, 2
    %s20 = sadd.s32 %s13, 1
    %s21 = ssub.s32 %s13, %s20
    %p22 = scmp.eq.s32.totalorder %s21, 0
    %s24 = sadd.s32 %s23, 1
    %s25 = scalar_select %p22, %s23, %s24
    %p28 = pneg %p22
    %p29 = scmp.eq.s32.totalorder %s13, 1
    %p30 = por %p28, %p29
    %p31 = scmp.ne.s32.totalorder %s23, %s26
    %p32 = scmp.eq.s32.totalorder %s13, 0
    %p33 = por %p31, %p32
    %p34 = scmp.ne.s32.totalorder %s23, %s26
    %p35 = scmp.eq.s32.totalorder %s18, 1
    %p36 = por %p34, %p35
    %p37 = scmp.ne.s32.totalorder %s26, %s27
    %p38 = scmp.eq.s32.totalorder %s18, 0
    %p39 = por %p37, %p38
    %p40 = scmp.ne.s32.totalorder %s26, %s27
    %p41 = scmp.eq.s32.totalorder %s19, 1
    %p42 = por %p40, %p41
    %p44 = scmp.ne.s32.totalorder %s27, %s43
    %p45 = scmp.eq.s32.totalorder %s19, 0
    %p46 = por %p44, %p45
    %s48 = sadd.s32 %s47, 1
    %p51 = scmp.eq.s32.totalorder %s13, 1
    %p52 = scmp.ne.s32.totalorder %s47, %s49
    %p53 = scmp.eq.s32.totalorder %s13, 0
    %p54 = por %p52, %p53
    %p55 = scmp.ne.s32.totalorder %s47, %s49
    %p56 = scmp.eq.s32.totalorder %s18, 1
    %p57 = por %p55, %p56
    %p58 = scmp.ne.s32.totalorder %s49, %s50
    %p59 = scmp.eq.s32.totalorder %s18, 0
    %p60 = por %p58, %p59
    %p61 = scmp.ne.s32.totalorder %s49, %s50
    %p62 = scmp.eq.s32.totalorder %s19, 1
    %p63 = por %p61, %p62
    %p65 = scmp.ne.s32.totalorder %s50, %s64
    %p66 = scmp.eq.s32.totalorder %s19, 0
    %p67 = por %p65, %p66
    %s69 = sadd.s32 %s68, 1
    %p72 = scmp.eq.s32.totalorder %s13, 1
    %p73 = scmp.ne.s32.totalorder %s68, %s70
    %p74 = scmp.eq.s32.totalorder %s13, 0
    %p75 = por %p73, %p74
    %p76 = scmp.ne.s32.totalorder %s68, %s70
    %p77 = scmp.eq.s32.totalorder %s18, 1
    %p78 = por %p76, %p77
    %p79 = scmp.ne.s32.totalorder %s70, %s71
    %p80 = scmp.eq.s32.totalorder %s18, 0
    %p81 = por %p79, %p80
    %p82 = scmp.ne.s32.totalorder %s70, %s71
    %p83 = scmp.eq.s32.totalorder %s19, 1
    %p84 = por %p82, %p83
    %p86 = scmp.ne.s32.totalorder %s71, %s85
    %p87 = scmp.eq.s32.totalorder %s19, 0
    %p88 = por %p86, %p87
    %s90 = sadd.s32 %s89, 1
    %p93 = scmp.eq.s32.totalorder %s13, 1
    %p94 = scmp.ne.s32.totalorder %s89, %s91
    %p95 = scmp.eq.s32.totalorder %s13, 0
    %p96 = por %p94, %p95
    %p97 = scmp.ne.s32.totalorder %s89, %s91
    %p98 = scmp.eq.s32.totalorder %s18, 1
    %p99 = por %p97, %p98
    %p100 = scmp.ne.s32.totalorder %s91, %s92
    %p101 = scmp.eq.s32.totalorder %s18, 0
    %p102 = por %p100, %p101
    %p103 = scmp.ne.s32.totalorder %s91, %s92
    %p104 = scmp.eq.s32.totalorder %s19, 1
    %p105 = por %p103, %p104
    %p107 = scmp.ne.s32.totalorder %s92, %s106
    %p108 = scmp.eq.s32.totalorder %s19, 0
    %p109 = por %p107, %p108
    %s111 = sadd.s32 %s110, 1
    %p114 = scmp.eq.s32.totalorder %s13, 1
    %p115 = scmp.ne.s32.totalorder %s110, %s112
    %p116 = scmp.eq.s32.totalorder %s13, 0
    %p117 = por %p115, %p116
    %p118 = scmp.ne.s32.totalorder %s110, %s112
    %p119 = scmp.eq.s32.totalorder %s18, 1
    %p120 = por %p118, %p119
    %p121 = scmp.ne.s32.totalorder %s112, %s113
    %p122 = scmp.eq.s32.totalorder %s18, 0
    %p123 = por %p121, %p122
    %p124 = scmp.ne.s32.totalorder %s112, %s113
    %p125 = scmp.eq.s32.totalorder %s19, 1
    %p126 = por %p124, %p125
    %p128 = scmp.ne.s32.totalorder %s113, %s127
    %p129 = scmp.eq.s32.totalorder %s19, 0
    %p130 = por %p128, %p129
    %s132 = sadd.s32 %s131, 1
    %p135 = scmp.eq.s32.totalorder %s13, 1
    %p136 = scmp.ne.s32.totalorder %s131, %s133
    %p137 = scmp.eq.s32.totalorder %s13, 0
    %p138 = por %p136, %p137
    %p139 = scmp.ne.s32.totalorder %s131, %s133
    %p140 = scmp.eq.s32.totalorder %s18, 1
    %p141 = por %p139, %p140
    %p142 = scmp.ne.s32.totalorder %s133, %s134
    %p143 = scmp.eq.s32.totalorder %s18, 0
    %p144 = por %p142, %p143
    %p145 = scmp.ne.s32.totalorder %s133, %s134
    %p146 = scmp.eq.s32.totalorder %s19, 1
    %p147 = por %p145, %p146
    %p149 = scmp.ne.s32.totalorder %s134, %s148
    %p150 = scmp.eq.s32.totalorder %s19, 0
    %p151 = por %p149, %p150
    %s153 = sadd.s32 %s152, 1
    %p156 = scmp.eq.s32.totalorder %s13, 1
    %p157 = scmp.ne.s32.totalorder %s152, %s154
    %p158 = scmp.eq.s32.totalorder %s13, 0
    %p159 = por %p157, %p158
    %p160 = scmp.ne.s32.totalorder %s152, %s154
    %p161 = scmp.eq.s32.totalorder %s18, 1
    %p162 = por %p160, %p161
    %p163 = scmp.ne.s32.totalorder %s154, %s155
    %p164 = scmp.eq.s32.totalorder %s18, 0
    %p165 = por %p163, %p164
    %p166 = scmp.ne.s32.totalorder %s154, %s155
    %p167 = scmp.eq.s32.totalorder %s19, 1
    %p168 = por %p166, %p167
    %p170 = scmp.ne.s32.totalorder %s155, %s169
    %p171 = scmp.eq.s32.totalorder %s19, 0
    %p172 = por %p170, %p171
    %s173 = ssub.s32 %s13, %s20
    %p174 = scmp.eq.s32.totalorder %s173, 0
    %s176 = sadd.s32 %s175, 1
    %s177 = scalar_select %p174, %s175, %s176
    %p180 = pneg %p174
    %p181 = scmp.eq.s32.totalorder %s13, 1
    %p182 = por %p180, %p181
    %p183 = scmp.ne.s32.totalorder %s175, %s178
    %p184 = scmp.eq.s32.totalorder %s13, 0
    %p185 = por %p183, %p184
    %p186 = scmp.ne.s32.totalorder %s175, %s178
    %p187 = scmp.eq.s32.totalorder %s18, 1
    %p188 = por %p186, %p187
    %p189 = scmp.ne.s32.totalorder %s178, %s179
    %p190 = scmp.eq.s32.totalorder %s18, 0
    %p191 = por %p189, %p190
    %p192 = scmp.ne.s32.totalorder %s178, %s179
    %p193 = scmp.eq.s32.totalorder %s19, 1
    %p194 = por %p192, %p193
    %p196 = scmp.ne.s32.totalorder %s179, %s195
    %p197 = scmp.eq.s32.totalorder %s19, 0
    %p198 = por %p196, %p197
    %p199 = scmp.le.s32.totalorder 1, %s13
    %p200 = scmp.lt.s32.totalorder %s13, 3
    %p201 = pnand %p199, %p200
    %p202 = pneg %p201
    // Predicated region
    $region9: #{tpu_custom_call.1} parent=5 // pred_check
      _
    $region10: #{tpu_custom_call.1} parent=5 // pred_check_branch
      %204 = sbr.rel (%p201) target = $region12
    $region11: #{tpu_custom_call.1} parent=5 // pred_region
      %s205 = ssub.s32 %s13, 1
      // Predicated region
      $region13: #{tpu_custom_call.1} parent=11 // pred_check
        %p206 = pneg %p60
      $region14: #{tpu_custom_call.1} parent=11 // pred_check_branch
        %208 = sbr.rel (%p206) target = $region16
      $region15: #{tpu_custom_call.1} parent=11 // pred_region
        _
      $region16: #{tpu_custom_call.1} parent=11 // pred_fallthru
        _
      // Predicated region
      $region17: #{tpu_custom_call.1} parent=11 // pred_check
        %p209 = pneg %p81
      $region18: #{tpu_custom_call.1} parent=11 // pred_check_branch
        %211 = sbr.rel (%p209) target = $region20
      $region19: #{tpu_custom_call.1} parent=11 // pred_region
        _
      $region20: #{tpu_custom_call.1} parent=11 // pred_fallthru
        _
      // Predicated region
      $region21: #{tpu_custom_call.1} parent=11 // pred_check
        %p212 = pneg %p102
      $region22: #{tpu_custom_call.1} parent=11 // pred_check_branch
        %214 = sbr.rel (%p212) target = $region24
      $region23: #{tpu_custom_call.1} parent=11 // pred_region
        _
      $region24: #{tpu_custom_call.1} parent=11 // pred_fallthru
        _
      // Predicated region
      $region25: #{tpu_custom_call.1} parent=11 // pred_check
        %p215 = pneg %p123
      $region26: #{tpu_custom_call.1} parent=11 // pred_check_branch
        %217 = sbr.rel (%p215) target = $region28
      $region27: #{tpu_custom_call.1} parent=11 // pred_region
        _
      $region28: #{tpu_custom_call.1} parent=11 // pred_fallthru
        _
      // Predicated region
      $region29: #{tpu_custom_call.1} parent=11 // pred_check
        %p218 = pneg %p144
      $region30: #{tpu_custom_call.1} parent=11 // pred_check_branch
        %220 = sbr.rel (%p218) target = $region32
      $region31: #{tpu_custom_call.1} parent=11 // pred_region
        _
      $region32: #{tpu_custom_call.1} parent=11 // pred_fallthru
        _
      // Predicated region
      $region33: #{tpu_custom_call.1} parent=11 // pred_check
        %p221 = pneg %p165
      $region34: #{tpu_custom_call.1} parent=11 // pred_check_branch
        %223 = sbr.rel (%p221) target = $region36
      $region35: #{tpu_custom_call.1} parent=11 // pred_region
        _
      $region36: #{tpu_custom_call.1} parent=11 // pred_fallthru
        _
    $region12: #{tpu_custom_call.1} parent=5 // pred_fallthru
      _
    %p224 = scmp.lt.s32.totalorder %s13, 2
    // Predicated region
    $region37: #{tpu_custom_call.1} parent=5 // pred_check
      %p225 = pneg %p224
    $region38: #{tpu_custom_call.1} parent=5 // pred_check_branch
      %227 = sbr.rel (%p225) target = $region40
    $region39: #{tpu_custom_call.1} parent=5 // pred_region
      // Predicated region
      $region41: #{tpu_custom_call.1} parent=39 // pred_check
        %p228 = pneg %p33
      $region42: #{tpu_custom_call.1} parent=39 // pred_check_branch
        %230 = sbr.rel (%p228) target = $region44
      $region43: #{tpu_custom_call.1} parent=39 // pred_region
        %p231 = scmp.lt.s32.totalorder %s13, 1
        %s232 = scalar_select %p231, %s13, 1
        %s233 = smul.addr %s232, 38
        %s234 = smul.addr %s233, 8
        %s235 = scalar_lea.vmem %s0, %s234
      $region44: #{tpu_custom_call.1} parent=39 // pred_fallthru
        _
    $region40: #{tpu_custom_call.1} parent=5 // pred_fallthru
      _
    %p236 = scmp.le.s32.totalorder 1, %s13
    %p237 = scmp.lt.s32.totalorder %s13, 3
    %p238 = pnand %p236, %p237
    %p239 = pneg %p238
    // Predicated region
    $region45: #{tpu_custom_call.1} parent=5 // pred_check
      _
    $region46: #{tpu_custom_call.1} parent=5 // pred_check_branch
      %241 = sbr.rel (%p238) target = $region48
    $region47: #{tpu_custom_call.1} parent=5 // pred_region
      %s242 = ssub.s32 %s13, 1
      %p243 = scmp.lt.s32.totalorder %s18, 1
      %s244 = scalar_select %p243, %s18, 1
      %s245 = smul.addr %s244, 38
      %s246 = smul.addr %s245, 8
      %s247 = scalar_lea.vmem %s0, %s246
      %p248 = pneg %p39
      %p249 = pneg %p36
      %p250 = pneg %p60
      %p251 = pneg %p57
      %p252 = pneg %p81
      %p253 = pneg %p78
      %p254 = pneg %p102
      %p255 = pneg %p99
      %p256 = pneg %p123
      %p257 = pneg %p120
      %p258 = pneg %p144
      %p259 = pneg %p141
      %p260 = pneg %p165
      %p261 = pneg %p162
      %p262 = pneg %p191
      %p263 = pneg %p188
      %p264 = scmp.lt.s32.totalorder %s18, 1
      %s265 = scalar_select %p264, %s18, 1
      %s266 = smul.addr %s265, 32
      %s267 = smul.addr %s266, 8
      %s268 = scalar_lea.vmem %s7, %s267
      %p269 = scmp.lt.s32.totalorder %s18, 1
      %s270 = scalar_select %p269, %s18, 1
      %s271 = smul.addr %s270, 38
      %s272 = smul.addr %s271, 8
      %s273 = scalar_lea.vmem %s0, %s272
      %p274 = scmp.lt.s32.totalorder %s18, 1
      %s275 = scalar_select %p274, %s18, 1
      %s276 = smul.addr %s275, 32
      %s277 = smul.addr %s276, 8
      %s278 = scalar_lea.vmem %s7, %s277
      %v279 = vlaneseq
      %v280 = vshrl.u32 %v279, 7
      %v281 = vadd.s32 %v280, 8
      %v282 = vadd.s32 %v280, 16
      %v283 = vadd.s32 %v280, 24
      %v284 = vadd.s32 %v280, 32
      %v285 = vadd.s32 %v280, 40
      %v286 = vadd.s32 %v280, 48
      %v287 = vadd.s32 %v280, 56
      %v288 = vadd.s32 %v280, 64
      %v289 = vadd.s32 %v280, 72
      %v290 = vadd.s32 %v280, 80
      %v291 = vadd.s32 %v280, 88
      %v292 = vadd.s32 %v280, 96
      %v293 = vadd.s32 %v280, 104
      %v294 = vadd.s32 %v280, 112
      %v295 = vadd.s32 %v280, 120
      %v296 = vadd.s32 %v280, 128
      %v297 = vadd.s32 %v280, 136
      %v298 = vadd.s32 %v280, 144
      %v299 = vadd.s32 %v280, 152
      %v300 = vadd.s32 %v280, 160
      %v301 = vadd.s32 %v280, 168
      %v302 = vadd.s32 %v280, 176
      %v303 = vadd.s32 %v280, 184
      %v304 = vadd.s32 %v280, 192
      %v305 = vadd.s32 %v280, 200
      %v306 = vadd.s32 %v280, 208
      %v307 = vadd.s32 %v280, 216
      %v308 = vadd.s32 %v280, 224
      %v309 = vadd.s32 %v280, 232
      %v310 = vadd.s32 %v280, 240
      %v311 = vadd.s32 %v280, 248
      %vm312 = vcmp.lt.s32.totalorder %v280, 0
      %v313 = vsub.s32 0, %v280
      %v314 = vsel %vm312, %v313, %v280
      %v315 = vshrl.u32 %v314, 4
      %v316 = vand.u32 %v314, 15
      %v317 = vsub.s32 0, %v316
      %v318 = vsel %vm312, %v317, %v316
      %vm319 = vcmp.lt.s32.totalorder %v281, 0
      %v320 = vsub.s32 0, %v281
      %v321 = vsel %vm319, %v320, %v281
      %v322 = vshrl.u32 %v321, 4
      %v323 = vand.u32 %v321, 15
      %v324 = vsub.s32 0, %v323
      %v325 = vsel %vm319, %v324, %v323
      %vm326 = vcmp.lt.s32.totalorder %v282, 0
      %v327 = vsub.s32 0, %v282
      %v328 = vsel %vm326, %v327, %v282
      %v329 = vshrl.u32 %v328, 4
      %v330 = vand.u32 %v328, 15
      %v331 = vsub.s32 0, %v330
      %v332 = vsel %vm326, %v331, %v330
      %vm333 = vcmp.lt.s32.totalorder %v283, 0
      %v334 = vsub.s32 0, %v283
      %v335 = vsel %vm333, %v334, %v283
      %v336 = vshrl.u32 %v335, 4
      %v337 = vand.u32 %v335, 15
      %v338 = vsub.s32 0, %v337
      %v339 = vsel %vm333, %v338, %v337
      %vm340 = vcmp.lt.s32.totalorder %v284, 0
      %v341 = vsub.s32 0, %v284
      %v342 = vsel %vm340, %v341, %v284
      %v343 = vshrl.u32 %v342, 4
      %v344 = vand.u32 %v342, 15
      %v345 = vsub.s32 0, %v344
      %v346 = vsel %vm340, %v345, %v344
      %vm347 = vcmp.lt.s32.totalorder %v285, 0
      %v348 = vsub.s32 0, %v285
      %v349 = vsel %vm347, %v348, %v285
      %v350 = vshrl.u32 %v349, 4
      %v351 = vand.u32 %v349, 15
      %v352 = vsub.s32 0, %v351
      %v353 = vsel %vm347, %v352, %v351
      %vm354 = vcmp.lt.s32.totalorder %v286, 0
      %v355 = vsub.s32 0, %v286
      %v356 = vsel %vm354, %v355, %v286
      %v357 = vshrl.u32 %v356, 4
      %v358 = vand.u32 %v356, 15
      %v359 = vsub.s32 0, %v358
      %v360 = vsel %vm354, %v359, %v358
      %vm361 = vcmp.lt.s32.totalorder %v287, 0
      %v362 = vsub.s32 0, %v287
      %v363 = vsel %vm361, %v362, %v287
      %v364 = vshrl.u32 %v363, 4
      %v365 = vand.u32 %v363, 15
      %v366 = vsub.s32 0, %v365
      %v367 = vsel %vm361, %v366, %v365
      %vm368 = vcmp.lt.s32.totalorder %v288, 0
      %v369 = vsub.s32 0, %v288
      %v370 = vsel %vm368, %v369, %v288
      %v371 = vshrl.u32 %v370, 4
      %v372 = vand.u32 %v370, 15
      %v373 = vsub.s32 0, %v372
      %v374 = vsel %vm368, %v373, %v372
      %vm375 = vcmp.lt.s32.totalorder %v289, 0
      %v376 = vsub.s32 0, %v289
      %v377 = vsel %vm375, %v376, %v289
      %v378 = vshrl.u32 %v377, 4
      %v379 = vand.u32 %v377, 15
      %v380 = vsub.s32 0, %v379
      %v381 = vsel %vm375, %v380, %v379
      %vm382 = vcmp.lt.s32.totalorder %v290, 0
      %v383 = vsub.s32 0, %v290
      %v384 = vsel %vm382, %v383, %v290
      %v385 = vshrl.u32 %v384, 4
      %v386 = vand.u32 %v384, 15
      %v387 = vsub.s32 0, %v386
      %v388 = vsel %vm382, %v387, %v386
      %vm389 = vcmp.lt.s32.totalorder %v291, 0
      %v390 = vsub.s32 0, %v291
      %v391 = vsel %vm389, %v390, %v291
      %v392 = vshrl.u32 %v391, 4
      %v393 = vand.u32 %v391, 15
      %v394 = vsub.s32 0, %v393
      %v395 = vsel %vm389, %v394, %v393
      %vm396 = vcmp.lt.s32.totalorder %v292, 0
      %v397 = vsub.s32 0, %v292
      %v398 = vsel %vm396, %v397, %v292
      %v399 = vshrl.u32 %v398, 4
      %v400 = vand.u32 %v398, 15
      %v401 = vsub.s32 0, %v400
      %v402 = vsel %vm396, %v401, %v400
      %vm403 = vcmp.lt.s32.totalorder %v293, 0
      %v404 = vsub.s32 0, %v293
      %v405 = vsel %vm403, %v404, %v293
      %v406 = vshrl.u32 %v405, 4
      %v407 = vand.u32 %v405, 15
      %v408 = vsub.s32 0, %v407
      %v409 = vsel %vm403, %v408, %v407
      %vm410 = vcmp.lt.s32.totalorder %v294, 0
      %v411 = vsub.s32 0, %v294
      %v412 = vsel %vm410, %v411, %v294
      %v413 = vshrl.u32 %v412, 4
      %v414 = vand.u32 %v412, 15
      %v415 = vsub.s32 0, %v414
      %v416 = vsel %vm410, %v415, %v414
      %vm417 = vcmp.lt.s32.totalorder %v295, 0
      %v418 = vsub.s32 0, %v295
      %v419 = vsel %vm417, %v418, %v295
      %v420 = vshrl.u32 %v419, 4
      %v421 = vand.u32 %v419, 15
      %v422 = vsub.s32 0, %v421
      %v423 = vsel %vm417, %v422, %v421
      %vm424 = vcmp.lt.s32.totalorder %v296, 0
      %v425 = vsub.s32 0, %v296
      %v426 = vsel %vm424, %v425, %v296
      %v427 = vshrl.u32 %v426, 4
      %v428 = vand.u32 %v426, 15
      %v429 = vsub.s32 0, %v428
      %v430 = vsel %vm424, %v429, %v428
      %vm431 = vcmp.lt.s32.totalorder %v297, 0
      %v432 = vsub.s32 0, %v297
      %v433 = vsel %vm431, %v432, %v297
      %v434 = vshrl.u32 %v433, 4
      %v435 = vand.u32 %v433, 15
      %v436 = vsub.s32 0, %v435
      %v437 = vsel %vm431, %v436, %v435
      %vm438 = vcmp.lt.s32.totalorder %v298, 0
      %v439 = vsub.s32 0, %v298
      %v440 = vsel %vm438, %v439, %v298
      %v441 = vshrl.u32 %v440, 4
      %v442 = vand.u32 %v440, 15
      %v443 = vsub.s32 0, %v442
      %v444 = vsel %vm438, %v443, %v442
      %vm445 = vcmp.lt.s32.totalorder %v299, 0
      %v446 = vsub.s32 0, %v299
      %v447 = vsel %vm445, %v446, %v299
      %v448 = vshrl.u32 %v447, 4
      %v449 = vand.u32 %v447, 15
      %v450 = vsub.s32 0, %v449
      %v451 = vsel %vm445, %v450, %v449
      %vm452 = vcmp.lt.s32.totalorder %v300, 0
      %v453 = vsub.s32 0, %v300
      %v454 = vsel %vm452, %v453, %v300
      %v455 = vshrl.u32 %v454, 4
      %v456 = vand.u32 %v454, 15
      %v457 = vsub.s32 0, %v456
      %v458 = vsel %vm452, %v457, %v456
      %vm459 = vcmp.lt.s32.totalorder %v301, 0
      %v460 = vsub.s32 0, %v301
      %v461 = vsel %vm459, %v460, %v301
      %v462 = vshrl.u32 %v461, 4
      %v463 = vand.u32 %v461, 15
      %v464 = vsub.s32 0, %v463
      %v465 = vsel %vm459, %v464, %v463
      %vm466 = vcmp.lt.s32.totalorder %v302, 0
      %v467 = vsub.s32 0, %v302
      %v468 = vsel %vm466, %v467, %v302
      %v469 = vshrl.u32 %v468, 4
      %v470 = vand.u32 %v468, 15
      %v471 = vsub.s32 0, %v470
      %v472 = vsel %vm466, %v471, %v470
      %vm473 = vcmp.lt.s32.totalorder %v303, 0
      %v474 = vsub.s32 0, %v303
      %v475 = vsel %vm473, %v474, %v303
      %v476 = vshrl.u32 %v475, 4
      %v477 = vand.u32 %v475, 15
      %v478 = vsub.s32 0, %v477
      %v479 = vsel %vm473, %v478, %v477
      %vm480 = vcmp.lt.s32.totalorder %v304, 0
      %v481 = vsub.s32 0, %v304
      %v482 = vsel %vm480, %v481, %v304
      %v483 = vshrl.u32 %v482, 4
      %v484 = vand.u32 %v482, 15
      %v485 = vsub.s32 0, %v484
      %v486 = vsel %vm480, %v485, %v484
      %vm487 = vcmp.lt.s32.totalorder %v305, 0
      %v488 = vsub.s32 0, %v305
      %v489 = vsel %vm487, %v488, %v305
      %v490 = vshrl.u32 %v489, 4
      %v491 = vand.u32 %v489, 15
      %v492 = vsub.s32 0, %v491
      %v493 = vsel %vm487, %v492, %v491
      %vm494 = vcmp.lt.s32.totalorder %v306, 0
      %v495 = vsub.s32 0, %v306
      %v496 = vsel %vm494, %v495, %v306
      %v497 = vshrl.u32 %v496, 4
      %v498 = vand.u32 %v496, 15
      %v499 = vsub.s32 0, %v498
      %v500 = vsel %vm494, %v499, %v498
      %vm501 = vcmp.lt.s32.totalorder %v307, 0
      %v502 = vsub.s32 0, %v307
      %v503 = vsel %vm501, %v502, %v307
      %v504 = vshrl.u32 %v503, 4
      %v505 = vand.u32 %v503, 15
      %v506 = vsub.s32 0, %v505
      %v507 = vsel %vm501, %v506, %v505
      %vm508 = vcmp.lt.s32.totalorder %v308, 0
      %v509 = vsub.s32 0, %v308
      %v510 = vsel %vm508, %v509, %v308
      %v511 = vshrl.u32 %v510, 4
      %v512 = vand.u32 %v510, 15
      %v513 = vsub.s32 0, %v512
      %v514 = vsel %vm508, %v513, %v512
      %vm515 = vcmp.lt.s32.totalorder %v309, 0
      %v516 = vsub.s32 0, %v309
      %v517 = vsel %vm515, %v516, %v309
      %v518 = vshrl.u32 %v517, 4
      %v519 = vand.u32 %v517, 15
      %v520 = vsub.s32 0, %v519
      %v521 = vsel %vm515, %v520, %v519
      %vm522 = vcmp.lt.s32.totalorder %v310, 0
      %v523 = vsub.s32 0, %v310
      %v524 = vsel %vm522, %v523, %v310
      %v525 = vshrl.u32 %v524, 4
      %v526 = vand.u32 %v524, 15
      %v527 = vsub.s32 0, %v526
      %v528 = vsel %vm522, %v527, %v526
      %vm529 = vcmp.lt.s32.totalorder %v311, 0
      %v530 = vsub.s32 0, %v311
      %v531 = vsel %vm529, %v530, %v311
      %v532 = vshrl.u32 %v531, 4
      %v533 = vand.u32 %v531, 15
      %v534 = vsub.s32 0, %v533
      %v535 = vsel %vm529, %v534, %v533
      %vm536 = vcmp.ne.s32.totalorder %v318, 0
      %vm537 = vcmp.ne.s32.totalorder %v325, 0
      %vm538 = vcmp.ne.s32.totalorder %v332, 0
      %vm539 = vcmp.ne.s32.totalorder %v339, 0
      %vm540 = vcmp.ne.s32.totalorder %v346, 0
      %vm541 = vcmp.ne.s32.totalorder %v353, 0
      %vm542 = vcmp.ne.s32.totalorder %v360, 0
      %vm543 = vcmp.ne.s32.totalorder %v367, 0
      %vm544 = vcmp.ne.s32.totalorder %v374, 0
      %vm545 = vcmp.ne.s32.totalorder %v381, 0
      %vm546 = vcmp.ne.s32.totalorder %v388, 0
      %vm547 = vcmp.ne.s32.totalorder %v395, 0
      %vm548 = vcmp.ne.s32.totalorder %v402, 0
      %vm549 = vcmp.ne.s32.totalorder %v409, 0
      %vm550 = vcmp.ne.s32.totalorder %v416, 0
      %vm551 = vcmp.ne.s32.totalorder %v423, 0
      %vm552 = vcmp.ne.s32.totalorder %v430, 0
      %vm553 = vcmp.ne.s32.totalorder %v437, 0
      %vm554 = vcmp.ne.s32.totalorder %v444, 0
      %vm555 = vcmp.ne.s32.totalorder %v451, 0
      %vm556 = vcmp.ne.s32.totalorder %v458, 0
      %vm557 = vcmp.ne.s32.totalorder %v465, 0
      %vm558 = vcmp.ne.s32.totalorder %v472, 0
      %vm559 = vcmp.ne.s32.totalorder %v479, 0
      %vm560 = vcmp.ne.s32.totalorder %v486, 0
      %vm561 = vcmp.ne.s32.totalorder %v493, 0
      %vm562 = vcmp.ne.s32.totalorder %v500, 0
      %vm563 = vcmp.ne.s32.totalorder %v507, 0
      %vm564 = vcmp.ne.s32.totalorder %v514, 0
      %vm565 = vcmp.ne.s32.totalorder %v521, 0
      %vm566 = vcmp.ne.s32.totalorder %v528, 0
      %vm567 = vcmp.ne.s32.totalorder %v535, 0
      %vm568 = vcmp.lt.s32.totalorder %v318, 0
      %vm569 = vcmp.lt.s32.totalorder %v325, 0
      %vm570 = vcmp.lt.s32.totalorder %v332, 0
      %vm571 = vcmp.lt.s32.totalorder %v339, 0
      %vm572 = vcmp.lt.s32.totalorder %v346, 0
      %vm573 = vcmp.lt.s32.totalorder %v353, 0
      %vm574 = vcmp.lt.s32.totalorder %v360, 0
      %vm575 = vcmp.lt.s32.totalorder %v367, 0
      %vm576 = vcmp.lt.s32.totalorder %v374, 0
      %vm577 = vcmp.lt.s32.totalorder %v381, 0
      %vm578 = vcmp.lt.s32.totalorder %v388, 0
      %vm579 = vcmp.lt.s32.totalorder %v395, 0
      %vm580 = vcmp.lt.s32.totalorder %v402, 0
      %vm581 = vcmp.lt.s32.totalorder %v409, 0
      %vm582 = vcmp.lt.s32.totalorder %v416, 0
      %vm583 = vcmp.lt.s32.totalorder %v423, 0
      %vm584 = vcmp.lt.s32.totalorder %v430, 0
      %vm585 = vcmp.lt.s32.totalorder %v437, 0
      %vm586 = vcmp.lt.s32.totalorder %v444, 0
      %vm587 = vcmp.lt.s32.totalorder %v451, 0
      %vm588 = vcmp.lt.s32.totalorder %v458, 0
      %vm589 = vcmp.lt.s32.totalorder %v465, 0
      %vm590 = vcmp.lt.s32.totalorder %v472, 0
      %vm591 = vcmp.lt.s32.totalorder %v479, 0
      %vm592 = vcmp.lt.s32.totalorder %v486, 0
      %vm593 = vcmp.lt.s32.totalorder %v493, 0
      %vm594 = vcmp.lt.s32.totalorder %v500, 0
      %vm595 = vcmp.lt.s32.totalorder %v507, 0
      %vm596 = vcmp.lt.s32.totalorder %v514, 0
      %vm597 = vcmp.lt.s32.totalorder %v521, 0
      %vm598 = vcmp.lt.s32.totalorder %v528, 0
      %vm599 = vcmp.lt.s32.totalorder %v535, 0
      %vm600 = vmand %vm568, %vm536
      %vm601 = vmand %vm569, %vm537
      %vm602 = vmand %vm570, %vm538
      %vm603 = vmand %vm571, %vm539
      %vm604 = vmand %vm572, %vm540
      %vm605 = vmand %vm573, %vm541
      %vm606 = vmand %vm574, %vm542
      %vm607 = vmand %vm575, %vm543
      %vm608 = vmand %vm576, %vm544
      %vm609 = vmand %vm577, %vm545
      %vm610 = vmand %vm578, %vm546
      %vm611 = vmand %vm579, %vm547
      %vm612 = vmand %vm580, %vm548
      %vm613 = vmand %vm581, %vm549
      %vm614 = vmand %vm582, %vm550
      %vm615 = vmand %vm583, %vm551
      %vm616 = vmand %vm584, %vm552
      %vm617 = vmand %vm585, %vm553
      %vm618 = vmand %vm586, %vm554
      %vm619 = vmand %vm587, %vm555
      %vm620 = vmand %vm588, %vm556
      %vm621 = vmand %vm589, %vm557
      %vm622 = vmand %vm590, %vm558
      %vm623 = vmand %vm591, %vm559
      %vm624 = vmand %vm592, %vm560
      %vm625 = vmand %vm593, %vm561
      %vm626 = vmand %vm594, %vm562
      %vm627 = vmand %vm595, %vm563
      %vm628 = vmand %vm596, %vm564
      %vm629 = vmand %vm597, %vm565
      %vm630 = vmand %vm598, %vm566
      %vm631 = vmand %vm599, %vm567
      %v632 = vadd.s32 %v318, 16
      %v633 = vadd.s32 %v325, 16
      %v634 = vadd.s32 %v332, 16
      %v635 = vadd.s32 %v339, 16
      %v636 = vadd.s32 %v346, 16
      %v637 = vadd.s32 %v353, 16
      %v638 = vadd.s32 %v360, 16
      %v639 = vadd.s32 %v367, 16
      %v640 = vadd.s32 %v374, 16
      %v641 = vadd.s32 %v381, 16
      %v642 = vadd.s32 %v388, 16
      %v643 = vadd.s32 %v395, 16
      %v644 = vadd.s32 %v402, 16
      %v645 = vadd.s32 %v409, 16
      %v646 = vadd.s32 %v416, 16
      %v647 = vadd.s32 %v423, 16
      %v648 = vadd.s32 %v430, 16
      %v649 = vadd.s32 %v437, 16
      %v650 = vadd.s32 %v444, 16
      %v651 = vadd.s32 %v451, 16
      %v652 = vadd.s32 %v458, 16
      %v653 = vadd.s32 %v465, 16
      %v654 = vadd.s32 %v472, 16
      %v655 = vadd.s32 %v479, 16
      %v656 = vadd.s32 %v486, 16
      %v657 = vadd.s32 %v493, 16
      %v658 = vadd.s32 %v500, 16
      %v659 = vadd.s32 %v507, 16
      %v660 = vadd.s32 %v514, 16
      %v661 = vadd.s32 %v521, 16
      %v662 = vadd.s32 %v528, 16
      %v663 = vadd.s32 %v535, 16
      %v664 = vsel %vm600, %v632, %v318
      %v665 = vsel %vm601, %v633, %v325
      %v666 = vsel %vm602, %v634, %v332
      %v667 = vsel %vm603, %v635, %v339
      %v668 = vsel %vm604, %v636, %v346
      %v669 = vsel %vm605, %v637, %v353
      %v670 = vsel %vm606, %v638, %v360
      %v671 = vsel %vm607, %v639, %v367
      %v672 = vsel %vm608, %v640, %v374
      %v673 = vsel %vm609, %v641, %v381
      %v674 = vsel %vm610, %v642, %v388
      %v675 = vsel %vm611, %v643, %v395
      %v676 = vsel %vm612, %v644, %v402
      %v677 = vsel %vm613, %v645, %v409
      %v678 = vsel %vm614, %v646, %v416
      %v679 = vsel %vm615, %v647, %v423
      %v680 = vsel %vm616, %v648, %v430
      %v681 = vsel %vm617, %v649, %v437
      %v682 = vsel %vm618, %v650, %v444
      %v683 = vsel %vm619, %v651, %v451
      %v684 = vsel %vm620, %v652, %v458
      %v685 = vsel %vm621, %v653, %v465
      %v686 = vsel %vm622, %v654, %v472
      %v687 = vsel %vm623, %v655, %v479
      %v688 = vsel %vm624, %v656, %v486
      %v689 = vsel %vm625, %v657, %v493
      %v690 = vsel %vm626, %v658, %v500
      %v691 = vsel %vm627, %v659, %v507
      %v692 = vsel %vm628, %v660, %v514
      %v693 = vsel %vm629, %v661, %v521
      %v694 = vsel %vm630, %v662, %v528
      %v695 = vsel %vm631, %v663, %v535
      %vm696 = vcmp.gt.s32.totalorder %v664, 0
      %vm697 = vcmp.gt.s32.totalorder %v665, 0
      %vm698 = vcmp.gt.s32.totalorder %v666, 0
      %vm699 = vcmp.gt.s32.totalorder %v667, 0
      %vm700 = vcmp.gt.s32.totalorder %v668, 0
      %vm701 = vcmp.gt.s32.totalorder %v669, 0
      %vm702 = vcmp.gt.s32.totalorder %v670, 0
      %vm703 = vcmp.gt.s32.totalorder %v671, 0
      %vm704 = vcmp.gt.s32.totalorder %v672, 0
      %vm705 = vcmp.gt.s32.totalorder %v673, 0
      %vm706 = vcmp.gt.s32.totalorder %v674, 0
      %vm707 = vcmp.gt.s32.totalorder %v675, 0
      %vm708 = vcmp.gt.s32.totalorder %v676, 0
      %vm709 = vcmp.gt.s32.totalorder %v677, 0
      %vm710 = vcmp.gt.s32.totalorder %v678, 0
      %vm711 = vcmp.gt.s32.totalorder %v679, 0
      %vm712 = vcmp.gt.s32.totalorder %v680, 0
      %vm713 = vcmp.gt.s32.totalorder %v681, 0
      %vm714 = vcmp.gt.s32.totalorder %v682, 0
      %vm715 = vcmp.gt.s32.totalorder %v683, 0
      %vm716 = vcmp.gt.s32.totalorder %v684, 0
      %vm717 = vcmp.gt.s32.totalorder %v685, 0
      %vm718 = vcmp.gt.s32.totalorder %v686, 0
      %vm719 = vcmp.gt.s32.totalorder %v687, 0
      %vm720 = vcmp.gt.s32.totalorder %v688, 0
      %vm721 = vcmp.gt.s32.totalorder %v689, 0
      %vm722 = vcmp.gt.s32.totalorder %v690, 0
      %vm723 = vcmp.gt.s32.totalorder %v691, 0
      %vm724 = vcmp.gt.s32.totalorder %v692, 0
      %vm725 = vcmp.gt.s32.totalorder %v693, 0
      %vm726 = vcmp.gt.s32.totalorder %v694, 0
      %vm727 = vcmp.gt.s32.totalorder %v695, 0
      %v728 = vsel %vm696, 1, 0
      %v729 = vsel %vm697, 1, 0
      %v730 = vsel %vm698, 1, 0
      %v731 = vsel %vm699, 1, 0
      %v732 = vsel %vm700, 1, 0
      %v733 = vsel %vm701, 1, 0
      %v734 = vsel %vm702, 1, 0
      %v735 = vsel %vm703, 1, 0
      %v736 = vsel %vm704, 1, 0
      %v737 = vsel %vm705, 1, 0
      %v738 = vsel %vm706, 1, 0
      %v739 = vsel %vm707, 1, 0
      %v740 = vsel %vm708, 1, 0
      %v741 = vsel %vm709, 1, 0
      %v742 = vsel %vm710, 1, 0
      %v743 = vsel %vm711, 1, 0
      %v744 = vsel %vm712, 1, 0
      %v745 = vsel %vm713, 1, 0
      %v746 = vsel %vm714, 1, 0
      %v747 = vsel %vm715, 1, 0
      %v748 = vsel %vm716, 1, 0
      %v749 = vsel %vm717, 1, 0
      %v750 = vsel %vm718, 1, 0
      %v751 = vsel %vm719, 1, 0
      %v752 = vsel %vm720, 1, 0
      %v753 = vsel %vm721, 1, 0
      %v754 = vsel %vm722, 1, 0
      %v755 = vsel %vm723, 1, 0
      %v756 = vsel %vm724, 1, 0
      %v757 = vsel %vm725, 1, 0
      %v758 = vsel %vm726, 1, 0
      %v759 = vsel %vm727, 1, 0
      %v760 = vcvt.s32.f32 %v728
      %v761 = vcvt.s32.f32 %v729
      %v762 = vcvt.s32.f32 %v730
      %v763 = vcvt.s32.f32 %v731
      %v764 = vcvt.s32.f32 %v732
      %v765 = vcvt.s32.f32 %v733
      %v766 = vcvt.s32.f32 %v734
      %v767 = vcvt.s32.f32 %v735
      %v768 = vcvt.s32.f32 %v736
      %v769 = vcvt.s32.f32 %v737
      %v770 = vcvt.s32.f32 %v738
      %v771 = vcvt.s32.f32 %v739
      %v772 = vcvt.s32.f32 %v740
      %v773 = vcvt.s32.f32 %v741
      %v774 = vcvt.s32.f32 %v742
      %v775 = vcvt.s32.f32 %v743
      %v776 = vcvt.s32.f32 %v744
      %v777 = vcvt.s32.f32 %v745
      %v778 = vcvt.s32.f32 %v746
      %v779 = vcvt.s32.f32 %v747
      %v780 = vcvt.s32.f32 %v748
      %v781 = vcvt.s32.f32 %v749
      %v782 = vcvt.s32.f32 %v750
      %v783 = vcvt.s32.f32 %v751
      %v784 = vcvt.s32.f32 %v752
      %v785 = vcvt.s32.f32 %v753
      %v786 = vcvt.s32.f32 %v754
      %v787 = vcvt.s32.f32 %v755
      %v788 = vcvt.s32.f32 %v756
      %v789 = vcvt.s32.f32 %v757
      %v790 = vcvt.s32.f32 %v758
      %v791 = vcvt.s32.f32 %v759
      %vm792 = vcmp.lt.s32.totalorder %v664, 15
      %vm793 = vcmp.lt.s32.totalorder %v665, 15
      %vm794 = vcmp.lt.s32.totalorder %v666, 15
      %vm795 = vcmp.lt.s32.totalorder %v667, 15
      %vm796 = vcmp.lt.s32.totalorder %v668, 15
      %vm797 = vcmp.lt.s32.totalorder %v669, 15
      %vm798 = vcmp.lt.s32.totalorder %v670, 15
      %vm799 = vcmp.lt.s32.totalorder %v671, 15
      %vm800 = vcmp.lt.s32.totalorder %v672, 15
      %vm801 = vcmp.lt.s32.totalorder %v673, 15
      %vm802 = vcmp.lt.s32.totalorder %v674, 15
      %vm803 = vcmp.lt.s32.totalorder %v675, 15
      %vm804 = vcmp.lt.s32.totalorder %v676, 15
      %vm805 = vcmp.lt.s32.totalorder %v677, 15
      %vm806 = vcmp.lt.s32.totalorder %v678, 15
      %vm807 = vcmp.lt.s32.totalorder %v679, 15
      %vm808 = vcmp.lt.s32.totalorder %v680, 15
      %vm809 = vcmp.lt.s32.totalorder %v681, 15
      %vm810 = vcmp.lt.s32.totalorder %v682, 15
      %vm811 = vcmp.lt.s32.totalorder %v683, 15
      %vm812 = vcmp.lt.s32.totalorder %v684, 15
      %vm813 = vcmp.lt.s32.totalorder %v685, 15
      %vm814 = vcmp.lt.s32.totalorder %v686, 15
      %vm815 = vcmp.lt.s32.totalorder %v687, 15
      %vm816 = vcmp.lt.s32.totalorder %v688, 15
      %vm817 = vcmp.lt.s32.totalorder %v689, 15
      %vm818 = vcmp.lt.s32.totalorder %v690, 15
      %vm819 = vcmp.lt.s32.totalorder %v691, 15
      %vm820 = vcmp.lt.s32.totalorder %v692, 15
      %vm821 = vcmp.lt.s32.totalorder %v693, 15
      %vm822 = vcmp.lt.s32.totalorder %v694, 15
      %vm823 = vcmp.lt.s32.totalorder %v695, 15
      %v824 = vsel %vm792, 1, 0
      %v825 = vsel %vm793, 1, 0
      %v826 = vsel %vm794, 1, 0
      %v827 = vsel %vm795, 1, 0
      %v828 = vsel %vm796, 1, 0
      %v829 = vsel %vm797, 1, 0
      %v830 = vsel %vm798, 1, 0
      %v831 = vsel %vm799, 1, 0
      %v832 = vsel %vm800, 1, 0
      %v833 = vsel %vm801, 1, 0
      %v834 = vsel %vm802, 1, 0
      %v835 = vsel %vm803, 1, 0
      %v836 = vsel %vm804, 1, 0
      %v837 = vsel %vm805, 1, 0
      %v838 = vsel %vm806, 1, 0
      %v839 = vsel %vm807, 1, 0
      %v840 = vsel %vm808, 1, 0
      %v841 = vsel %vm809, 1, 0
      %v842 = vsel %vm810, 1, 0
      %v843 = vsel %vm811, 1, 0
      %v844 = vsel %vm812, 1, 0
      %v845 = vsel %vm813, 1, 0
      %v846 = vsel %vm814, 1, 0
      %v847 = vsel %vm815, 1, 0
      %v848 = vsel %vm816, 1, 0
      %v849 = vsel %vm817, 1, 0
      %v850 = vsel %vm818, 1, 0
      %v851 = vsel %vm819, 1, 0
      %v852 = vsel %vm820, 1, 0
      %v853 = vsel %vm821, 1, 0
      %v854 = vsel %vm822, 1, 0
      %v855 = vsel %vm823, 1, 0
      %v856 = vcvt.s32.f32 %v824
      %v857 = vcvt.s32.f32 %v825
      %v858 = vcvt.s32.f32 %v826
      %v859 = vcvt.s32.f32 %v827
      %v860 = vcvt.s32.f32 %v828
      %v861 = vcvt.s32.f32 %v829
      %v862 = vcvt.s32.f32 %v830
      %v863 = vcvt.s32.f32 %v831
      %v864 = vcvt.s32.f32 %v832
      %v865 = vcvt.s32.f32 %v833
      %v866 = vcvt.s32.f32 %v834
      %v867 = vcvt.s32.f32 %v835
      %v868 = vcvt.s32.f32 %v836
      %v869 = vcvt.s32.f32 %v837
      %v870 = vcvt.s32.f32 %v838
      %v871 = vcvt.s32.f32 %v839
      %v872 = vcvt.s32.f32 %v840
      %v873 = vcvt.s32.f32 %v841
      %v874 = vcvt.s32.f32 %v842
      %v875 = vcvt.s32.f32 %v843
      %v876 = vcvt.s32.f32 %v844
      %v877 = vcvt.s32.f32 %v845
      %v878 = vcvt.s32.f32 %v846
      %v879 = vcvt.s32.f32 %v847
      %v880 = vcvt.s32.f32 %v848
      %v881 = vcvt.s32.f32 %v849
      %v882 = vcvt.s32.f32 %v850
      %v883 = vcvt.s32.f32 %v851
      %v884 = vcvt.s32.f32 %v852
      %v885 = vcvt.s32.f32 %v853
      %v886 = vcvt.s32.f32 %v854
      %v887 = vcvt.s32.f32 %v855
      %v888 = vld [vmem:[%s273 + $0x7] sm:$0xff]
      %v889 = vld [vmem:[%s273 + $0xf] sm:$0xff]
      %v890 = vld [vmem:[%s273 + $0x17] sm:$0xff]
      %v891 = vld [vmem:[%s273 + $0x1f] sm:$0xff]
      %v892 = vld [vmem:[%s273 + $0x27] sm:$0xff]
      %v893 = vld [vmem:[%s273 + $0x2f] sm:$0xff]
      %v894 = vld [vmem:[%s273 + $0x37] sm:$0xff]
      %v895 = vld [vmem:[%s273 + $0x3f] sm:$0xff]
      %v896 = vld [vmem:[%s273 + $0x47] sm:$0xff]
      %v897 = vld [vmem:[%s273 + $0x4f] sm:$0xff]
      %v898 = vld [vmem:[%s273 + $0x57] sm:$0xff]
      %v899 = vld [vmem:[%s273 + $0x5f] sm:$0xff]
      %v900 = vld [vmem:[%s273 + $0x67] sm:$0xff]
      %v901 = vld [vmem:[%s273 + $0x6f] sm:$0xff]
      %v902 = vld [vmem:[%s273 + $0x77] sm:$0xff]
      %v903 = vld [vmem:[%s273 + $0x7f] sm:$0xff]
      %v904 = vld [vmem:[%s273 + $0x87] sm:$0xff]
      %v905 = vld [vmem:[%s273 + $0x8f] sm:$0xff]
      %v906 = vld [vmem:[%s273 + $0x97] sm:$0xff]
      %v907 = vld [vmem:[%s273 + $0x9f] sm:$0xff]
      %v908 = vld [vmem:[%s273 + $0xa7] sm:$0xff]
      %v909 = vld [vmem:[%s273 + $0xaf] sm:$0xff]
      %v910 = vld [vmem:[%s273 + $0xb7] sm:$0xff]
      %v911 = vld [vmem:[%s273 + $0xbf] sm:$0xff]
      %v912 = vld [vmem:[%s273 + $0xc7] sm:$0xff]
      %v913 = vld [vmem:[%s273 + $0xcf] sm:$0xff]
      %v914 = vld [vmem:[%s273 + $0xd7] sm:$0xff]
      %v915 = vld [vmem:[%s273 + $0xdf] sm:$0xff]
      %v916 = vld [vmem:[%s273 + $0xe7] sm:$0xff]
      %v917 = vld [vmem:[%s273 + $0xef] sm:$0xff]
      %v918 = vld [vmem:[%s273 + $0xf7] sm:$0xff]
      %v919 = vld [vmem:[%s273 + $0xff] sm:$0xff]
      %v920 = vmul.f32 %v888, %v760
      %v921 = vmul.f32 %v889, %v761
      %v922 = vmul.f32 %v890, %v762
      %v923 = vmul.f32 %v891, %v763
      %v924 = vmul.f32 %v892, %v764
      %v925 = vmul.f32 %v893, %v765
      %v926 = vmul.f32 %v894, %v766
      %v927 = vmul.f32 %v895, %v767
      %v928 = vmul.f32 %v896, %v768
      %v929 = vmul.f32 %v897, %v769
      %v930 = vmul.f32 %v898, %v770
      %v931 = vmul.f32 %v899, %v771
      %v932 = vmul.f32 %v900, %v772
      %v933 = vmul.f32 %v901, %v773
      %v934 = vmul.f32 %v902, %v774
      %v935 = vmul.f32 %v903, %v775
      %v936 = vmul.f32 %v904, %v776
      %v937 = vmul.f32 %v905, %v777
      %v938 = vmul.f32 %v906, %v778
      %v939 = vmul.f32 %v907, %v779
      %v940 = vmul.f32 %v908, %v780
      %v941 = vmul.f32 %v909, %v781
      %v942 = vmul.f32 %v910, %v782
      %v943 = vmul.f32 %v911, %v783
      %v944 = vmul.f32 %v912, %v784
      %v945 = vmul.f32 %v913, %v785
      %v946 = vmul.f32 %v914, %v786
      %v947 = vmul.f32 %v915, %v787
      %v948 = vmul.f32 %v916, %v788
      %v949 = vmul.f32 %v917, %v789
      %v950 = vmul.f32 %v918, %v790
      %v951 = vmul.f32 %v919, %v791
      %v952 = vld [vmem:[%s1] sm:$0xff]
      %v953 = vld [vmem:[%s1 + $0x8] sm:$0xff]
      %v954 = vld [vmem:[%s1 + $0x10] sm:$0xff]
      %v955 = vld [vmem:[%s273 + $0x8] sm:$0xff]
      %v956 = vld [vmem:[%s273 + $0x10] sm:$0xff]
      %v957 = vld [vmem:[%s273 + $0x18] sm:$0xff]
      %v958 = vld [vmem:[%s273 + $0x20] sm:$0xff]
      %v959 = vld [vmem:[%s273 + $0x28] sm:$0xff]
      %v960 = vld [vmem:[%s273 + $0x30] sm:$0xff]
      %v961 = vld [vmem:[%s273 + $0x38] sm:$0xff]
      %v962 = vld [vmem:[%s273 + $0x40] sm:$0xff]
      %v963 = vld [vmem:[%s273 + $0x48] sm:$0xff]
      %v964 = vld [vmem:[%s273 + $0x50] sm:$0xff]
      %v965 = vld [vmem:[%s273 + $0x58] sm:$0xff]
      %v966 = vld [vmem:[%s273 + $0x60] sm:$0xff]
      %v967 = vld [vmem:[%s273 + $0x68] sm:$0xff]
      %v968 = vld [vmem:[%s273 + $0x70] sm:$0xff]
      %v969 = vld [vmem:[%s273 + $0x78] sm:$0xff]
      %v970 = vld [vmem:[%s273 + $0x80] sm:$0xff]
      %v971 = vld [vmem:[%s273 + $0x88] sm:$0xff]
      %v972 = vld [vmem:[%s273 + $0x90] sm:$0xff]
      %v973 = vld [vmem:[%s273 + $0x98] sm:$0xff]
      %v974 = vld [vmem:[%s273 + $0xa0] sm:$0xff]
      %v975 = vld [vmem:[%s273 + $0xa8] sm:$0xff]
      %v976 = vld [vmem:[%s273 + $0xb0] sm:$0xff]
      %v977 = vld [vmem:[%s273 + $0xb8] sm:$0xff]
      %v978 = vld [vmem:[%s273 + $0xc0] sm:$0xff]
      %v979 = vld [vmem:[%s273 + $0xc8] sm:$0xff]
      %v980 = vld [vmem:[%s273 + $0xd0] sm:$0xff]
      %v981 = vld [vmem:[%s273 + $0xd8] sm:$0xff]
      %v982 = vld [vmem:[%s273 + $0xe0] sm:$0xff]
      %v983 = vld [vmem:[%s273 + $0xe8] sm:$0xff]
      %v984 = vld [vmem:[%s273 + $0xf0] sm:$0xff]
      %v985 = vld [vmem:[%s273 + $0xf8] sm:$0xff]
      %v986 = vld [vmem:[%s273 + $0x100] sm:$0xff]
      %s987 = scalar_lea.vmem %s1, 24
      %v988 = vld [vmem:[%s987] sm:$0xff]
      %v989 = vld [vmem:[%s987 + $0x8] sm:$0xff]
      %v990 = vld [vmem:[%s987 + $0x10] sm:$0xff]
      %vm991 = vcmask 195584
      %v993 = vsel %vm991, %v955, 0
      %v996 = vsel %vm991, %v956, 0
      %v999 = vsel %vm991, %v957, 0
      %v1002 = vsel %vm991, %v958, 0
      %v1005 = vsel %vm991, %v959, 0
      %v1008 = vsel %vm991, %v960, 0
      %v1011 = vsel %vm991, %v961, 0
      %v1014 = vsel %vm991, %v962, 0
      %v1017 = vsel %vm991, %v963, 0
      %v1020 = vsel %vm991, %v964, 0
      %v1023 = vsel %vm991, %v965, 0
      %v1026 = vsel %vm991, %v966, 0
      %v1029 = vsel %vm991, %v967, 0
      %v1032 = vsel %vm991, %v968, 0
      %v1035 = vsel %vm991, %v969, 0
      %v1038 = vsel %vm991, %v970, 0
      %v1041 = vsel %vm991, %v971, 0
      %v1044 = vsel %vm991, %v972, 0
      %v1047 = vsel %vm991, %v973, 0
      %v1050 = vsel %vm991, %v974, 0
      %v1053 = vsel %vm991, %v975, 0
      %v1056 = vsel %vm991, %v976, 0
      %v1059 = vsel %vm991, %v977, 0
      %v1062 = vsel %vm991, %v978, 0
      %v1065 = vsel %vm991, %v979, 0
      %v1068 = vsel %vm991, %v980, 0
      %v1071 = vsel %vm991, %v981, 0
      %v1074 = vsel %vm991, %v982, 0
      %v1077 = vsel %vm991, %v983, 0
      %v1080 = vsel %vm991, %v984, 0
      %v1083 = vsel %vm991, %v985, 0
      %v1086 = vsel %vm991, %v986, 0
      %1088 = vmatpush.msra.mxu0 0.0
      %1089 = vmatpush.msra.mxu0 0.0
      %1090 = vmatpush.msra.mxu0 0.0
      %1091 = vmatpush.msra.mxu0 0.0
      %1092 = vmatpush.msra.mxu0 0.0
      %1093 = vmatpush.msra.mxu0 0.0
      %1094 = vmatpush.msra.mxu0 0.0
      %1095 = vmatpush.msra.mxu0 0.0
      %1096 = vmatpush.msra.mxu0 0.0
      %1097 = vmatpush.msra.mxu0 0.0
      %1098 = vmatpush.msra.mxu0 0.0
      %1099 = vmatpush.msra.mxu0 0.0
      %1100 = vmatpush.msra.mxu0 0.0
      %1101 = vmatpush.msra.mxu0 %v990
      %1102 = vmatpush.msra.mxu0 %v989
      %1103 = vmatpush.msra.mxu0 %v988
      %1104 = vmatmul.f32.gmra.mxu0 %v993
      %v1105 = vpop.f32.mrf.mxu0
      %v1106 = vadd.f32 0.0, %v1105
      %1107 = vmatmul.f32.gmra.mxu0 %v996
      %v1108 = vpop.f32.mrf.mxu0
      %v1109 = vadd.f32 0.0, %v1108
      %1110 = vmatmul.f32.gmra.mxu0 %v999
      %v1111 = vpop.f32.mrf.mxu0
      %v1112 = vadd.f32 0.0, %v1111
      %1113 = vmatmul.f32.gmra.mxu0 %v1002
      %v1114 = vpop.f32.mrf.mxu0
      %v1115 = vadd.f32 0.0, %v1114
      %1116 = vmatmul.f32.gmra.mxu0 %v1005
      %v1117 = vpop.f32.mrf.mxu0
      %v1118 = vadd.f32 0.0, %v1117
      %1119 = vmatmul.f32.gmra.mxu0 %v1008
      %v1120 = vpop.f32.mrf.mxu0
      %v1121 = vadd.f32 0.0, %v1120
      %1122 = vmatmul.f32.gmra.mxu0 %v1011
      %v1123 = vpop.f32.mrf.mxu0
      %v1124 = vadd.f32 0.0, %v1123
      %1125 = vmatmul.f32.gmra.mxu0 %v1014
      %v1126 = vpop.f32.mrf.mxu0
      %v1127 = vadd.f32 0.0, %v1126
      %1128 = vmatmul.f32.gmra.mxu0 %v1017
      %v1129 = vpop.f32.mrf.mxu0
      %v1130 = vadd.f32 0.0, %v1129
      %1131 = vmatmul.f32.gmra.mxu0 %v1020
      %v1132 = vpop.f32.mrf.mxu0
      %v1133 = vadd.f32 0.0, %v1132
      %1134 = vmatmul.f32.gmra.mxu0 %v1023
      %v1135 = vpop.f32.mrf.mxu0
      %v1136 = vadd.f32 0.0, %v1135
      %1137 = vmatmul.f32.gmra.mxu0 %v1026
      %v1138 = vpop.f32.mrf.mxu0
      %v1139 = vadd.f32 0.0, %v1138
      %1140 = vmatmul.f32.gmra.mxu0 %v1029
      %v1141 = vpop.f32.mrf.mxu0
      %v1142 = vadd.f32 0.0, %v1141
      %1143 = vmatmul.f32.gmra.mxu0 %v1032
      %v1144 = vpop.f32.mrf.mxu0
      %v1145 = vadd.f32 0.0, %v1144
      %1146 = vmatmul.f32.gmra.mxu0 %v1035
      %v1147 = vpop.f32.mrf.mxu0
      %v1148 = vadd.f32 0.0, %v1147
      %1149 = vmatmul.f32.gmra.mxu0 %v1038
      %v1150 = vpop.f32.mrf.mxu0
      %v1151 = vadd.f32 0.0, %v1150
      %1152 = vmatmul.f32.gmra.mxu0 %v1041
      %v1153 = vpop.f32.mrf.mxu0
      %v1154 = vadd.f32 0.0, %v1153
      %1155 = vmatmul.f32.gmra.mxu0 %v1044
      %v1156 = vpop.f32.mrf.mxu0
      %v1157 = vadd.f32 0.0, %v1156
      %1158 = vmatmul.f32.gmra.mxu0 %v1047
      %v1159 = vpop.f32.mrf.mxu0
      %v1160 = vadd.f32 0.0, %v1159
      %1161 = vmatmul.f32.gmra.mxu0 %v1050
      %v1162 = vpop.f32.mrf.mxu0
      %v1163 = vadd.f32 0.0, %v1162
      %1164 = vmatmul.f32.gmra.mxu0 %v1053
      %v1165 = vpop.f32.mrf.mxu0
      %v1166 = vadd.f32 0.0, %v1165
      %1167 = vmatmul.f32.gmra.mxu0 %v1056
      %v1168 = vpop.f32.mrf.mxu0
      %v1169 = vadd.f32 0.0, %v1168
      %1170 = vmatmul.f32.gmra.mxu0 %v1059
      %v1171 = vpop.f32.mrf.mxu0
      %v1172 = vadd.f32 0.0, %v1171
      %1173 = vmatmul.f32.gmra.mxu0 %v1062
      %v1174 = vpop.f32.mrf.mxu0
      %v1175 = vadd.f32 0.0, %v1174
      %1176 = vmatmul.f32.gmra.mxu0 %v1065
      %v1177 = vpop.f32.mrf.mxu0
      %v1178 = vadd.f32 0.0, %v1177
      %1179 = vmatmul.f32.gmra.mxu0 %v1068
      %v1180 = vpop.f32.mrf.mxu0
      %v1181 = vadd.f32 0.0, %v1180
      %1182 = vmatmul.f32.gmra.mxu0 %v1071
      %v1183 = vpop.f32.mrf.mxu0
      %v1184 = vadd.f32 0.0, %v1183
      %1185 = vmatmul.f32.gmra.mxu0 %v1074
      %v1186 = vpop.f32.mrf.mxu0
      %v1187 = vadd.f32 0.0, %v1186
      %1188 = vmatmul.f32.gmra.mxu0 %v1077
      %v1189 = vpop.f32.mrf.mxu0
      %v1190 = vadd.f32 0.0, %v1189
      %1191 = vmatmul.f32.gmra.mxu0 %v1080
      %v1192 = vpop.f32.mrf.mxu0
      %v1193 = vadd.f32 0.0, %v1192
      %1194 = vmatmul.f32.gmra.mxu0 %v1083
      %v1195 = vpop.f32.mrf.mxu0
      %v1196 = vadd.f32 0.0, %v1195
      %1197 = vmatmul.f32.gmra.mxu0 %v1086
      %v1198 = vpop.f32.mrf.mxu0
      %v1199 = vadd.f32 0.0, %v1198
      %1200 = vdwg.mxu0
      %v1202 = vsel %vm991, %v920, 0
      %v1205 = vsel %vm991, %v921, 0
      %v1208 = vsel %vm991, %v922, 0
      %v1211 = vsel %vm991, %v923, 0
      %v1214 = vsel %vm991, %v924, 0
      %v1217 = vsel %vm991, %v925, 0
      %v1220 = vsel %vm991, %v926, 0
      %v1223 = vsel %vm991, %v927, 0
      %v1226 = vsel %vm991, %v928, 0
      %v1229 = vsel %vm991, %v929, 0
      %v1232 = vsel %vm991, %v930, 0
      %v1235 = vsel %vm991, %v931, 0
      %v1238 = vsel %vm991, %v932, 0
      %v1241 = vsel %vm991, %v933, 0
      %v1244 = vsel %vm991, %v934, 0
      %v1247 = vsel %vm991, %v935, 0
      %v1250 = vsel %vm991, %v936, 0
      %v1253 = vsel %vm991, %v937, 0
      %v1256 = vsel %vm991, %v938, 0
      %v1259 = vsel %vm991, %v939, 0
      %v1262 = vsel %vm991, %v940, 0
      %v1265 = vsel %vm991, %v941, 0
      %v1268 = vsel %vm991, %v942, 0
      %v1271 = vsel %vm991, %v943, 0
      %v1274 = vsel %vm991, %v944, 0
      %v1277 = vsel %vm991, %v945, 0
      %v1280 = vsel %vm991, %v946, 0
      %v1283 = vsel %vm991, %v947, 0
      %v1286 = vsel %vm991, %v948, 0
      %v1289 = vsel %vm991, %v949, 0
      %v1292 = vsel %vm991, %v950, 0
      %v1295 = vsel %vm991, %v951, 0
      %1297 = vmatpush.msra.mxu0 0.0
      %1298 = vmatpush.msra.mxu0 0.0
      %1299 = vmatpush.msra.mxu0 0.0
      %1300 = vmatpush.msra.mxu0 0.0
      %1301 = vmatpush.msra.mxu0 0.0
      %1302 = vmatpush.msra.mxu0 0.0
      %1303 = vmatpush.msra.mxu0 0.0
      %1304 = vmatpush.msra.mxu0 0.0
      %1305 = vmatpush.msra.mxu0 0.0
      %1306 = vmatpush.msra.mxu0 0.0
      %1307 = vmatpush.msra.mxu0 0.0
      %1308 = vmatpush.msra.mxu0 0.0
      %1309 = vmatpush.msra.mxu0 0.0
      %1310 = vmatpush.msra.mxu0 %v954
      %1311 = vmatpush.msra.mxu0 %v953
      %1312 = vmatpush.msra.mxu0 %v952
      %1313 = vmatmul.f32.gmra.mxu0 %v1202
      %v1314 = vpop.f32.mrf.mxu0
      %v1315 = vadd.f32 %v1106, %v1314
      %1316 = vmatmul.f32.gmra.mxu0 %v1205
      %v1317 = vpop.f32.mrf.mxu0
      %v1318 = vadd.f32 %v1109, %v1317
      %1319 = vmatmul.f32.gmra.mxu0 %v1208
      %v1320 = vpop.f32.mrf.mxu0
      %v1321 = vadd.f32 %v1112, %v1320
      %1322 = vmatmul.f32.gmra.mxu0 %v1211
      %v1323 = vpop.f32.mrf.mxu0
      %v1324 = vadd.f32 %v1115, %v1323
      %1325 = vmatmul.f32.gmra.mxu0 %v1214
      %v1326 = vpop.f32.mrf.mxu0
      %v1327 = vadd.f32 %v1118, %v1326
      %1328 = vmatmul.f32.gmra.mxu0 %v1217
      %v1329 = vpop.f32.mrf.mxu0
      %v1330 = vadd.f32 %v1121, %v1329
      %1331 = vmatmul.f32.gmra.mxu0 %v1220
      %v1332 = vpop.f32.mrf.mxu0
      %v1333 = vadd.f32 %v1124, %v1332
      %1334 = vmatmul.f32.gmra.mxu0 %v1223
      %v1335 = vpop.f32.mrf.mxu0
      %v1336 = vadd.f32 %v1127, %v1335
      %1337 = vmatmul.f32.gmra.mxu0 %v1226
      %v1338 = vpop.f32.mrf.mxu0
      %v1339 = vadd.f32 %v1130, %v1338
      %1340 = vmatmul.f32.gmra.mxu0 %v1229
      %v1341 = vpop.f32.mrf.mxu0
      %v1342 = vadd.f32 %v1133, %v1341
      %1343 = vmatmul.f32.gmra.mxu0 %v1232
      %v1344 = vpop.f32.mrf.mxu0
      %v1345 = vadd.f32 %v1136, %v1344
      %1346 = vmatmul.f32.gmra.mxu0 %v1235
      %v1347 = vpop.f32.mrf.mxu0
      %v1348 = vadd.f32 %v1139, %v1347
      %1349 = vmatmul.f32.gmra.mxu0 %v1238
      %v1350 = vpop.f32.mrf.mxu0
      %v1351 = vadd.f32 %v1142, %v1350
      %1352 = vmatmul.f32.gmra.mxu0 %v1241
      %v1353 = vpop.f32.mrf.mxu0
      %v1354 = vadd.f32 %v1145, %v1353
      %1355 = vmatmul.f32.gmra.mxu0 %v1244
      %v1356 = vpop.f32.mrf.mxu0
      %v1357 = vadd.f32 %v1148, %v1356
      %1358 = vmatmul.f32.gmra.mxu0 %v1247
      %v1359 = vpop.f32.mrf.mxu0
      %v1360 = vadd.f32 %v1151, %v1359
      %1361 = vmatmul.f32.gmra.mxu0 %v1250
      %v1362 = vpop.f32.mrf.mxu0
      %v1363 = vadd.f32 %v1154, %v1362
      %1364 = vmatmul.f32.gmra.mxu0 %v1253
      %v1365 = vpop.f32.mrf.mxu0
      %v1366 = vadd.f32 %v1157, %v1365
      %1367 = vmatmul.f32.gmra.mxu0 %v1256
      %v1368 = vpop.f32.mrf.mxu0
      %v1369 = vadd.f32 %v1160, %v1368
      %1370 = vmatmul.f32.gmra.mxu0 %v1259
      %v1371 = vpop.f32.mrf.mxu0
      %v1372 = vadd.f32 %v1163, %v1371
      %1373 = vmatmul.f32.gmra.mxu0 %v1262
      %v1374 = vpop.f32.mrf.mxu0
      %v1375 = vadd.f32 %v1166, %v1374
      %1376 = vmatmul.f32.gmra.mxu0 %v1265
      %v1377 = vpop.f32.mrf.mxu0
      %v1378 = vadd.f32 %v1169, %v1377
      %1379 = vmatmul.f32.gmra.mxu0 %v1268
      %v1380 = vpop.f32.mrf.mxu0
      %v1381 = vadd.f32 %v1172, %v1380
      %1382 = vmatmul.f32.gmra.mxu0 %v1271
      %v1383 = vpop.f32.mrf.mxu0
      %v1384 = vadd.f32 %v1175, %v1383
      %1385 = vmatmul.f32.gmra.mxu0 %v1274
      %v1386 = vpop.f32.mrf.mxu0
      %v1387 = vadd.f32 %v1178, %v1386
      %1388 = vmatmul.f32.gmra.mxu0 %v1277
      %v1389 = vpop.f32.mrf.mxu0
      %v1390 = vadd.f32 %v1181, %v1389
      %1391 = vmatmul.f32.gmra.mxu0 %v1280
      %v1392 = vpop.f32.mrf.mxu0
      %v1393 = vadd.f32 %v1184, %v1392
      %1394 = vmatmul.f32.gmra.mxu0 %v1283
      %v1395 = vpop.f32.mrf.mxu0
      %v1396 = vadd.f32 %v1187, %v1395
      %1397 = vmatmul.f32.gmra.mxu0 %v1286
      %v1398 = vpop.f32.mrf.mxu0
      %v1399 = vadd.f32 %v1190, %v1398
      %1400 = vmatmul.f32.gmra.mxu0 %v1289
      %v1401 = vpop.f32.mrf.mxu0
      %v1402 = vadd.f32 %v1193, %v1401
      %1403 = vmatmul.f32.gmra.mxu0 %v1292
      %v1404 = vpop.f32.mrf.mxu0
      %v1405 = vadd.f32 %v1196, %v1404
      %1406 = vmatmul.f32.gmra.mxu0 %v1295
      %v1407 = vpop.f32.mrf.mxu0
      %v1408 = vadd.f32 %v1199, %v1407
      %1409 = vdwg.mxu0
      %v1410 = vld [vmem:[%s273 + $0x9] sm:$0xff]
      %v1411 = vld [vmem:[%s273 + $0x11] sm:$0xff]
      %v1412 = vld [vmem:[%s273 + $0x19] sm:$0xff]
      %v1413 = vld [vmem:[%s273 + $0x21] sm:$0xff]
      %v1414 = vld [vmem:[%s273 + $0x29] sm:$0xff]
      %v1415 = vld [vmem:[%s273 + $0x31] sm:$0xff]
      %v1416 = vld [vmem:[%s273 + $0x39] sm:$0xff]
      %v1417 = vld [vmem:[%s273 + $0x41] sm:$0xff]
      %v1418 = vld [vmem:[%s273 + $0x49] sm:$0xff]
      %v1419 = vld [vmem:[%s273 + $0x51] sm:$0xff]
      %v1420 = vld [vmem:[%s273 + $0x59] sm:$0xff]
      %v1421 = vld [vmem:[%s273 + $0x61] sm:$0xff]
      %v1422 = vld [vmem:[%s273 + $0x69] sm:$0xff]
      %v1423 = vld [vmem:[%s273 + $0x71] sm:$0xff]
      %v1424 = vld [vmem:[%s273 + $0x79] sm:$0xff]
      %v1425 = vld [vmem:[%s273 + $0x81] sm:$0xff]
      %v1426 = vld [vmem:[%s273 + $0x89] sm:$0xff]
      %v1427 = vld [vmem:[%s273 + $0x91] sm:$0xff]
      %v1428 = vld [vmem:[%s273 + $0x99] sm:$0xff]
      %v1429 = vld [vmem:[%s273 + $0xa1] sm:$0xff]
      %v1430 = vld [vmem:[%s273 + $0xa9] sm:$0xff]
      %v1431 = vld [vmem:[%s273 + $0xb1] sm:$0xff]
      %v1432 = vld [vmem:[%s273 + $0xb9] sm:$0xff]
      %v1433 = vld [vmem:[%s273 + $0xc1] sm:$0xff]
      %v1434 = vld [vmem:[%s273 + $0xc9] sm:$0xff]
      %v1435 = vld [vmem:[%s273 + $0xd1] sm:$0xff]
      %v1436 = vld [vmem:[%s273 + $0xd9] sm:$0xff]
      %v1437 = vld [vmem:[%s273 + $0xe1] sm:$0xff]
      %v1438 = vld [vmem:[%s273 + $0xe9] sm:$0xff]
      %v1439 = vld [vmem:[%s273 + $0xf1] sm:$0xff]
      %v1440 = vld [vmem:[%s273 + $0xf9] sm:$0xff]
      %v1441 = vld [vmem:[%s273 + $0x101] sm:$0xff]
      %v1442 = vmul.f32 %v1410, %v856
      %v1443 = vmul.f32 %v1411, %v857
      %v1444 = vmul.f32 %v1412, %v858
      %v1445 = vmul.f32 %v1413, %v859
      %v1446 = vmul.f32 %v1414, %v860
      %v1447 = vmul.f32 %v1415, %v861
      %v1448 = vmul.f32 %v1416, %v862
      %v1449 = vmul.f32 %v1417, %v863
      %v1450 = vmul.f32 %v1418, %v864
      %v1451 = vmul.f32 %v1419, %v865
      %v1452 = vmul.f32 %v1420, %v866
      %v1453 = vmul.f32 %v1421, %v867
      %v1454 = vmul.f32 %v1422, %v868
      %v1455 = vmul.f32 %v1423, %v869
      %v1456 = vmul.f32 %v1424, %v870
      %v1457 = vmul.f32 %v1425, %v871
      %v1458 = vmul.f32 %v1426, %v872
      %v1459 = vmul.f32 %v1427, %v873
      %v1460 = vmul.f32 %v1428, %v874
      %v1461 = vmul.f32 %v1429, %v875
      %v1462 = vmul.f32 %v1430, %v876
      %v1463 = vmul.f32 %v1431, %v877
      %v1464 = vmul.f32 %v1432, %v878
      %v1465 = vmul.f32 %v1433, %v879
      %v1466 = vmul.f32 %v1434, %v880
      %v1467 = vmul.f32 %v1435, %v881
      %v1468 = vmul.f32 %v1436, %v882
      %v1469 = vmul.f32 %v1437, %v883
      %v1470 = vmul.f32 %v1438, %v884
      %v1471 = vmul.f32 %v1439, %v885
      %v1472 = vmul.f32 %v1440, %v886
      %v1473 = vmul.f32 %v1441, %v887
      %s1474 = scalar_lea.vmem %s1, 48
      %v1475 = vld [vmem:[%s1474] sm:$0xff]
      %v1476 = vld [vmem:[%s1474 + $0x8] sm:$0xff]
      %v1477 = vld [vmem:[%s1474 + $0x10] sm:$0xff]
      %v1479 = vsel %vm991, %v1442, 0
      %v1482 = vsel %vm991, %v1443, 0
      %v1485 = vsel %vm991, %v1444, 0
      %v1488 = vsel %vm991, %v1445, 0
      %v1491 = vsel %vm991, %v1446, 0
      %v1494 = vsel %vm991, %v1447, 0
      %v1497 = vsel %vm991, %v1448, 0
      %v1500 = vsel %vm991, %v1449, 0
      %v1503 = vsel %vm991, %v1450, 0
      %v1506 = vsel %vm991, %v1451, 0
      %v1509 = vsel %vm991, %v1452, 0
      %v1512 = vsel %vm991, %v1453, 0
      %v1515 = vsel %vm991, %v1454, 0
      %v1518 = vsel %vm991, %v1455, 0
      %v1521 = vsel %vm991, %v1456, 0
      %v1524 = vsel %vm991, %v1457, 0
      %v1527 = vsel %vm991, %v1458, 0
      %v1530 = vsel %vm991, %v1459, 0
      %v1533 = vsel %vm991, %v1460, 0
      %v1536 = vsel %vm991, %v1461, 0
      %v1539 = vsel %vm991, %v1462, 0
      %v1542 = vsel %vm991, %v1463, 0
      %v1545 = vsel %vm991, %v1464, 0
      %v1548 = vsel %vm991, %v1465, 0
      %v1551 = vsel %vm991, %v1466, 0
      %v1554 = vsel %vm991, %v1467, 0
      %v1557 = vsel %vm991, %v1468, 0
      %v1560 = vsel %vm991, %v1469, 0
      %v1563 = vsel %vm991, %v1470, 0
      %v1566 = vsel %vm991, %v1471, 0
      %v1569 = vsel %vm991, %v1472, 0
      %v1572 = vsel %vm991, %v1473, 0
      %1574 = vmatpush.msra.mxu0 0.0
      %1575 = vmatpush.msra.mxu0 0.0
      %1576 = vmatpush.msra.mxu0 0.0
      %1577 = vmatpush.msra.mxu0 0.0
      %1578 = vmatpush.msra.mxu0 0.0
      %1579 = vmatpush.msra.mxu0 0.0
      %1580 = vmatpush.msra.mxu0 0.0
      %1581 = vmatpush.msra.mxu0 0.0
      %1582 = vmatpush.msra.mxu0 0.0
      %1583 = vmatpush.msra.mxu0 0.0
      %1584 = vmatpush.msra.mxu0 0.0
      %1585 = vmatpush.msra.mxu0 0.0
      %1586 = vmatpush.msra.mxu0 0.0
      %1587 = vmatpush.msra.mxu0 %v1477
      %1588 = vmatpush.msra.mxu0 %v1476
      %1589 = vmatpush.msra.mxu0 %v1475
      %1590 = vmatmul.f32.gmra.mxu0 %v1479
      %v1591 = vpop.f32.mrf.mxu0
      %v1592 = vadd.f32 0.0, %v1591
      %1593 = vmatmul.f32.gmra.mxu0 %v1482
      %v1594 = vpop.f32.mrf.mxu0
      %v1595 = vadd.f32 0.0, %v1594
      %1596 = vmatmul.f32.gmra.mxu0 %v1485
      %v1597 = vpop.f32.mrf.mxu0
      %v1598 = vadd.f32 0.0, %v1597
      %1599 = vmatmul.f32.gmra.mxu0 %v1488
      %v1600 = vpop.f32.mrf.mxu0
      %v1601 = vadd.f32 0.0, %v1600
      %1602 = vmatmul.f32.gmra.mxu0 %v1491
      %v1603 = vpop.f32.mrf.mxu0
      %v1604 = vadd.f32 0.0, %v1603
      %1605 = vmatmul.f32.gmra.mxu0 %v1494
      %v1606 = vpop.f32.mrf.mxu0
      %v1607 = vadd.f32 0.0, %v1606
      %1608 = vmatmul.f32.gmra.mxu0 %v1497
      %v1609 = vpop.f32.mrf.mxu0
      %v1610 = vadd.f32 0.0, %v1609
      %1611 = vmatmul.f32.gmra.mxu0 %v1500
      %v1612 = vpop.f32.mrf.mxu0
      %v1613 = vadd.f32 0.0, %v1612
      %1614 = vmatmul.f32.gmra.mxu0 %v1503
      %v1615 = vpop.f32.mrf.mxu0
      %v1616 = vadd.f32 0.0, %v1615
      %1617 = vmatmul.f32.gmra.mxu0 %v1506
      %v1618 = vpop.f32.mrf.mxu0
      %v1619 = vadd.f32 0.0, %v1618
      %1620 = vmatmul.f32.gmra.mxu0 %v1509
      %v1621 = vpop.f32.mrf.mxu0
      %v1622 = vadd.f32 0.0, %v1621
      %1623 = vmatmul.f32.gmra.mxu0 %v1512
      %v1624 = vpop.f32.mrf.mxu0
      %v1625 = vadd.f32 0.0, %v1624
      %1626 = vmatmul.f32.gmra.mxu0 %v1515
      %v1627 = vpop.f32.mrf.mxu0
      %v1628 = vadd.f32 0.0, %v1627
      %1629 = vmatmul.f32.gmra.mxu0 %v1518
      %v1630 = vpop.f32.mrf.mxu0
      %v1631 = vadd.f32 0.0, %v1630
      %1632 = vmatmul.f32.gmra.mxu0 %v1521
      %v1633 = vpop.f32.mrf.mxu0
      %v1634 = vadd.f32 0.0, %v1633
      %1635 = vmatmul.f32.gmra.mxu0 %v1524
      %v1636 = vpop.f32.mrf.mxu0
      %v1637 = vadd.f32 0.0, %v1636
      %1638 = vmatmul.f32.gmra.mxu0 %v1527
      %v1639 = vpop.f32.mrf.mxu0
      %v1640 = vadd.f32 0.0, %v1639
      %1641 = vmatmul.f32.gmra.mxu0 %v1530
      %v1642 = vpop.f32.mrf.mxu0
      %v1643 = vadd.f32 0.0, %v1642
      %1644 = vmatmul.f32.gmra.mxu0 %v1533
      %v1645 = vpop.f32.mrf.mxu0
      %v1646 = vadd.f32 0.0, %v1645
      %1647 = vmatmul.f32.gmra.mxu0 %v1536
      %v1648 = vpop.f32.mrf.mxu0
      %v1649 = vadd.f32 0.0, %v1648
      %1650 = vmatmul.f32.gmra.mxu0 %v1539
      %v1651 = vpop.f32.mrf.mxu0
      %v1652 = vadd.f32 0.0, %v1651
      %1653 = vmatmul.f32.gmra.mxu0 %v1542
      %v1654 = vpop.f32.mrf.mxu0
      %v1655 = vadd.f32 0.0, %v1654
      %1656 = vmatmul.f32.gmra.mxu0 %v1545
      %v1657 = vpop.f32.mrf.mxu0
      %v1658 = vadd.f32 0.0, %v1657
      %1659 = vmatmul.f32.gmra.mxu0 %v1548
      %v1660 = vpop.f32.mrf.mxu0
      %v1661 = vadd.f32 0.0, %v1660
      %1662 = vmatmul.f32.gmra.mxu0 %v1551
      %v1663 = vpop.f32.mrf.mxu0
      %v1664 = vadd.f32 0.0, %v1663
      %1665 = vmatmul.f32.gmra.mxu0 %v1554
      %v1666 = vpop.f32.mrf.mxu0
      %v1667 = vadd.f32 0.0, %v1666
      %1668 = vmatmul.f32.gmra.mxu0 %v1557
      %v1669 = vpop.f32.mrf.mxu0
      %v1670 = vadd.f32 0.0, %v1669
      %1671 = vmatmul.f32.gmra.mxu0 %v1560
      %v1672 = vpop.f32.mrf.mxu0
      %v1673 = vadd.f32 0.0, %v1672
      %1674 = vmatmul.f32.gmra.mxu0 %v1563
      %v1675 = vpop.f32.mrf.mxu0
      %v1676 = vadd.f32 0.0, %v1675
      %1677 = vmatmul.f32.gmra.mxu0 %v1566
      %v1678 = vpop.f32.mrf.mxu0
      %v1679 = vadd.f32 0.0, %v1678
      %1680 = vmatmul.f32.gmra.mxu0 %v1569
      %v1681 = vpop.f32.mrf.mxu0
      %v1682 = vadd.f32 0.0, %v1681
      %1683 = vmatmul.f32.gmra.mxu0 %v1572
      %v1684 = vpop.f32.mrf.mxu0
      %v1685 = vadd.f32 0.0, %v1684
      %1686 = vdwg.mxu0
      %v1687 = vadd.f32 %v1315, %v1592
      %v1688 = vadd.f32 %v1318, %v1595
      %v1689 = vadd.f32 %v1321, %v1598
      %v1690 = vadd.f32 %v1324, %v1601
      %v1691 = vadd.f32 %v1327, %v1604
      %v1692 = vadd.f32 %v1330, %v1607
      %v1693 = vadd.f32 %v1333, %v1610
      %v1694 = vadd.f32 %v1336, %v1613
      %v1695 = vadd.f32 %v1339, %v1616
      %v1696 = vadd.f32 %v1342, %v1619
      %v1697 = vadd.f32 %v1345, %v1622
      %v1698 = vadd.f32 %v1348, %v1625
      %v1699 = vadd.f32 %v1351, %v1628
      %v1700 = vadd.f32 %v1354, %v1631
      %v1701 = vadd.f32 %v1357, %v1634
      %v1702 = vadd.f32 %v1360, %v1637
      %v1703 = vadd.f32 %v1363, %v1640
      %v1704 = vadd.f32 %v1366, %v1643
      %v1705 = vadd.f32 %v1369, %v1646
      %v1706 = vadd.f32 %v1372, %v1649
      %v1707 = vadd.f32 %v1375, %v1652
      %v1708 = vadd.f32 %v1378, %v1655
      %v1709 = vadd.f32 %v1381, %v1658
      %v1710 = vadd.f32 %v1384, %v1661
      %v1711 = vadd.f32 %v1387, %v1664
      %v1712 = vadd.f32 %v1390, %v1667
      %v1713 = vadd.f32 %v1393, %v1670
      %v1714 = vadd.f32 %v1396, %v1673
      %v1715 = vadd.f32 %v1399, %v1676
      %v1716 = vadd.f32 %v1402, %v1679
      %v1717 = vadd.f32 %v1405, %v1682
      %v1718 = vadd.f32 %v1408, %v1685
      %v1719 = vld [vmem:[%s273 + $0x17] sm:$0xff]
      %v1720 = vld [vmem:[%s273 + $0x1f] sm:$0xff]
      %v1721 = vld [vmem:[%s273 + $0x27] sm:$0xff]
      %v1722 = vld [vmem:[%s273 + $0x2f] sm:$0xff]
      %v1723 = vld [vmem:[%s273 + $0x37] sm:$0xff]
      %v1724 = vld [vmem:[%s273 + $0x3f] sm:$0xff]
      %v1725 = vld [vmem:[%s273 + $0x47] sm:$0xff]
      %v1726 = vld [vmem:[%s273 + $0x4f] sm:$0xff]
      %v1727 = vld [vmem:[%s273 + $0x57] sm:$0xff]
      %v1728 = vld [vmem:[%s273 + $0x5f] sm:$0xff]
      %v1729 = vld [vmem:[%s273 + $0x67] sm:$0xff]
      %v1730 = vld [vmem:[%s273 + $0x6f] sm:$0xff]
      %v1731 = vld [vmem:[%s273 + $0x77] sm:$0xff]
      %v1732 = vld [vmem:[%s273 + $0x7f] sm:$0xff]
      %v1733 = vld [vmem:[%s273 + $0x87] sm:$0xff]
      %v1734 = vld [vmem:[%s273 + $0x8f] sm:$0xff]
      %v1735 = vld [vmem:[%s273 + $0x97] sm:$0xff]
      %v1736 = vld [vmem:[%s273 + $0x9f] sm:$0xff]
      %v1737 = vld [vmem:[%s273 + $0xa7] sm:$0xff]
      %v1738 = vld [vmem:[%s273 + $0xaf] sm:$0xff]
      %v1739 = vld [vmem:[%s273 + $0xb7] sm:$0xff]
      %v1740 = vld [vmem:[%s273 + $0xbf] sm:$0xff]
      %v1741 = vld [vmem:[%s273 + $0xc7] sm:$0xff]
      %v1742 = vld [vmem:[%s273 + $0xcf] sm:$0xff]
      %v1743 = vld [vmem:[%s273 + $0xd7] sm:$0xff]
      %v1744 = vld [vmem:[%s273 + $0xdf] sm:$0xff]
      %v1745 = vld [vmem:[%s273 + $0xe7] sm:$0xff]
      %v1746 = vld [vmem:[%s273 + $0xef] sm:$0xff]
      %v1747 = vld [vmem:[%s273 + $0xf7] sm:$0xff]
      %v1748 = vld [vmem:[%s273 + $0xff] sm:$0xff]
      %v1749 = vld [vmem:[%s273 + $0x107] sm:$0xff]
      %v1750 = vld [vmem:[%s273 + $0x10f] sm:$0xff]
      %v1751 = vmul.f32 %v1719, %v760
      %v1752 = vmul.f32 %v1720, %v761
      %v1753 = vmul.f32 %v1721, %v762
      %v1754 = vmul.f32 %v1722, %v763
      %v1755 = vmul.f32 %v1723, %v764
      %v1756 = vmul.f32 %v1724, %v765
      %v1757 = vmul.f32 %v1725, %v766
      %v1758 = vmul.f32 %v1726, %v767
      %v1759 = vmul.f32 %v1727, %v768
      %v1760 = vmul.f32 %v1728, %v769
      %v1761 = vmul.f32 %v1729, %v770
      %v1762 = vmul.f32 %v1730, %v771
      %v1763 = vmul.f32 %v1731, %v772
      %v1764 = vmul.f32 %v1732, %v773
      %v1765 = vmul.f32 %v1733, %v774
      %v1766 = vmul.f32 %v1734, %v775
      %v1767 = vmul.f32 %v1735, %v776
      %v1768 = vmul.f32 %v1736, %v777
      %v1769 = vmul.f32 %v1737, %v778
      %v1770 = vmul.f32 %v1738, %v779
      %v1771 = vmul.f32 %v1739, %v780
      %v1772 = vmul.f32 %v1740, %v781
      %v1773 = vmul.f32 %v1741, %v782
      %v1774 = vmul.f32 %v1742, %v783
      %v1775 = vmul.f32 %v1743, %v784
      %v1776 = vmul.f32 %v1744, %v785
      %v1777 = vmul.f32 %v1745, %v786
      %v1778 = vmul.f32 %v1746, %v787
      %v1779 = vmul.f32 %v1747, %v788
      %v1780 = vmul.f32 %v1748, %v789
      %v1781 = vmul.f32 %v1749, %v790
      %v1782 = vmul.f32 %v1750, %v791
      %s1783 = scalar_lea.vmem %s1, 72
      %v1784 = vld [vmem:[%s1783] sm:$0xff]
      %v1785 = vld [vmem:[%s1783 + $0x8] sm:$0xff]
      %v1786 = vld [vmem:[%s1783 + $0x10] sm:$0xff]
      %v1788 = vsel %vm991, %v1751, 0
      %v1791 = vsel %vm991, %v1752, 0
      %v1794 = vsel %vm991, %v1753, 0
      %v1797 = vsel %vm991, %v1754, 0
      %v1800 = vsel %vm991, %v1755, 0
      %v1803 = vsel %vm991, %v1756, 0
      %v1806 = vsel %vm991, %v1757, 0
      %v1809 = vsel %vm991, %v1758, 0
      %v1812 = vsel %vm991, %v1759, 0
      %v1815 = vsel %vm991, %v1760, 0
      %v1818 = vsel %vm991, %v1761, 0
      %v1821 = vsel %vm991, %v1762, 0
      %v1824 = vsel %vm991, %v1763, 0
      %v1827 = vsel %vm991, %v1764, 0
      %v1830 = vsel %vm991, %v1765, 0
      %v1833 = vsel %vm991, %v1766, 0
      %v1836 = vsel %vm991, %v1767, 0
      %v1839 = vsel %vm991, %v1768, 0
      %v1842 = vsel %vm991, %v1769, 0
      %v1845 = vsel %vm991, %v1770, 0
      %v1848 = vsel %vm991, %v1771, 0
      %v1851 = vsel %vm991, %v1772, 0
      %v1854 = vsel %vm991, %v1773, 0
      %v1857 = vsel %vm991, %v1774, 0
      %v1860 = vsel %vm991, %v1775, 0
      %v1863 = vsel %vm991, %v1776, 0
      %v1866 = vsel %vm991, %v1777, 0
      %v1869 = vsel %vm991, %v1778, 0
      %v1872 = vsel %vm991, %v1779, 0
      %v1875 = vsel %vm991, %v1780, 0
      %v1878 = vsel %vm991, %v1781, 0
      %v1881 = vsel %vm991, %v1782, 0
      %1883 = vmatpush.msra.mxu0 0.0
      %1884 = vmatpush.msra.mxu0 0.0
      %1885 = vmatpush.msra.mxu0 0.0
      %1886 = vmatpush.msra.mxu0 0.0
      %1887 = vmatpush.msra.mxu0 0.0
      %1888 = vmatpush.msra.mxu0 0.0
      %1889 = vmatpush.msra.mxu0 0.0
      %1890 = vmatpush.msra.mxu0 0.0
      %1891 = vmatpush.msra.mxu0 0.0
      %1892 = vmatpush.msra.mxu0 0.0
      %1893 = vmatpush.msra.mxu0 0.0
      %1894 = vmatpush.msra.mxu0 0.0
      %1895 = vmatpush.msra.mxu0 0.0
      %1896 = vmatpush.msra.mxu0 %v1786
      %1897 = vmatpush.msra.mxu0 %v1785
      %1898 = vmatpush.msra.mxu0 %v1784
      %1899 = vmatmul.f32.gmra.mxu0 %v1788
      %v1900 = vpop.f32.mrf.mxu0
      %v1901 = vadd.f32 0.0, %v1900
      %1902 = vmatmul.f32.gmra.mxu0 %v1791
      %v1903 = vpop.f32.mrf.mxu0
      %v1904 = vadd.f32 0.0, %v1903
      %1905 = vmatmul.f32.gmra.mxu0 %v1794
      %v1906 = vpop.f32.mrf.mxu0
      %v1907 = vadd.f32 0.0, %v1906
      %1908 = vmatmul.f32.gmra.mxu0 %v1797
      %v1909 = vpop.f32.mrf.mxu0
      %v1910 = vadd.f32 0.0, %v1909
      %1911 = vmatmul.f32.gmra.mxu0 %v1800
      %v1912 = vpop.f32.mrf.mxu0
      %v1913 = vadd.f32 0.0, %v1912
      %1914 = vmatmul.f32.gmra.mxu0 %v1803
      %v1915 = vpop.f32.mrf.mxu0
      %v1916 = vadd.f32 0.0, %v1915
      %1917 = vmatmul.f32.gmra.mxu0 %v1806
      %v1918 = vpop.f32.mrf.mxu0
      %v1919 = vadd.f32 0.0, %v1918
      %1920 = vmatmul.f32.gmra.mxu0 %v1809
      %v1921 = vpop.f32.mrf.mxu0
      %v1922 = vadd.f32 0.0, %v1921
      %1923 = vmatmul.f32.gmra.mxu0 %v1812
      %v1924 = vpop.f32.mrf.mxu0
      %v1925 = vadd.f32 0.0, %v1924
      %1926 = vmatmul.f32.gmra.mxu0 %v1815
      %v1927 = vpop.f32.mrf.mxu0
      %v1928 = vadd.f32 0.0, %v1927
      %1929 = vmatmul.f32.gmra.mxu0 %v1818
      %v1930 = vpop.f32.mrf.mxu0
      %v1931 = vadd.f32 0.0, %v1930
      %1932 = vmatmul.f32.gmra.mxu0 %v1821
      %v1933 = vpop.f32.mrf.mxu0
      %v1934 = vadd.f32 0.0, %v1933
      %1935 = vmatmul.f32.gmra.mxu0 %v1824
      %v1936 = vpop.f32.mrf.mxu0
      %v1937 = vadd.f32 0.0, %v1936
      %1938 = vmatmul.f32.gmra.mxu0 %v1827
      %v1939 = vpop.f32.mrf.mxu0
      %v1940 = vadd.f32 0.0, %v1939
      %1941 = vmatmul.f32.gmra.mxu0 %v1830
      %v1942 = vpop.f32.mrf.mxu0
      %v1943 = vadd.f32 0.0, %v1942
      %1944 = vmatmul.f32.gmra.mxu0 %v1833
      %v1945 = vpop.f32.mrf.mxu0
      %v1946 = vadd.f32 0.0, %v1945
      %1947 = vmatmul.f32.gmra.mxu0 %v1836
      %v1948 = vpop.f32.mrf.mxu0
      %v1949 = vadd.f32 0.0, %v1948
      %1950 = vmatmul.f32.gmra.mxu0 %v1839
      %v1951 = vpop.f32.mrf.mxu0
      %v1952 = vadd.f32 0.0, %v1951
      %1953 = vmatmul.f32.gmra.mxu0 %v1842
      %v1954 = vpop.f32.mrf.mxu0
      %v1955 = vadd.f32 0.0, %v1954
      %1956 = vmatmul.f32.gmra.mxu0 %v1845
      %v1957 = vpop.f32.mrf.mxu0
      %v1958 = vadd.f32 0.0, %v1957
      %1959 = vmatmul.f32.gmra.mxu0 %v1848
      %v1960 = vpop.f32.mrf.mxu0
      %v1961 = vadd.f32 0.0, %v1960
      %1962 = vmatmul.f32.gmra.mxu0 %v1851
      %v1963 = vpop.f32.mrf.mxu0
      %v1964 = vadd.f32 0.0, %v1963
      %1965 = vmatmul.f32.gmra.mxu0 %v1854
      %v1966 = vpop.f32.mrf.mxu0
      %v1967 = vadd.f32 0.0, %v1966
      %1968 = vmatmul.f32.gmra.mxu0 %v1857
      %v1969 = vpop.f32.mrf.mxu0
      %v1970 = vadd.f32 0.0, %v1969
      %1971 = vmatmul.f32.gmra.mxu0 %v1860
      %v1972 = vpop.f32.mrf.mxu0
      %v1973 = vadd.f32 0.0, %v1972
      %1974 = vmatmul.f32.gmra.mxu0 %v1863
      %v1975 = vpop.f32.mrf.mxu0
      %v1976 = vadd.f32 0.0, %v1975
      %1977 = vmatmul.f32.gmra.mxu0 %v1866
      %v1978 = vpop.f32.mrf.mxu0
      %v1979 = vadd.f32 0.0, %v1978
      %1980 = vmatmul.f32.gmra.mxu0 %v1869
      %v1981 = vpop.f32.mrf.mxu0
      %v1982 = vadd.f32 0.0, %v1981
      %1983 = vmatmul.f32.gmra.mxu0 %v1872
      %v1984 = vpop.f32.mrf.mxu0
      %v1985 = vadd.f32 0.0, %v1984
      %1986 = vmatmul.f32.gmra.mxu0 %v1875
      %v1987 = vpop.f32.mrf.mxu0
      %v1988 = vadd.f32 0.0, %v1987
      %1989 = vmatmul.f32.gmra.mxu0 %v1878
      %v1990 = vpop.f32.mrf.mxu0
      %v1991 = vadd.f32 0.0, %v1990
      %1992 = vmatmul.f32.gmra.mxu0 %v1881
      %v1993 = vpop.f32.mrf.mxu0
      %v1994 = vadd.f32 0.0, %v1993
      %1995 = vdwg.mxu0
      %v1996 = vadd.f32 %v1687, %v1901
      %v1997 = vadd.f32 %v1688, %v1904
      %v1998 = vadd.f32 %v1689, %v1907
      %v1999 = vadd.f32 %v1690, %v1910
      %v2000 = vadd.f32 %v1691, %v1913
      %v2001 = vadd.f32 %v1692, %v1916
      %v2002 = vadd.f32 %v1693, %v1919
      %v2003 = vadd.f32 %v1694, %v1922
      %v2004 = vadd.f32 %v1695, %v1925
      %v2005 = vadd.f32 %v1696, %v1928
      %v2006 = vadd.f32 %v1697, %v1931
      %v2007 = vadd.f32 %v1698, %v1934
      %v2008 = vadd.f32 %v1699, %v1937
      %v2009 = vadd.f32 %v1700, %v1940
      %v2010 = vadd.f32 %v1701, %v1943
      %v2011 = vadd.f32 %v1702, %v1946
      %v2012 = vadd.f32 %v1703, %v1949
      %v2013 = vadd.f32 %v1704, %v1952
      %v2014 = vadd.f32 %v1705, %v1955
      %v2015 = vadd.f32 %v1706, %v1958
      %v2016 = vadd.f32 %v1707, %v1961
      %v2017 = vadd.f32 %v1708, %v1964
      %v2018 = vadd.f32 %v1709, %v1967
      %v2019 = vadd.f32 %v1710, %v1970
      %v2020 = vadd.f32 %v1711, %v1973
      %v2021 = vadd.f32 %v1712, %v1976
      %v2022 = vadd.f32 %v1713, %v1979
      %v2023 = vadd.f32 %v1714, %v1982
      %v2024 = vadd.f32 %v1715, %v1985
      %v2025 = vadd.f32 %v1716, %v1988
      %v2026 = vadd.f32 %v1717, %v1991
      %v2027 = vadd.f32 %v1718, %v1994
      %v2028 = vld [vmem:[%s273 + $0x18] sm:$0xff]
      %v2029 = vld [vmem:[%s273 + $0x20] sm:$0xff]
      %v2030 = vld [vmem:[%s273 + $0x28] sm:$0xff]
      %v2031 = vld [vmem:[%s273 + $0x30] sm:$0xff]
      %v2032 = vld [vmem:[%s273 + $0x38] sm:$0xff]
      %v2033 = vld [vmem:[%s273 + $0x40] sm:$0xff]
      %v2034 = vld [vmem:[%s273 + $0x48] sm:$0xff]
      %v2035 = vld [vmem:[%s273 + $0x50] sm:$0xff]
      %v2036 = vld [vmem:[%s273 + $0x58] sm:$0xff]
      %v2037 = vld [vmem:[%s273 + $0x60] sm:$0xff]
      %v2038 = vld [vmem:[%s273 + $0x68] sm:$0xff]
      %v2039 = vld [vmem:[%s273 + $0x70] sm:$0xff]
      %v2040 = vld [vmem:[%s273 + $0x78] sm:$0xff]
      %v2041 = vld [vmem:[%s273 + $0x80] sm:$0xff]
      %v2042 = vld [vmem:[%s273 + $0x88] sm:$0xff]
      %v2043 = vld [vmem:[%s273 + $0x90] sm:$0xff]
      %v2044 = vld [vmem:[%s273 + $0x98] sm:$0xff]
      %v2045 = vld [vmem:[%s273 + $0xa0] sm:$0xff]
      %v2046 = vld [vmem:[%s273 + $0xa8] sm:$0xff]
      %v2047 = vld [vmem:[%s273 + $0xb0] sm:$0xff]
      %v2048 = vld [vmem:[%s273 + $0xb8] sm:$0xff]
      %v2049 = vld [vmem:[%s273 + $0xc0] sm:$0xff]
      %v2050 = vld [vmem:[%s273 + $0xc8] sm:$0xff]
      %v2051 = vld [vmem:[%s273 + $0xd0] sm:$0xff]
      %v2052 = vld [vmem:[%s273 + $0xd8] sm:$0xff]
      %v2053 = vld [vmem:[%s273 + $0xe0] sm:$0xff]
      %v2054 = vld [vmem:[%s273 + $0xe8] sm:$0xff]
      %v2055 = vld [vmem:[%s273 + $0xf0] sm:$0xff]
      %v2056 = vld [vmem:[%s273 + $0xf8] sm:$0xff]
      %v2057 = vld [vmem:[%s273 + $0x100] sm:$0xff]
      %v2058 = vld [vmem:[%s273 + $0x108] sm:$0xff]
      %v2059 = vld [vmem:[%s273 + $0x110] sm:$0xff]
      %s2060 = scalar_lea.vmem %s1, 96
      %v2061 = vld [vmem:[%s2060] sm:$0xff]
      %v2062 = vld [vmem:[%s2060 + $0x8] sm:$0xff]
      %v2063 = vld [vmem:[%s2060 + $0x10] sm:$0xff]
      %v2065 = vsel %vm991, %v2028, 0
      %v2068 = vsel %vm991, %v2029, 0
      %v2071 = vsel %vm991, %v2030, 0
      %v2074 = vsel %vm991, %v2031, 0
      %v2077 = vsel %vm991, %v2032, 0
      %v2080 = vsel %vm991, %v2033, 0
      %v2083 = vsel %vm991, %v2034, 0
      %v2086 = vsel %vm991, %v2035, 0
      %v2089 = vsel %vm991, %v2036, 0
      %v2092 = vsel %vm991, %v2037, 0
      %v2095 = vsel %vm991, %v2038, 0
      %v2098 = vsel %vm991, %v2039, 0
      %v2101 = vsel %vm991, %v2040, 0
      %v2104 = vsel %vm991, %v2041, 0
      %v2107 = vsel %vm991, %v2042, 0
      %v2110 = vsel %vm991, %v2043, 0
      %v2113 = vsel %vm991, %v2044, 0
      %v2116 = vsel %vm991, %v2045, 0
      %v2119 = vsel %vm991, %v2046, 0
      %v2122 = vsel %vm991, %v2047, 0
      %v2125 = vsel %vm991, %v2048, 0
      %v2128 = vsel %vm991, %v2049, 0
      %v2131 = vsel %vm991, %v2050, 0
      %v2134 = vsel %vm991, %v2051, 0
      %v2137 = vsel %vm991, %v2052, 0
      %v2140 = vsel %vm991, %v2053, 0
      %v2143 = vsel %vm991, %v2054, 0
      %v2146 = vsel %vm991, %v2055, 0
      %v2149 = vsel %vm991, %v2056, 0
      %v2152 = vsel %vm991, %v2057, 0
      %v2155 = vsel %vm991, %v2058, 0
      %v2158 = vsel %vm991, %v2059, 0
      %2160 = vmatpush.msra.mxu0 0.0
      %2161 = vmatpush.msra.mxu0 0.0
      %2162 = vmatpush.msra.mxu0 0.0
      %2163 = vmatpush.msra.mxu0 0.0
      %2164 = vmatpush.msra.mxu0 0.0
      %2165 = vmatpush.msra.mxu0 0.0
      %2166 = vmatpush.msra.mxu0 0.0
      %2167 = vmatpush.msra.mxu0 0.0
      %2168 = vmatpush.msra.mxu0 0.0
      %2169 = vmatpush.msra.mxu0 0.0
      %2170 = vmatpush.msra.mxu0 0.0
      %2171 = vmatpush.msra.mxu0 0.0
      %2172 = vmatpush.msra.mxu0 0.0
      %2173 = vmatpush.msra.mxu0 %v2063
      %2174 = vmatpush.msra.mxu0 %v2062
      %2175 = vmatpush.msra.mxu0 %v2061
      %2176 = vmatmul.f32.gmra.mxu0 %v2065
      %v2177 = vpop.f32.mrf.mxu0
      %v2178 = vadd.f32 0.0, %v2177
      %2179 = vmatmul.f32.gmra.mxu0 %v2068
      %v2180 = vpop.f32.mrf.mxu0
      %v2181 = vadd.f32 0.0, %v2180
      %2182 = vmatmul.f32.gmra.mxu0 %v2071
      %v2183 = vpop.f32.mrf.mxu0
      %v2184 = vadd.f32 0.0, %v2183
      %2185 = vmatmul.f32.gmra.mxu0 %v2074
      %v2186 = vpop.f32.mrf.mxu0
      %v2187 = vadd.f32 0.0, %v2186
      %2188 = vmatmul.f32.gmra.mxu0 %v2077
      %v2189 = vpop.f32.mrf.mxu0
      %v2190 = vadd.f32 0.0, %v2189
      %2191 = vmatmul.f32.gmra.mxu0 %v2080
      %v2192 = vpop.f32.mrf.mxu0
      %v2193 = vadd.f32 0.0, %v2192
      %2194 = vmatmul.f32.gmra.mxu0 %v2083
      %v2195 = vpop.f32.mrf.mxu0
      %v2196 = vadd.f32 0.0, %v2195
      %2197 = vmatmul.f32.gmra.mxu0 %v2086
      %v2198 = vpop.f32.mrf.mxu0
      %v2199 = vadd.f32 0.0, %v2198
      %2200 = vmatmul.f32.gmra.mxu0 %v2089
      %v2201 = vpop.f32.mrf.mxu0
      %v2202 = vadd.f32 0.0, %v2201
      %2203 = vmatmul.f32.gmra.mxu0 %v2092
      %v2204 = vpop.f32.mrf.mxu0
      %v2205 = vadd.f32 0.0, %v2204
      %2206 = vmatmul.f32.gmra.mxu0 %v2095
      %v2207 = vpop.f32.mrf.mxu0
      %v2208 = vadd.f32 0.0, %v2207
      %2209 = vmatmul.f32.gmra.mxu0 %v2098
      %v2210 = vpop.f32.mrf.mxu0
      %v2211 = vadd.f32 0.0, %v2210
      %2212 = vmatmul.f32.gmra.mxu0 %v2101
      %v2213 = vpop.f32.mrf.mxu0
      %v2214 = vadd.f32 0.0, %v2213
      %2215 = vmatmul.f32.gmra.mxu0 %v2104
      %v2216 = vpop.f32.mrf.mxu0
      %v2217 = vadd.f32 0.0, %v2216
      %2218 = vmatmul.f32.gmra.mxu0 %v2107
      %v2219 = vpop.f32.mrf.mxu0
      %v2220 = vadd.f32 0.0, %v2219
      %2221 = vmatmul.f32.gmra.mxu0 %v2110
      %v2222 = vpop.f32.mrf.mxu0
      %v2223 = vadd.f32 0.0, %v2222
      %2224 = vmatmul.f32.gmra.mxu0 %v2113
      %v2225 = vpop.f32.mrf.mxu0
      %v2226 = vadd.f32 0.0, %v2225
      %2227 = vmatmul.f32.gmra.mxu0 %v2116
      %v2228 = vpop.f32.mrf.mxu0
      %v2229 = vadd.f32 0.0, %v2228
      %2230 = vmatmul.f32.gmra.mxu0 %v2119
      %v2231 = vpop.f32.mrf.mxu0
      %v2232 = vadd.f32 0.0, %v2231
      %2233 = vmatmul.f32.gmra.mxu0 %v2122
      %v2234 = vpop.f32.mrf.mxu0
      %v2235 = vadd.f32 0.0, %v2234
      %2236 = vmatmul.f32.gmra.mxu0 %v2125
      %v2237 = vpop.f32.mrf.mxu0
      %v2238 = vadd.f32 0.0, %v2237
      %2239 = vmatmul.f32.gmra.mxu0 %v2128
      %v2240 = vpop.f32.mrf.mxu0
      %v2241 = vadd.f32 0.0, %v2240
      %2242 = vmatmul.f32.gmra.mxu0 %v2131
      %v2243 = vpop.f32.mrf.mxu0
      %v2244 = vadd.f32 0.0, %v2243
      %2245 = vmatmul.f32.gmra.mxu0 %v2134
      %v2246 = vpop.f32.mrf.mxu0
      %v2247 = vadd.f32 0.0, %v2246
      %2248 = vmatmul.f32.gmra.mxu0 %v2137
      %v2249 = vpop.f32.mrf.mxu0
      %v2250 = vadd.f32 0.0, %v2249
      %2251 = vmatmul.f32.gmra.mxu0 %v2140
      %v2252 = vpop.f32.mrf.mxu0
      %v2253 = vadd.f32 0.0, %v2252
      %2254 = vmatmul.f32.gmra.mxu0 %v2143
      %v2255 = vpop.f32.mrf.mxu0
      %v2256 = vadd.f32 0.0, %v2255
      %2257 = vmatmul.f32.gmra.mxu0 %v2146
      %v2258 = vpop.f32.mrf.mxu0
      %v2259 = vadd.f32 0.0, %v2258
      %2260 = vmatmul.f32.gmra.mxu0 %v2149
      %v2261 = vpop.f32.mrf.mxu0
      %v2262 = vadd.f32 0.0, %v2261
      %2263 = vmatmul.f32.gmra.mxu0 %v2152
      %v2264 = vpop.f32.mrf.mxu0
      %v2265 = vadd.f32 0.0, %v2264
      %2266 = vmatmul.f32.gmra.mxu0 %v2155
      %v2267 = vpop.f32.mrf.mxu0
      %v2268 = vadd.f32 0.0, %v2267
      %2269 = vmatmul.f32.gmra.mxu0 %v2158
      %v2270 = vpop.f32.mrf.mxu0
      %v2271 = vadd.f32 0.0, %v2270
      %2272 = vdwg.mxu0
      %v2273 = vadd.f32 %v1996, %v2178
      %v2274 = vadd.f32 %v1997, %v2181
      %v2275 = vadd.f32 %v1998, %v2184
      %v2276 = vadd.f32 %v1999, %v2187
      %v2277 = vadd.f32 %v2000, %v2190
      %v2278 = vadd.f32 %v2001, %v2193
      %v2279 = vadd.f32 %v2002, %v2196
      %v2280 = vadd.f32 %v2003, %v2199
      %v2281 = vadd.f32 %v2004, %v2202
      %v2282 = vadd.f32 %v2005, %v2205
      %v2283 = vadd.f32 %v2006, %v2208
      %v2284 = vadd.f32 %v2007, %v2211
      %v2285 = vadd.f32 %v2008, %v2214
      %v2286 = vadd.f32 %v2009, %v2217
      %v2287 = vadd.f32 %v2010, %v2220
      %v2288 = vadd.f32 %v2011, %v2223
      %v2289 = vadd.f32 %v2012, %v2226
      %v2290 = vadd.f32 %v2013, %v2229
      %v2291 = vadd.f32 %v2014, %v2232
      %v2292 = vadd.f32 %v2015, %v2235
      %v2293 = vadd.f32 %v2016, %v2238
      %v2294 = vadd.f32 %v2017, %v2241
      %v2295 = vadd.f32 %v2018, %v2244
      %v2296 = vadd.f32 %v2019, %v2247
      %v2297 = vadd.f32 %v2020, %v2250
      %v2298 = vadd.f32 %v2021, %v2253
      %v2299 = vadd.f32 %v2022, %v2256
      %v2300 = vadd.f32 %v2023, %v2259
      %v2301 = vadd.f32 %v2024, %v2262
      %v2302 = vadd.f32 %v2025, %v2265
      %v2303 = vadd.f32 %v2026, %v2268
      %v2304 = vadd.f32 %v2027, %v2271
      %v2305 = vld [vmem:[%s273 + $0x19] sm:$0xff]
      %v2306 = vld [vmem:[%s273 + $0x21] sm:$0xff]
      %v2307 = vld [vmem:[%s273 + $0x29] sm:$0xff]
      %v2308 = vld [vmem:[%s273 + $0x31] sm:$0xff]
      %v2309 = vld [vmem:[%s273 + $0x39] sm:$0xff]
      %v2310 = vld [vmem:[%s273 + $0x41] sm:$0xff]
      %v2311 = vld [vmem:[%s273 + $0x49] sm:$0xff]
      %v2312 = vld [vmem:[%s273 + $0x51] sm:$0xff]
      %v2313 = vld [vmem:[%s273 + $0x59] sm:$0xff]
      %v2314 = vld [vmem:[%s273 + $0x61] sm:$0xff]
      %v2315 = vld [vmem:[%s273 + $0x69] sm:$0xff]
      %v2316 = vld [vmem:[%s273 + $0x71] sm:$0xff]
      %v2317 = vld [vmem:[%s273 + $0x79] sm:$0xff]
      %v2318 = vld [vmem:[%s273 + $0x81] sm:$0xff]
      %v2319 = vld [vmem:[%s273 + $0x89] sm:$0xff]
      %v2320 = vld [vmem:[%s273 + $0x91] sm:$0xff]
      %v2321 = vld [vmem:[%s273 + $0x99] sm:$0xff]
      %v2322 = vld [vmem:[%s273 + $0xa1] sm:$0xff]
      %v2323 = vld [vmem:[%s273 + $0xa9] sm:$0xff]
      %v2324 = vld [vmem:[%s273 + $0xb1] sm:$0xff]
      %v2325 = vld [vmem:[%s273 + $0xb9] sm:$0xff]
      %v2326 = vld [vmem:[%s273 + $0xc1] sm:$0xff]
      %v2327 = vld [vmem:[%s273 + $0xc9] sm:$0xff]
      %v2328 = vld [vmem:[%s273 + $0xd1] sm:$0xff]
      %v2329 = vld [vmem:[%s273 + $0xd9] sm:$0xff]
      %v2330 = vld [vmem:[%s273 + $0xe1] sm:$0xff]
      %v2331 = vld [vmem:[%s273 + $0xe9] sm:$0xff]
      %v2332 = vld [vmem:[%s273 + $0xf1] sm:$0xff]
      %v2333 = vld [vmem:[%s273 + $0xf9] sm:$0xff]
      %v2334 = vld [vmem:[%s273 + $0x101] sm:$0xff]
      %v2335 = vld [vmem:[%s273 + $0x109] sm:$0xff]
      %v2336 = vld [vmem:[%s273 + $0x111] sm:$0xff]
      %v2337 = vmul.f32 %v2305, %v856
      %v2338 = vmul.f32 %v2306, %v857
      %v2339 = vmul.f32 %v2307, %v858
      %v2340 = vmul.f32 %v2308, %v859
      %v2341 = vmul.f32 %v2309, %v860
      %v2342 = vmul.f32 %v2310, %v861
      %v2343 = vmul.f32 %v2311, %v862
      %v2344 = vmul.f32 %v2312, %v863
      %v2345 = vmul.f32 %v2313, %v864
      %v2346 = vmul.f32 %v2314, %v865
      %v2347 = vmul.f32 %v2315, %v866
      %v2348 = vmul.f32 %v2316, %v867
      %v2349 = vmul.f32 %v2317, %v868
      %v2350 = vmul.f32 %v2318, %v869
      %v2351 = vmul.f32 %v2319, %v870
      %v2352 = vmul.f32 %v2320, %v871
      %v2353 = vmul.f32 %v2321, %v872
      %v2354 = vmul.f32 %v2322, %v873
      %v2355 = vmul.f32 %v2323, %v874
      %v2356 = vmul.f32 %v2324, %v875
      %v2357 = vmul.f32 %v2325, %v876
      %v2358 = vmul.f32 %v2326, %v877
      %v2359 = vmul.f32 %v2327, %v878
      %v2360 = vmul.f32 %v2328, %v879
      %v2361 = vmul.f32 %v2329, %v880
      %v2362 = vmul.f32 %v2330, %v881
      %v2363 = vmul.f32 %v2331, %v882
      %v2364 = vmul.f32 %v2332, %v883
      %v2365 = vmul.f32 %v2333, %v884
      %v2366 = vmul.f32 %v2334, %v885
      %v2367 = vmul.f32 %v2335, %v886
      %v2368 = vmul.f32 %v2336, %v887
      %s2369 = scalar_lea.vmem %s1, 120
      %v2370 = vld [vmem:[%s2369] sm:$0xff]
      %v2371 = vld [vmem:[%s2369 + $0x8] sm:$0xff]
      %v2372 = vld [vmem:[%s2369 + $0x10] sm:$0xff]
      %v2374 = vsel %vm991, %v2337, 0
      %v2377 = vsel %vm991, %v2338, 0
      %v2380 = vsel %vm991, %v2339, 0
      %v2383 = vsel %vm991, %v2340, 0
      %v2386 = vsel %vm991, %v2341, 0
      %v2389 = vsel %vm991, %v2342, 0
      %v2392 = vsel %vm991, %v2343, 0
      %v2395 = vsel %vm991, %v2344, 0
      %v2398 = vsel %vm991, %v2345, 0
      %v2401 = vsel %vm991, %v2346, 0
      %v2404 = vsel %vm991, %v2347, 0
      %v2407 = vsel %vm991, %v2348, 0
      %v2410 = vsel %vm991, %v2349, 0
      %v2413 = vsel %vm991, %v2350, 0
      %v2416 = vsel %vm991, %v2351, 0
      %v2419 = vsel %vm991, %v2352, 0
      %v2422 = vsel %vm991, %v2353, 0
      %v2425 = vsel %vm991, %v2354, 0
      %v2428 = vsel %vm991, %v2355, 0
      %v2431 = vsel %vm991, %v2356, 0
      %v2434 = vsel %vm991, %v2357, 0
      %v2437 = vsel %vm991, %v2358, 0
      %v2440 = vsel %vm991, %v2359, 0
      %v2443 = vsel %vm991, %v2360, 0
      %v2446 = vsel %vm991, %v2361, 0
      %v2449 = vsel %vm991, %v2362, 0
      %v2452 = vsel %vm991, %v2363, 0
      %v2455 = vsel %vm991, %v2364, 0
      %v2458 = vsel %vm991, %v2365, 0
      %v2461 = vsel %vm991, %v2366, 0
      %v2464 = vsel %vm991, %v2367, 0
      %v2467 = vsel %vm991, %v2368, 0
      %2469 = vmatpush.msra.mxu0 0.0
      %2470 = vmatpush.msra.mxu0 0.0
      %2471 = vmatpush.msra.mxu0 0.0
      %2472 = vmatpush.msra.mxu0 0.0
      %2473 = vmatpush.msra.mxu0 0.0
      %2474 = vmatpush.msra.mxu0 0.0
      %2475 = vmatpush.msra.mxu0 0.0
      %2476 = vmatpush.msra.mxu0 0.0
      %2477 = vmatpush.msra.mxu0 0.0
      %2478 = vmatpush.msra.mxu0 0.0
      %2479 = vmatpush.msra.mxu0 0.0
      %2480 = vmatpush.msra.mxu0 0.0
      %2481 = vmatpush.msra.mxu0 0.0
      %2482 = vmatpush.msra.mxu0 %v2372
      %2483 = vmatpush.msra.mxu0 %v2371
      %2484 = vmatpush.msra.mxu0 %v2370
      %2485 = vmatmul.f32.gmra.mxu0 %v2374
      %v2486 = vpop.f32.mrf.mxu0
      %v2487 = vadd.f32 0.0, %v2486
      %2488 = vmatmul.f32.gmra.mxu0 %v2377
      %v2489 = vpop.f32.mrf.mxu0
      %v2490 = vadd.f32 0.0, %v2489
      %2491 = vmatmul.f32.gmra.mxu0 %v2380
      %v2492 = vpop.f32.mrf.mxu0
      %v2493 = vadd.f32 0.0, %v2492
      %2494 = vmatmul.f32.gmra.mxu0 %v2383
      %v2495 = vpop.f32.mrf.mxu0
      %v2496 = vadd.f32 0.0, %v2495
      %2497 = vmatmul.f32.gmra.mxu0 %v2386
      %v2498 = vpop.f32.mrf.mxu0
      %v2499 = vadd.f32 0.0, %v2498
      %2500 = vmatmul.f32.gmra.mxu0 %v2389
      %v2501 = vpop.f32.mrf.mxu0
      %v2502 = vadd.f32 0.0, %v2501
      %2503 = vmatmul.f32.gmra.mxu0 %v2392
      %v2504 = vpop.f32.mrf.mxu0
      %v2505 = vadd.f32 0.0, %v2504
      %2506 = vmatmul.f32.gmra.mxu0 %v2395
      %v2507 = vpop.f32.mrf.mxu0
      %v2508 = vadd.f32 0.0, %v2507
      %2509 = vmatmul.f32.gmra.mxu0 %v2398
      %v2510 = vpop.f32.mrf.mxu0
      %v2511 = vadd.f32 0.0, %v2510
      %2512 = vmatmul.f32.gmra.mxu0 %v2401
      %v2513 = vpop.f32.mrf.mxu0
      %v2514 = vadd.f32 0.0, %v2513
      %2515 = vmatmul.f32.gmra.mxu0 %v2404
      %v2516 = vpop.f32.mrf.mxu0
      %v2517 = vadd.f32 0.0, %v2516
      %2518 = vmatmul.f32.gmra.mxu0 %v2407
      %v2519 = vpop.f32.mrf.mxu0
      %v2520 = vadd.f32 0.0, %v2519
      %2521 = vmatmul.f32.gmra.mxu0 %v2410
      %v2522 = vpop.f32.mrf.mxu0
      %v2523 = vadd.f32 0.0, %v2522
      %2524 = vmatmul.f32.gmra.mxu0 %v2413
      %v2525 = vpop.f32.mrf.mxu0
      %v2526 = vadd.f32 0.0, %v2525
      %2527 = vmatmul.f32.gmra.mxu0 %v2416
      %v2528 = vpop.f32.mrf.mxu0
      %v2529 = vadd.f32 0.0, %v2528
      %2530 = vmatmul.f32.gmra.mxu0 %v2419
      %v2531 = vpop.f32.mrf.mxu0
      %v2532 = vadd.f32 0.0, %v2531
      %2533 = vmatmul.f32.gmra.mxu0 %v2422
      %v2534 = vpop.f32.mrf.mxu0
      %v2535 = vadd.f32 0.0, %v2534
      %2536 = vmatmul.f32.gmra.mxu0 %v2425
      %v2537 = vpop.f32.mrf.mxu0
      %v2538 = vadd.f32 0.0, %v2537
      %2539 = vmatmul.f32.gmra.mxu0 %v2428
      %v2540 = vpop.f32.mrf.mxu0
      %v2541 = vadd.f32 0.0, %v2540
      %2542 = vmatmul.f32.gmra.mxu0 %v2431
      %v2543 = vpop.f32.mrf.mxu0
      %v2544 = vadd.f32 0.0, %v2543
      %2545 = vmatmul.f32.gmra.mxu0 %v2434
      %v2546 = vpop.f32.mrf.mxu0
      %v2547 = vadd.f32 0.0, %v2546
      %2548 = vmatmul.f32.gmra.mxu0 %v2437
      %v2549 = vpop.f32.mrf.mxu0
      %v2550 = vadd.f32 0.0, %v2549
      %2551 = vmatmul.f32.gmra.mxu0 %v2440
      %v2552 = vpop.f32.mrf.mxu0
      %v2553 = vadd.f32 0.0, %v2552
      %2554 = vmatmul.f32.gmra.mxu0 %v2443
      %v2555 = vpop.f32.mrf.mxu0
      %v2556 = vadd.f32 0.0, %v2555
      %2557 = vmatmul.f32.gmra.mxu0 %v2446
      %v2558 = vpop.f32.mrf.mxu0
      %v2559 = vadd.f32 0.0, %v2558
      %2560 = vmatmul.f32.gmra.mxu0 %v2449
      %v2561 = vpop.f32.mrf.mxu0
      %v2562 = vadd.f32 0.0, %v2561
      %2563 = vmatmul.f32.gmra.mxu0 %v2452
      %v2564 = vpop.f32.mrf.mxu0
      %v2565 = vadd.f32 0.0, %v2564
      %2566 = vmatmul.f32.gmra.mxu0 %v2455
      %v2567 = vpop.f32.mrf.mxu0
      %v2568 = vadd.f32 0.0, %v2567
      %2569 = vmatmul.f32.gmra.mxu0 %v2458
      %v2570 = vpop.f32.mrf.mxu0
      %v2571 = vadd.f32 0.0, %v2570
      %2572 = vmatmul.f32.gmra.mxu0 %v2461
      %v2573 = vpop.f32.mrf.mxu0
      %v2574 = vadd.f32 0.0, %v2573
      %2575 = vmatmul.f32.gmra.mxu0 %v2464
      %v2576 = vpop.f32.mrf.mxu0
      %v2577 = vadd.f32 0.0, %v2576
      %2578 = vmatmul.f32.gmra.mxu0 %v2467
      %v2579 = vpop.f32.mrf.mxu0
      %v2580 = vadd.f32 0.0, %v2579
      %2581 = vdwg.mxu0
      %v2582 = vadd.f32 %v2273, %v2487
      %v2583 = vadd.f32 %v2274, %v2490
      %v2584 = vadd.f32 %v2275, %v2493
      %v2585 = vadd.f32 %v2276, %v2496
      %v2586 = vadd.f32 %v2277, %v2499
      %v2587 = vadd.f32 %v2278, %v2502
      %v2588 = vadd.f32 %v2279, %v2505
      %v2589 = vadd.f32 %v2280, %v2508
      %v2590 = vadd.f32 %v2281, %v2511
      %v2591 = vadd.f32 %v2282, %v2514
      %v2592 = vadd.f32 %v2283, %v2517
      %v2593 = vadd.f32 %v2284, %v2520
      %v2594 = vadd.f32 %v2285, %v2523
      %v2595 = vadd.f32 %v2286, %v2526
      %v2596 = vadd.f32 %v2287, %v2529
      %v2597 = vadd.f32 %v2288, %v2532
      %v2598 = vadd.f32 %v2289, %v2535
      %v2599 = vadd.f32 %v2290, %v2538
      %v2600 = vadd.f32 %v2291, %v2541
      %v2601 = vadd.f32 %v2292, %v2544
      %v2602 = vadd.f32 %v2293, %v2547
      %v2603 = vadd.f32 %v2294, %v2550
      %v2604 = vadd.f32 %v2295, %v2553
      %v2605 = vadd.f32 %v2296, %v2556
      %v2606 = vadd.f32 %v2297, %v2559
      %v2607 = vadd.f32 %v2298, %v2562
      %v2608 = vadd.f32 %v2299, %v2565
      %v2609 = vadd.f32 %v2300, %v2568
      %v2610 = vadd.f32 %v2301, %v2571
      %v2611 = vadd.f32 %v2302, %v2574
      %v2612 = vadd.f32 %v2303, %v2577
      %v2613 = vadd.f32 %v2304, %v2580
      %v2614 = vld [vmem:[%s273 + $0x27] sm:$0xff]
      %v2615 = vld [vmem:[%s273 + $0x2f] sm:$0xff]
      %v2616 = vld [vmem:[%s273 + $0x37] sm:$0xff]
      %v2617 = vld [vmem:[%s273 + $0x3f] sm:$0xff]
      %v2618 = vld [vmem:[%s273 + $0x47] sm:$0xff]
      %v2619 = vld [vmem:[%s273 + $0x4f] sm:$0xff]
      %v2620 = vld [vmem:[%s273 + $0x57] sm:$0xff]
      %v2621 = vld [vmem:[%s273 + $0x5f] sm:$0xff]
      %v2622 = vld [vmem:[%s273 + $0x67] sm:$0xff]
      %v2623 = vld [vmem:[%s273 + $0x6f] sm:$0xff]
      %v2624 = vld [vmem:[%s273 + $0x77] sm:$0xff]
      %v2625 = vld [vmem:[%s273 + $0x7f] sm:$0xff]
      %v2626 = vld [vmem:[%s273 + $0x87] sm:$0xff]
      %v2627 = vld [vmem:[%s273 + $0x8f] sm:$0xff]
      %v2628 = vld [vmem:[%s273 + $0x97] sm:$0xff]
      %v2629 = vld [vmem:[%s273 + $0x9f] sm:$0xff]
      %v2630 = vld [vmem:[%s273 + $0xa7] sm:$0xff]
      %v2631 = vld [vmem:[%s273 + $0xaf] sm:$0xff]
      %v2632 = vld [vmem:[%s273 + $0xb7] sm:$0xff]
      %v2633 = vld [vmem:[%s273 + $0xbf] sm:$0xff]
      %v2634 = vld [vmem:[%s273 + $0xc7] sm:$0xff]
      %v2635 = vld [vmem:[%s273 + $0xcf] sm:$0xff]
      %v2636 = vld [vmem:[%s273 + $0xd7] sm:$0xff]
      %v2637 = vld [vmem:[%s273 + $0xdf] sm:$0xff]
      %v2638 = vld [vmem:[%s273 + $0xe7] sm:$0xff]
      %v2639 = vld [vmem:[%s273 + $0xef] sm:$0xff]
      %v2640 = vld [vmem:[%s273 + $0xf7] sm:$0xff]
      %v2641 = vld [vmem:[%s273 + $0xff] sm:$0xff]
      %v2642 = vld [vmem:[%s273 + $0x107] sm:$0xff]
      %v2643 = vld [vmem:[%s273 + $0x10f] sm:$0xff]
      %v2644 = vld [vmem:[%s273 + $0x117] sm:$0xff]
      %v2645 = vld [vmem:[%s273 + $0x11f] sm:$0xff]
      %v2646 = vmul.f32 %v2614, %v760
      %v2647 = vmul.f32 %v2615, %v761
      %v2648 = vmul.f32 %v2616, %v762
      %v2649 = vmul.f32 %v2617, %v763
      %v2650 = vmul.f32 %v2618, %v764
      %v2651 = vmul.f32 %v2619, %v765
      %v2652 = vmul.f32 %v2620, %v766
      %v2653 = vmul.f32 %v2621, %v767
      %v2654 = vmul.f32 %v2622, %v768
      %v2655 = vmul.f32 %v2623, %v769
      %v2656 = vmul.f32 %v2624, %v770
      %v2657 = vmul.f32 %v2625, %v771
      %v2658 = vmul.f32 %v2626, %v772
      %v2659 = vmul.f32 %v2627, %v773
      %v2660 = vmul.f32 %v2628, %v774
      %v2661 = vmul.f32 %v2629, %v775
      %v2662 = vmul.f32 %v2630, %v776
      %v2663 = vmul.f32 %v2631, %v777
      %v2664 = vmul.f32 %v2632, %v778
      %v2665 = vmul.f32 %v2633, %v779
      %v2666 = vmul.f32 %v2634, %v780
      %v2667 = vmul.f32 %v2635, %v781
      %v2668 = vmul.f32 %v2636, %v782
      %v2669 = vmul.f32 %v2637, %v783
      %v2670 = vmul.f32 %v2638, %v784
      %v2671 = vmul.f32 %v2639, %v785
      %v2672 = vmul.f32 %v2640, %v786
      %v2673 = vmul.f32 %v2641, %v787
      %v2674 = vmul.f32 %v2642, %v788
      %v2675 = vmul.f32 %v2643, %v789
      %v2676 = vmul.f32 %v2644, %v790
      %v2677 = vmul.f32 %v2645, %v791
      %s2678 = scalar_lea.vmem %s1, 144
      %v2679 = vld [vmem:[%s2678] sm:$0xff]
      %v2680 = vld [vmem:[%s2678 + $0x8] sm:$0xff]
      %v2681 = vld [vmem:[%s2678 + $0x10] sm:$0xff]
      %v2683 = vsel %vm991, %v2646, 0
      %v2686 = vsel %vm991, %v2647, 0
      %v2689 = vsel %vm991, %v2648, 0
      %v2692 = vsel %vm991, %v2649, 0
      %v2695 = vsel %vm991, %v2650, 0
      %v2698 = vsel %vm991, %v2651, 0
      %v2701 = vsel %vm991, %v2652, 0
      %v2704 = vsel %vm991, %v2653, 0
      %v2707 = vsel %vm991, %v2654, 0
      %v2710 = vsel %vm991, %v2655, 0
      %v2713 = vsel %vm991, %v2656, 0
      %v2716 = vsel %vm991, %v2657, 0
      %v2719 = vsel %vm991, %v2658, 0
      %v2722 = vsel %vm991, %v2659, 0
      %v2725 = vsel %vm991, %v2660, 0
      %v2728 = vsel %vm991, %v2661, 0
      %v2731 = vsel %vm991, %v2662, 0
      %v2734 = vsel %vm991, %v2663, 0
      %v2737 = vsel %vm991, %v2664, 0
      %v2740 = vsel %vm991, %v2665, 0
      %v2743 = vsel %vm991, %v2666, 0
      %v2746 = vsel %vm991, %v2667, 0
      %v2749 = vsel %vm991, %v2668, 0
      %v2752 = vsel %vm991, %v2669, 0
      %v2755 = vsel %vm991, %v2670, 0
      %v2758 = vsel %vm991, %v2671, 0
      %v2761 = vsel %vm991, %v2672, 0
      %v2764 = vsel %vm991, %v2673, 0
      %v2767 = vsel %vm991, %v2674, 0
      %v2770 = vsel %vm991, %v2675, 0
      %v2773 = vsel %vm991, %v2676, 0
      %v2776 = vsel %vm991, %v2677, 0
      %2778 = vmatpush.msra.mxu0 0.0
      %2779 = vmatpush.msra.mxu0 0.0
      %2780 = vmatpush.msra.mxu0 0.0
      %2781 = vmatpush.msra.mxu0 0.0
      %2782 = vmatpush.msra.mxu0 0.0
      %2783 = vmatpush.msra.mxu0 0.0
      %2784 = vmatpush.msra.mxu0 0.0
      %2785 = vmatpush.msra.mxu0 0.0
      %2786 = vmatpush.msra.mxu0 0.0
      %2787 = vmatpush.msra.mxu0 0.0
      %2788 = vmatpush.msra.mxu0 0.0
      %2789 = vmatpush.msra.mxu0 0.0
      %2790 = vmatpush.msra.mxu0 0.0
      %2791 = vmatpush.msra.mxu0 %v2681
      %2792 = vmatpush.msra.mxu0 %v2680
      %2793 = vmatpush.msra.mxu0 %v2679
      %2794 = vmatmul.f32.gmra.mxu0 %v2683
      %v2795 = vpop.f32.mrf.mxu0
      %v2796 = vadd.f32 0.0, %v2795
      %2797 = vmatmul.f32.gmra.mxu0 %v2686
      %v2798 = vpop.f32.mrf.mxu0
      %v2799 = vadd.f32 0.0, %v2798
      %2800 = vmatmul.f32.gmra.mxu0 %v2689
      %v2801 = vpop.f32.mrf.mxu0
      %v2802 = vadd.f32 0.0, %v2801
      %2803 = vmatmul.f32.gmra.mxu0 %v2692
      %v2804 = vpop.f32.mrf.mxu0
      %v2805 = vadd.f32 0.0, %v2804
      %2806 = vmatmul.f32.gmra.mxu0 %v2695
      %v2807 = vpop.f32.mrf.mxu0
      %v2808 = vadd.f32 0.0, %v2807
      %2809 = vmatmul.f32.gmra.mxu0 %v2698
      %v2810 = vpop.f32.mrf.mxu0
      %v2811 = vadd.f32 0.0, %v2810
      %2812 = vmatmul.f32.gmra.mxu0 %v2701
      %v2813 = vpop.f32.mrf.mxu0
      %v2814 = vadd.f32 0.0, %v2813
      %2815 = vmatmul.f32.gmra.mxu0 %v2704
      %v2816 = vpop.f32.mrf.mxu0
      %v2817 = vadd.f32 0.0, %v2816
      %2818 = vmatmul.f32.gmra.mxu0 %v2707
      %v2819 = vpop.f32.mrf.mxu0
      %v2820 = vadd.f32 0.0, %v2819
      %2821 = vmatmul.f32.gmra.mxu0 %v2710
      %v2822 = vpop.f32.mrf.mxu0
      %v2823 = vadd.f32 0.0, %v2822
      %2824 = vmatmul.f32.gmra.mxu0 %v2713
      %v2825 = vpop.f32.mrf.mxu0
      %v2826 = vadd.f32 0.0, %v2825
      %2827 = vmatmul.f32.gmra.mxu0 %v2716
      %v2828 = vpop.f32.mrf.mxu0
      %v2829 = vadd.f32 0.0, %v2828
      %2830 = vmatmul.f32.gmra.mxu0 %v2719
      %v2831 = vpop.f32.mrf.mxu0
      %v2832 = vadd.f32 0.0, %v2831
      %2833 = vmatmul.f32.gmra.mxu0 %v2722
      %v2834 = vpop.f32.mrf.mxu0
      %v2835 = vadd.f32 0.0, %v2834
      %2836 = vmatmul.f32.gmra.mxu0 %v2725
      %v2837 = vpop.f32.mrf.mxu0
      %v2838 = vadd.f32 0.0, %v2837
      %2839 = vmatmul.f32.gmra.mxu0 %v2728
      %v2840 = vpop.f32.mrf.mxu0
      %v2841 = vadd.f32 0.0, %v2840
      %2842 = vmatmul.f32.gmra.mxu0 %v2731
      %v2843 = vpop.f32.mrf.mxu0
      %v2844 = vadd.f32 0.0, %v2843
      %2845 = vmatmul.f32.gmra.mxu0 %v2734
      %v2846 = vpop.f32.mrf.mxu0
      %v2847 = vadd.f32 0.0, %v2846
      %2848 = vmatmul.f32.gmra.mxu0 %v2737
      %v2849 = vpop.f32.mrf.mxu0
      %v2850 = vadd.f32 0.0, %v2849
      %2851 = vmatmul.f32.gmra.mxu0 %v2740
      %v2852 = vpop.f32.mrf.mxu0
      %v2853 = vadd.f32 0.0, %v2852
      %2854 = vmatmul.f32.gmra.mxu0 %v2743
      %v2855 = vpop.f32.mrf.mxu0
      %v2856 = vadd.f32 0.0, %v2855
      %2857 = vmatmul.f32.gmra.mxu0 %v2746
      %v2858 = vpop.f32.mrf.mxu0
      %v2859 = vadd.f32 0.0, %v2858
      %2860 = vmatmul.f32.gmra.mxu0 %v2749
      %v2861 = vpop.f32.mrf.mxu0
      %v2862 = vadd.f32 0.0, %v2861
      %2863 = vmatmul.f32.gmra.mxu0 %v2752
      %v2864 = vpop.f32.mrf.mxu0
      %v2865 = vadd.f32 0.0, %v2864
      %2866 = vmatmul.f32.gmra.mxu0 %v2755
      %v2867 = vpop.f32.mrf.mxu0
      %v2868 = vadd.f32 0.0, %v2867
      %2869 = vmatmul.f32.gmra.mxu0 %v2758
      %v2870 = vpop.f32.mrf.mxu0
      %v2871 = vadd.f32 0.0, %v2870
      %2872 = vmatmul.f32.gmra.mxu0 %v2761
      %v2873 = vpop.f32.mrf.mxu0
      %v2874 = vadd.f32 0.0, %v2873
      %2875 = vmatmul.f32.gmra.mxu0 %v2764
      %v2876 = vpop.f32.mrf.mxu0
      %v2877 = vadd.f32 0.0, %v2876
      %2878 = vmatmul.f32.gmra.mxu0 %v2767
      %v2879 = vpop.f32.mrf.mxu0
      %v2880 = vadd.f32 0.0, %v2879
      %2881 = vmatmul.f32.gmra.mxu0 %v2770
      %v2882 = vpop.f32.mrf.mxu0
      %v2883 = vadd.f32 0.0, %v2882
      %2884 = vmatmul.f32.gmra.mxu0 %v2773
      %v2885 = vpop.f32.mrf.mxu0
      %v2886 = vadd.f32 0.0, %v2885
      %2887 = vmatmul.f32.gmra.mxu0 %v2776
      %v2888 = vpop.f32.mrf.mxu0
      %v2889 = vadd.f32 0.0, %v2888
      %2890 = vdwg.mxu0
      %v2891 = vadd.f32 %v2582, %v2796
      %v2892 = vadd.f32 %v2583, %v2799
      %v2893 = vadd.f32 %v2584, %v2802
      %v2894 = vadd.f32 %v2585, %v2805
      %v2895 = vadd.f32 %v2586, %v2808
      %v2896 = vadd.f32 %v2587, %v2811
      %v2897 = vadd.f32 %v2588, %v2814
      %v2898 = vadd.f32 %v2589, %v2817
      %v2899 = vadd.f32 %v2590, %v2820
      %v2900 = vadd.f32 %v2591, %v2823
      %v2901 = vadd.f32 %v2592, %v2826
      %v2902 = vadd.f32 %v2593, %v2829
      %v2903 = vadd.f32 %v2594, %v2832
      %v2904 = vadd.f32 %v2595, %v2835
      %v2905 = vadd.f32 %v2596, %v2838
      %v2906 = vadd.f32 %v2597, %v2841
      %v2907 = vadd.f32 %v2598, %v2844
      %v2908 = vadd.f32 %v2599, %v2847
      %v2909 = vadd.f32 %v2600, %v2850
      %v2910 = vadd.f32 %v2601, %v2853
      %v2911 = vadd.f32 %v2602, %v2856
      %v2912 = vadd.f32 %v2603, %v2859
      %v2913 = vadd.f32 %v2604, %v2862
      %v2914 = vadd.f32 %v2605, %v2865
      %v2915 = vadd.f32 %v2606, %v2868
      %v2916 = vadd.f32 %v2607, %v2871
      %v2917 = vadd.f32 %v2608, %v2874
      %v2918 = vadd.f32 %v2609, %v2877
      %v2919 = vadd.f32 %v2610, %v2880
      %v2920 = vadd.f32 %v2611, %v2883
      %v2921 = vadd.f32 %v2612, %v2886
      %v2922 = vadd.f32 %v2613, %v2889
      %v2923 = vld [vmem:[%s273 + $0x28] sm:$0xff]
      %v2924 = vld [vmem:[%s273 + $0x30] sm:$0xff]
      %v2925 = vld [vmem:[%s273 + $0x38] sm:$0xff]
      %v2926 = vld [vmem:[%s273 + $0x40] sm:$0xff]
      %v2927 = vld [vmem:[%s273 + $0x48] sm:$0xff]
      %v2928 = vld [vmem:[%s273 + $0x50] sm:$0xff]
      %v2929 = vld [vmem:[%s273 + $0x58] sm:$0xff]
      %v2930 = vld [vmem:[%s273 + $0x60] sm:$0xff]
      %v2931 = vld [vmem:[%s273 + $0x68] sm:$0xff]
      %v2932 = vld [vmem:[%s273 + $0x70] sm:$0xff]
      %v2933 = vld [vmem:[%s273 + $0x78] sm:$0xff]
      %v2934 = vld [vmem:[%s273 + $0x80] sm:$0xff]
      %v2935 = vld [vmem:[%s273 + $0x88] sm:$0xff]
      %v2936 = vld [vmem:[%s273 + $0x90] sm:$0xff]
      %v2937 = vld [vmem:[%s273 + $0x98] sm:$0xff]
      %v2938 = vld [vmem:[%s273 + $0xa0] sm:$0xff]
      %v2939 = vld [vmem:[%s273 + $0xa8] sm:$0xff]
      %v2940 = vld [vmem:[%s273 + $0xb0] sm:$0xff]
      %v2941 = vld [vmem:[%s273 + $0xb8] sm:$0xff]
      %v2942 = vld [vmem:[%s273 + $0xc0] sm:$0xff]
      %v2943 = vld [vmem:[%s273 + $0xc8] sm:$0xff]
      %v2944 = vld [vmem:[%s273 + $0xd0] sm:$0xff]
      %v2945 = vld [vmem:[%s273 + $0xd8] sm:$0xff]
      %v2946 = vld [vmem:[%s273 + $0xe0] sm:$0xff]
      %v2947 = vld [vmem:[%s273 + $0xe8] sm:$0xff]
      %v2948 = vld [vmem:[%s273 + $0xf0] sm:$0xff]
      %v2949 = vld [vmem:[%s273 + $0xf8] sm:$0xff]
      %v2950 = vld [vmem:[%s273 + $0x100] sm:$0xff]
      %v2951 = vld [vmem:[%s273 + $0x108] sm:$0xff]
      %v2952 = vld [vmem:[%s273 + $0x110] sm:$0xff]
      %v2953 = vld [vmem:[%s273 + $0x118] sm:$0xff]
      %v2954 = vld [vmem:[%s273 + $0x120] sm:$0xff]
      %s2955 = scalar_lea.vmem %s1, 168
      %v2956 = vld [vmem:[%s2955] sm:$0xff]
      %v2957 = vld [vmem:[%s2955 + $0x8] sm:$0xff]
      %v2958 = vld [vmem:[%s2955 + $0x10] sm:$0xff]
      %v2960 = vsel %vm991, %v2923, 0
      %v2963 = vsel %vm991, %v2924, 0
      %v2966 = vsel %vm991, %v2925, 0
      %v2969 = vsel %vm991, %v2926, 0
      %v2972 = vsel %vm991, %v2927, 0
      %v2975 = vsel %vm991, %v2928, 0
      %v2978 = vsel %vm991, %v2929, 0
      %v2981 = vsel %vm991, %v2930, 0
      %v2984 = vsel %vm991, %v2931, 0
      %v2987 = vsel %vm991, %v2932, 0
      %v2990 = vsel %vm991, %v2933, 0
      %v2993 = vsel %vm991, %v2934, 0
      %v2996 = vsel %vm991, %v2935, 0
      %v2999 = vsel %vm991, %v2936, 0
      %v3002 = vsel %vm991, %v2937, 0
      %v3005 = vsel %vm991, %v2938, 0
      %v3008 = vsel %vm991, %v2939, 0
      %v3011 = vsel %vm991, %v2940, 0
      %v3014 = vsel %vm991, %v2941, 0
      %v3017 = vsel %vm991, %v2942, 0
      %v3020 = vsel %vm991, %v2943, 0
      %v3023 = vsel %vm991, %v2944, 0
      %v3026 = vsel %vm991, %v2945, 0
      %v3029 = vsel %vm991, %v2946, 0
      %v3032 = vsel %vm991, %v2947, 0
      %v3035 = vsel %vm991, %v2948, 0
      %v3038 = vsel %vm991, %v2949, 0
      %v3041 = vsel %vm991, %v2950, 0
      %v3044 = vsel %vm991, %v2951, 0
      %v3047 = vsel %vm991, %v2952, 0
      %v3050 = vsel %vm991, %v2953, 0
      %v3053 = vsel %vm991, %v2954, 0
      %3055 = vmatpush.msra.mxu0 0.0
      %3056 = vmatpush.msra.mxu0 0.0
      %3057 = vmatpush.msra.mxu0 0.0
      %3058 = vmatpush.msra.mxu0 0.0
      %3059 = vmatpush.msra.mxu0 0.0
      %3060 = vmatpush.msra.mxu0 0.0
      %3061 = vmatpush.msra.mxu0 0.0
      %3062 = vmatpush.msra.mxu0 0.0
      %3063 = vmatpush.msra.mxu0 0.0
      %3064 = vmatpush.msra.mxu0 0.0
      %3065 = vmatpush.msra.mxu0 0.0
      %3066 = vmatpush.msra.mxu0 0.0
      %3067 = vmatpush.msra.mxu0 0.0
      %3068 = vmatpush.msra.mxu0 %v2958
      %3069 = vmatpush.msra.mxu0 %v2957
      %3070 = vmatpush.msra.mxu0 %v2956
      %3071 = vmatmul.f32.gmra.mxu0 %v2960
      %v3072 = vpop.f32.mrf.mxu0
      %v3073 = vadd.f32 0.0, %v3072
      %3074 = vmatmul.f32.gmra.mxu0 %v2963
      %v3075 = vpop.f32.mrf.mxu0
      %v3076 = vadd.f32 0.0, %v3075
      %3077 = vmatmul.f32.gmra.mxu0 %v2966
      %v3078 = vpop.f32.mrf.mxu0
      %v3079 = vadd.f32 0.0, %v3078
      %3080 = vmatmul.f32.gmra.mxu0 %v2969
      %v3081 = vpop.f32.mrf.mxu0
      %v3082 = vadd.f32 0.0, %v3081
      %3083 = vmatmul.f32.gmra.mxu0 %v2972
      %v3084 = vpop.f32.mrf.mxu0
      %v3085 = vadd.f32 0.0, %v3084
      %3086 = vmatmul.f32.gmra.mxu0 %v2975
      %v3087 = vpop.f32.mrf.mxu0
      %v3088 = vadd.f32 0.0, %v3087
      %3089 = vmatmul.f32.gmra.mxu0 %v2978
      %v3090 = vpop.f32.mrf.mxu0
      %v3091 = vadd.f32 0.0, %v3090
      %3092 = vmatmul.f32.gmra.mxu0 %v2981
      %v3093 = vpop.f32.mrf.mxu0
      %v3094 = vadd.f32 0.0, %v3093
      %3095 = vmatmul.f32.gmra.mxu0 %v2984
      %v3096 = vpop.f32.mrf.mxu0
      %v3097 = vadd.f32 0.0, %v3096
      %3098 = vmatmul.f32.gmra.mxu0 %v2987
      %v3099 = vpop.f32.mrf.mxu0
      %v3100 = vadd.f32 0.0, %v3099
      %3101 = vmatmul.f32.gmra.mxu0 %v2990
      %v3102 = vpop.f32.mrf.mxu0
      %v3103 = vadd.f32 0.0, %v3102
      %3104 = vmatmul.f32.gmra.mxu0 %v2993
      %v3105 = vpop.f32.mrf.mxu0
      %v3106 = vadd.f32 0.0, %v3105
      %3107 = vmatmul.f32.gmra.mxu0 %v2996
      %v3108 = vpop.f32.mrf.mxu0
      %v3109 = vadd.f32 0.0, %v3108
      %3110 = vmatmul.f32.gmra.mxu0 %v2999
      %v3111 = vpop.f32.mrf.mxu0
      %v3112 = vadd.f32 0.0, %v3111
      %3113 = vmatmul.f32.gmra.mxu0 %v3002
      %v3114 = vpop.f32.mrf.mxu0
      %v3115 = vadd.f32 0.0, %v3114
      %3116 = vmatmul.f32.gmra.mxu0 %v3005
      %v3117 = vpop.f32.mrf.mxu0
      %v3118 = vadd.f32 0.0, %v3117
      %3119 = vmatmul.f32.gmra.mxu0 %v3008
      %v3120 = vpop.f32.mrf.mxu0
      %v3121 = vadd.f32 0.0, %v3120
      %3122 = vmatmul.f32.gmra.mxu0 %v3011
      %v3123 = vpop.f32.mrf.mxu0
      %v3124 = vadd.f32 0.0, %v3123
      %3125 = vmatmul.f32.gmra.mxu0 %v3014
      %v3126 = vpop.f32.mrf.mxu0
      %v3127 = vadd.f32 0.0, %v3126
      %3128 = vmatmul.f32.gmra.mxu0 %v3017
      %v3129 = vpop.f32.mrf.mxu0
      %v3130 = vadd.f32 0.0, %v3129
      %3131 = vmatmul.f32.gmra.mxu0 %v3020
      %v3132 = vpop.f32.mrf.mxu0
      %v3133 = vadd.f32 0.0, %v3132
      %3134 = vmatmul.f32.gmra.mxu0 %v3023
      %v3135 = vpop.f32.mrf.mxu0
      %v3136 = vadd.f32 0.0, %v3135
      %3137 = vmatmul.f32.gmra.mxu0 %v3026
      %v3138 = vpop.f32.mrf.mxu0
      %v3139 = vadd.f32 0.0, %v3138
      %3140 = vmatmul.f32.gmra.mxu0 %v3029
      %v3141 = vpop.f32.mrf.mxu0
      %v3142 = vadd.f32 0.0, %v3141
      %3143 = vmatmul.f32.gmra.mxu0 %v3032
      %v3144 = vpop.f32.mrf.mxu0
      %v3145 = vadd.f32 0.0, %v3144
      %3146 = vmatmul.f32.gmra.mxu0 %v3035
      %v3147 = vpop.f32.mrf.mxu0
      %v3148 = vadd.f32 0.0, %v3147
      %3149 = vmatmul.f32.gmra.mxu0 %v3038
      %v3150 = vpop.f32.mrf.mxu0
      %v3151 = vadd.f32 0.0, %v3150
      %3152 = vmatmul.f32.gmra.mxu0 %v3041
      %v3153 = vpop.f32.mrf.mxu0
      %v3154 = vadd.f32 0.0, %v3153
      %3155 = vmatmul.f32.gmra.mxu0 %v3044
      %v3156 = vpop.f32.mrf.mxu0
      %v3157 = vadd.f32 0.0, %v3156
      %3158 = vmatmul.f32.gmra.mxu0 %v3047
      %v3159 = vpop.f32.mrf.mxu0
      %v3160 = vadd.f32 0.0, %v3159
      %3161 = vmatmul.f32.gmra.mxu0 %v3050
      %v3162 = vpop.f32.mrf.mxu0
      %v3163 = vadd.f32 0.0, %v3162
      %3164 = vmatmul.f32.gmra.mxu0 %v3053
      %v3165 = vpop.f32.mrf.mxu0
      %v3166 = vadd.f32 0.0, %v3165
      %3167 = vdwg.mxu0
      %v3168 = vadd.f32 %v2891, %v3073
      %v3169 = vadd.f32 %v2892, %v3076
      %v3170 = vadd.f32 %v2893, %v3079
      %v3171 = vadd.f32 %v2894, %v3082
      %v3172 = vadd.f32 %v2895, %v3085
      %v3173 = vadd.f32 %v2896, %v3088
      %v3174 = vadd.f32 %v2897, %v3091
      %v3175 = vadd.f32 %v2898, %v3094
      %v3176 = vadd.f32 %v2899, %v3097
      %v3177 = vadd.f32 %v2900, %v3100
      %v3178 = vadd.f32 %v2901, %v3103
      %v3179 = vadd.f32 %v2902, %v3106
      %v3180 = vadd.f32 %v2903, %v3109
      %v3181 = vadd.f32 %v2904, %v3112
      %v3182 = vadd.f32 %v2905, %v3115
      %v3183 = vadd.f32 %v2906, %v3118
      %v3184 = vadd.f32 %v2907, %v3121
      %v3185 = vadd.f32 %v2908, %v3124
      %v3186 = vadd.f32 %v2909, %v3127
      %v3187 = vadd.f32 %v2910, %v3130
      %v3188 = vadd.f32 %v2911, %v3133
      %v3189 = vadd.f32 %v2912, %v3136
      %v3190 = vadd.f32 %v2913, %v3139
      %v3191 = vadd.f32 %v2914, %v3142
      %v3192 = vadd.f32 %v2915, %v3145
      %v3193 = vadd.f32 %v2916, %v3148
      %v3194 = vadd.f32 %v2917, %v3151
      %v3195 = vadd.f32 %v2918, %v3154
      %v3196 = vadd.f32 %v2919, %v3157
      %v3197 = vadd.f32 %v2920, %v3160
      %v3198 = vadd.f32 %v2921, %v3163
      %v3199 = vadd.f32 %v2922, %v3166
      %v3200 = vld [vmem:[%s273 + $0x29] sm:$0xff]
      %v3201 = vld [vmem:[%s273 + $0x31] sm:$0xff]
      %v3202 = vld [vmem:[%s273 + $0x39] sm:$0xff]
      %v3203 = vld [vmem:[%s273 + $0x41] sm:$0xff]
      %v3204 = vld [vmem:[%s273 + $0x49] sm:$0xff]
      %v3205 = vld [vmem:[%s273 + $0x51] sm:$0xff]
      %v3206 = vld [vmem:[%s273 + $0x59] sm:$0xff]
      %v3207 = vld [vmem:[%s273 + $0x61] sm:$0xff]
      %v3208 = vld [vmem:[%s273 + $0x69] sm:$0xff]
      %v3209 = vld [vmem:[%s273 + $0x71] sm:$0xff]
      %v3210 = vld [vmem:[%s273 + $0x79] sm:$0xff]
      %v3211 = vld [vmem:[%s273 + $0x81] sm:$0xff]
      %v3212 = vld [vmem:[%s273 + $0x89] sm:$0xff]
      %v3213 = vld [vmem:[%s273 + $0x91] sm:$0xff]
      %v3214 = vld [vmem:[%s273 + $0x99] sm:$0xff]
      %v3215 = vld [vmem:[%s273 + $0xa1] sm:$0xff]
      %v3216 = vld [vmem:[%s273 + $0xa9] sm:$0xff]
      %v3217 = vld [vmem:[%s273 + $0xb1] sm:$0xff]
      %v3218 = vld [vmem:[%s273 + $0xb9] sm:$0xff]
      %v3219 = vld [vmem:[%s273 + $0xc1] sm:$0xff]
      %v3220 = vld [vmem:[%s273 + $0xc9] sm:$0xff]
      %v3221 = vld [vmem:[%s273 + $0xd1] sm:$0xff]
      %v3222 = vld [vmem:[%s273 + $0xd9] sm:$0xff]
      %v3223 = vld [vmem:[%s273 + $0xe1] sm:$0xff]
      %v3224 = vld [vmem:[%s273 + $0xe9] sm:$0xff]
      %v3225 = vld [vmem:[%s273 + $0xf1] sm:$0xff]
      %v3226 = vld [vmem:[%s273 + $0xf9] sm:$0xff]
      %v3227 = vld [vmem:[%s273 + $0x101] sm:$0xff]
      %v3228 = vld [vmem:[%s273 + $0x109] sm:$0xff]
      %v3229 = vld [vmem:[%s273 + $0x111] sm:$0xff]
      %v3230 = vld [vmem:[%s273 + $0x119] sm:$0xff]
      %v3231 = vld [vmem:[%s273 + $0x121] sm:$0xff]
      %v3232 = vmul.f32 %v3200, %v856
      %v3233 = vmul.f32 %v3201, %v857
      %v3234 = vmul.f32 %v3202, %v858
      %v3235 = vmul.f32 %v3203, %v859
      %v3236 = vmul.f32 %v3204, %v860
      %v3237 = vmul.f32 %v3205, %v861
      %v3238 = vmul.f32 %v3206, %v862
      %v3239 = vmul.f32 %v3207, %v863
      %v3240 = vmul.f32 %v3208, %v864
      %v3241 = vmul.f32 %v3209, %v865
      %v3242 = vmul.f32 %v3210, %v866
      %v3243 = vmul.f32 %v3211, %v867
      %v3244 = vmul.f32 %v3212, %v868
      %v3245 = vmul.f32 %v3213, %v869
      %v3246 = vmul.f32 %v3214, %v870
      %v3247 = vmul.f32 %v3215, %v871
      %v3248 = vmul.f32 %v3216, %v872
      %v3249 = vmul.f32 %v3217, %v873
      %v3250 = vmul.f32 %v3218, %v874
      %v3251 = vmul.f32 %v3219, %v875
      %v3252 = vmul.f32 %v3220, %v876
      %v3253 = vmul.f32 %v3221, %v877
      %v3254 = vmul.f32 %v3222, %v878
      %v3255 = vmul.f32 %v3223, %v879
      %v3256 = vmul.f32 %v3224, %v880
      %v3257 = vmul.f32 %v3225, %v881
      %v3258 = vmul.f32 %v3226, %v882
      %v3259 = vmul.f32 %v3227, %v883
      %v3260 = vmul.f32 %v3228, %v884
      %v3261 = vmul.f32 %v3229, %v885
      %v3262 = vmul.f32 %v3230, %v886
      %v3263 = vmul.f32 %v3231, %v887
      %s3264 = scalar_lea.vmem %s1, 192
      %v3265 = vld [vmem:[%s3264] sm:$0xff]
      %v3266 = vld [vmem:[%s3264 + $0x8] sm:$0xff]
      %v3267 = vld [vmem:[%s3264 + $0x10] sm:$0xff]
      %v3269 = vsel %vm991, %v3232, 0
      %v3272 = vsel %vm991, %v3233, 0
      %v3275 = vsel %vm991, %v3234, 0
      %v3278 = vsel %vm991, %v3235, 0
      %v3281 = vsel %vm991, %v3236, 0
      %v3284 = vsel %vm991, %v3237, 0
      %v3287 = vsel %vm991, %v3238, 0
      %v3290 = vsel %vm991, %v3239, 0
      %v3293 = vsel %vm991, %v3240, 0
      %v3296 = vsel %vm991, %v3241, 0
      %v3299 = vsel %vm991, %v3242, 0
      %v3302 = vsel %vm991, %v3243, 0
      %v3305 = vsel %vm991, %v3244, 0
      %v3308 = vsel %vm991, %v3245, 0
      %v3311 = vsel %vm991, %v3246, 0
      %v3314 = vsel %vm991, %v3247, 0
      %v3317 = vsel %vm991, %v3248, 0
      %v3320 = vsel %vm991, %v3249, 0
      %v3323 = vsel %vm991, %v3250, 0
      %v3326 = vsel %vm991, %v3251, 0
      %v3329 = vsel %vm991, %v3252, 0
      %v3332 = vsel %vm991, %v3253, 0
      %v3335 = vsel %vm991, %v3254, 0
      %v3338 = vsel %vm991, %v3255, 0
      %v3341 = vsel %vm991, %v3256, 0
      %v3344 = vsel %vm991, %v3257, 0
      %v3347 = vsel %vm991, %v3258, 0
      %v3350 = vsel %vm991, %v3259, 0
      %v3353 = vsel %vm991, %v3260, 0
      %v3356 = vsel %vm991, %v3261, 0
      %v3359 = vsel %vm991, %v3262, 0
      %v3362 = vsel %vm991, %v3263, 0
      %3364 = vmatpush.msra.mxu0 0.0
      %3365 = vmatpush.msra.mxu0 0.0
      %3366 = vmatpush.msra.mxu0 0.0
      %3367 = vmatpush.msra.mxu0 0.0
      %3368 = vmatpush.msra.mxu0 0.0
      %3369 = vmatpush.msra.mxu0 0.0
      %3370 = vmatpush.msra.mxu0 0.0
      %3371 = vmatpush.msra.mxu0 0.0
      %3372 = vmatpush.msra.mxu0 0.0
      %3373 = vmatpush.msra.mxu0 0.0
      %3374 = vmatpush.msra.mxu0 0.0
      %3375 = vmatpush.msra.mxu0 0.0
      %3376 = vmatpush.msra.mxu0 0.0
      %3377 = vmatpush.msra.mxu0 %v3267
      %3378 = vmatpush.msra.mxu0 %v3266
      %3379 = vmatpush.msra.mxu0 %v3265
      %3380 = vmatmul.f32.gmra.mxu0 %v3269
      %v3381 = vpop.f32.mrf.mxu0
      %v3382 = vadd.f32 0.0, %v3381
      %3383 = vmatmul.f32.gmra.mxu0 %v3272
      %v3384 = vpop.f32.mrf.mxu0
      %v3385 = vadd.f32 0.0, %v3384
      %3386 = vmatmul.f32.gmra.mxu0 %v3275
      %v3387 = vpop.f32.mrf.mxu0
      %v3388 = vadd.f32 0.0, %v3387
      %3389 = vmatmul.f32.gmra.mxu0 %v3278
      %v3390 = vpop.f32.mrf.mxu0
      %v3391 = vadd.f32 0.0, %v3390
      %3392 = vmatmul.f32.gmra.mxu0 %v3281
      %v3393 = vpop.f32.mrf.mxu0
      %v3394 = vadd.f32 0.0, %v3393
      %3395 = vmatmul.f32.gmra.mxu0 %v3284
      %v3396 = vpop.f32.mrf.mxu0
      %v3397 = vadd.f32 0.0, %v3396
      %3398 = vmatmul.f32.gmra.mxu0 %v3287
      %v3399 = vpop.f32.mrf.mxu0
      %v3400 = vadd.f32 0.0, %v3399
      %3401 = vmatmul.f32.gmra.mxu0 %v3290
      %v3402 = vpop.f32.mrf.mxu0
      %v3403 = vadd.f32 0.0, %v3402
      %3404 = vmatmul.f32.gmra.mxu0 %v3293
      %v3405 = vpop.f32.mrf.mxu0
      %v3406 = vadd.f32 0.0, %v3405
      %3407 = vmatmul.f32.gmra.mxu0 %v3296
      %v3408 = vpop.f32.mrf.mxu0
      %v3409 = vadd.f32 0.0, %v3408
      %3410 = vmatmul.f32.gmra.mxu0 %v3299
      %v3411 = vpop.f32.mrf.mxu0
      %v3412 = vadd.f32 0.0, %v3411
      %3413 = vmatmul.f32.gmra.mxu0 %v3302
      %v3414 = vpop.f32.mrf.mxu0
      %v3415 = vadd.f32 0.0, %v3414
      %3416 = vmatmul.f32.gmra.mxu0 %v3305
      %v3417 = vpop.f32.mrf.mxu0
      %v3418 = vadd.f32 0.0, %v3417
      %3419 = vmatmul.f32.gmra.mxu0 %v3308
      %v3420 = vpop.f32.mrf.mxu0
      %v3421 = vadd.f32 0.0, %v3420
      %3422 = vmatmul.f32.gmra.mxu0 %v3311
      %v3423 = vpop.f32.mrf.mxu0
      %v3424 = vadd.f32 0.0, %v3423
      %3425 = vmatmul.f32.gmra.mxu0 %v3314
      %v3426 = vpop.f32.mrf.mxu0
      %v3427 = vadd.f32 0.0, %v3426
      %3428 = vmatmul.f32.gmra.mxu0 %v3317
      %v3429 = vpop.f32.mrf.mxu0
      %v3430 = vadd.f32 0.0, %v3429
      %3431 = vmatmul.f32.gmra.mxu0 %v3320
      %v3432 = vpop.f32.mrf.mxu0
      %v3433 = vadd.f32 0.0, %v3432
      %3434 = vmatmul.f32.gmra.mxu0 %v3323
      %v3435 = vpop.f32.mrf.mxu0
      %v3436 = vadd.f32 0.0, %v3435
      %3437 = vmatmul.f32.gmra.mxu0 %v3326
      %v3438 = vpop.f32.mrf.mxu0
      %v3439 = vadd.f32 0.0, %v3438
      %3440 = vmatmul.f32.gmra.mxu0 %v3329
      %v3441 = vpop.f32.mrf.mxu0
      %v3442 = vadd.f32 0.0, %v3441
      %3443 = vmatmul.f32.gmra.mxu0 %v3332
      %v3444 = vpop.f32.mrf.mxu0
      %v3445 = vadd.f32 0.0, %v3444
      %3446 = vmatmul.f32.gmra.mxu0 %v3335
      %v3447 = vpop.f32.mrf.mxu0
      %v3448 = vadd.f32 0.0, %v3447
      %3449 = vmatmul.f32.gmra.mxu0 %v3338
      %v3450 = vpop.f32.mrf.mxu0
      %v3451 = vadd.f32 0.0, %v3450
      %3452 = vmatmul.f32.gmra.mxu0 %v3341
      %v3453 = vpop.f32.mrf.mxu0
      %v3454 = vadd.f32 0.0, %v3453
      %3455 = vmatmul.f32.gmra.mxu0 %v3344
      %v3456 = vpop.f32.mrf.mxu0
      %v3457 = vadd.f32 0.0, %v3456
      %3458 = vmatmul.f32.gmra.mxu0 %v3347
      %v3459 = vpop.f32.mrf.mxu0
      %v3460 = vadd.f32 0.0, %v3459
      %3461 = vmatmul.f32.gmra.mxu0 %v3350
      %v3462 = vpop.f32.mrf.mxu0
      %v3463 = vadd.f32 0.0, %v3462
      %3464 = vmatmul.f32.gmra.mxu0 %v3353
      %v3465 = vpop.f32.mrf.mxu0
      %v3466 = vadd.f32 0.0, %v3465
      %3467 = vmatmul.f32.gmra.mxu0 %v3356
      %v3468 = vpop.f32.mrf.mxu0
      %v3469 = vadd.f32 0.0, %v3468
      %3470 = vmatmul.f32.gmra.mxu0 %v3359
      %v3471 = vpop.f32.mrf.mxu0
      %v3472 = vadd.f32 0.0, %v3471
      %3473 = vmatmul.f32.gmra.mxu0 %v3362
      %v3474 = vpop.f32.mrf.mxu0
      %v3475 = vadd.f32 0.0, %v3474
      %3476 = vdwg.mxu0
      %v3477 = vadd.f32 %v3168, %v3382
      %v3478 = vadd.f32 %v3169, %v3385
      %v3479 = vadd.f32 %v3170, %v3388
      %v3480 = vadd.f32 %v3171, %v3391
      %v3481 = vadd.f32 %v3172, %v3394
      %v3482 = vadd.f32 %v3173, %v3397
      %v3483 = vadd.f32 %v3174, %v3400
      %v3484 = vadd.f32 %v3175, %v3403
      %v3485 = vadd.f32 %v3176, %v3406
      %v3486 = vadd.f32 %v3177, %v3409
      %v3487 = vadd.f32 %v3178, %v3412
      %v3488 = vadd.f32 %v3179, %v3415
      %v3489 = vadd.f32 %v3180, %v3418
      %v3490 = vadd.f32 %v3181, %v3421
      %v3491 = vadd.f32 %v3182, %v3424
      %v3492 = vadd.f32 %v3183, %v3427
      %v3493 = vadd.f32 %v3184, %v3430
      %v3494 = vadd.f32 %v3185, %v3433
      %v3495 = vadd.f32 %v3186, %v3436
      %v3496 = vadd.f32 %v3187, %v3439
      %v3497 = vadd.f32 %v3188, %v3442
      %v3498 = vadd.f32 %v3189, %v3445
      %v3499 = vadd.f32 %v3190, %v3448
      %v3500 = vadd.f32 %v3191, %v3451
      %v3501 = vadd.f32 %v3192, %v3454
      %v3502 = vadd.f32 %v3193, %v3457
      %v3503 = vadd.f32 %v3194, %v3460
      %v3504 = vadd.f32 %v3195, %v3463
      %v3505 = vadd.f32 %v3196, %v3466
      %v3506 = vadd.f32 %v3197, %v3469
      %v3507 = vadd.f32 %v3198, %v3472
      %v3508 = vadd.f32 %v3199, %v3475
      %v3509 = vld [vmem:[%s2] sm:$0x1]
      %v3511 = vperm.slane %v3509, 0
      %v3513 = vadd.f32 %v3477, %v3511
      %v3514 = vadd.f32 %v3478, %v3511
      %v3515 = vadd.f32 %v3479, %v3511
      %v3516 = vadd.f32 %v3480, %v3511
      %v3517 = vadd.f32 %v3481, %v3511
      %v3518 = vadd.f32 %v3482, %v3511
      %v3519 = vadd.f32 %v3483, %v3511
      %v3520 = vadd.f32 %v3484, %v3511
      %v3521 = vadd.f32 %v3485, %v3511
      %v3522 = vadd.f32 %v3486, %v3511
      %v3523 = vadd.f32 %v3487, %v3511
      %v3524 = vadd.f32 %v3488, %v3511
      %v3525 = vadd.f32 %v3489, %v3511
      %v3526 = vadd.f32 %v3490, %v3511
      %v3527 = vadd.f32 %v3491, %v3511
      %v3528 = vadd.f32 %v3492, %v3511
      %v3529 = vadd.f32 %v3493, %v3511
      %v3530 = vadd.f32 %v3494, %v3511
      %v3531 = vadd.f32 %v3495, %v3511
      %v3532 = vadd.f32 %v3496, %v3511
      %v3533 = vadd.f32 %v3497, %v3511
      %v3534 = vadd.f32 %v3498, %v3511
      %v3535 = vadd.f32 %v3499, %v3511
      %v3536 = vadd.f32 %v3500, %v3511
      %v3537 = vadd.f32 %v3501, %v3511
      %v3538 = vadd.f32 %v3502, %v3511
      %v3539 = vadd.f32 %v3503, %v3511
      %v3540 = vadd.f32 %v3504, %v3511
      %v3541 = vadd.f32 %v3505, %v3511
      %v3542 = vadd.f32 %v3506, %v3511
      %v3543 = vadd.f32 %v3507, %v3511
      %v3544 = vadd.f32 %v3508, %v3511
      %v3545 = vmax.f32 %v3513, 0.0
      %v3546 = vmax.f32 %v3514, 0.0
      %v3547 = vmax.f32 %v3515, 0.0
      %v3548 = vmax.f32 %v3516, 0.0
      %v3549 = vmax.f32 %v3517, 0.0
      %v3550 = vmax.f32 %v3518, 0.0
      %v3551 = vmax.f32 %v3519, 0.0
      %v3552 = vmax.f32 %v3520, 0.0
      %v3553 = vmax.f32 %v3521, 0.0
      %v3554 = vmax.f32 %v3522, 0.0
      %v3555 = vmax.f32 %v3523, 0.0
      %v3556 = vmax.f32 %v3524, 0.0
      %v3557 = vmax.f32 %v3525, 0.0
      %v3558 = vmax.f32 %v3526, 0.0
      %v3559 = vmax.f32 %v3527, 0.0
      %v3560 = vmax.f32 %v3528, 0.0
      %v3561 = vmax.f32 %v3529, 0.0
      %v3562 = vmax.f32 %v3530, 0.0
      %v3563 = vmax.f32 %v3531, 0.0
      %v3564 = vmax.f32 %v3532, 0.0
      %v3565 = vmax.f32 %v3533, 0.0
      %v3566 = vmax.f32 %v3534, 0.0
      %v3567 = vmax.f32 %v3535, 0.0
      %v3568 = vmax.f32 %v3536, 0.0
      %v3569 = vmax.f32 %v3537, 0.0
      %v3570 = vmax.f32 %v3538, 0.0
      %v3571 = vmax.f32 %v3539, 0.0
      %v3572 = vmax.f32 %v3540, 0.0
      %v3573 = vmax.f32 %v3541, 0.0
      %v3574 = vmax.f32 %v3542, 0.0
      %v3575 = vmax.f32 %v3543, 0.0
      %v3576 = vmax.f32 %v3544, 0.0
      %vm3577 = vcmask 261120
      %3578 = vst.msk [vmem:[#allocation2] sm:$0xff] %vm3577, 0.0
      %3579 = vst.msk [vmem:[#allocation2 + $0x8] sm:$0xff] %vm3577, 0.0
      %3580 = vst.msk [vmem:[#allocation2 + $0x10] sm:$0xff] %vm3577, 0.0
      %3581 = vst.msk [vmem:[#allocation2 + $0x118] sm:$0xff] %vm3577, 0.0
      %3582 = vst.msk [vmem:[#allocation2 + $0x120] sm:$0xff] %vm3577, 0.0
      %3583 = vst.msk [vmem:[#allocation2 + $0x128] sm:$0xff] %vm3577, 0.0
      %3584 = vst.msk [vmem:[#allocation2 + $0x18] sm:$0xff] %vm3577, %v3545
      %3585 = vst.msk [vmem:[#allocation2 + $0x20] sm:$0xff] %vm3577, %v3546
      %3586 = vst.msk [vmem:[#allocation2 + $0x28] sm:$0xff] %vm3577, %v3547
      %3587 = vst.msk [vmem:[#allocation2 + $0x30] sm:$0xff] %vm3577, %v3548
      %3588 = vst.msk [vmem:[#allocation2 + $0x38] sm:$0xff] %vm3577, %v3549
      %3589 = vst.msk [vmem:[#allocation2 + $0x40] sm:$0xff] %vm3577, %v3550
      %3590 = vst.msk [vmem:[#allocation2 + $0x48] sm:$0xff] %vm3577, %v3551
      %3591 = vst.msk [vmem:[#allocation2 + $0x50] sm:$0xff] %vm3577, %v3552
      %3592 = vst.msk [vmem:[#allocation2 + $0x58] sm:$0xff] %vm3577, %v3553
      %3593 = vst.msk [vmem:[#allocation2 + $0x60] sm:$0xff] %vm3577, %v3554
      %3594 = vst.msk [vmem:[#allocation2 + $0x68] sm:$0xff] %vm3577, %v3555
      %3595 = vst.msk [vmem:[#allocation2 + $0x70] sm:$0xff] %vm3577, %v3556
      %3596 = vst.msk [vmem:[#allocation2 + $0x78] sm:$0xff] %vm3577, %v3557
      %3597 = vst.msk [vmem:[#allocation2 + $0x80] sm:$0xff] %vm3577, %v3558
      %3598 = vst.msk [vmem:[#allocation2 + $0x88] sm:$0xff] %vm3577, %v3559
      %3599 = vst.msk [vmem:[#allocation2 + $0x90] sm:$0xff] %vm3577, %v3560
      %3600 = vst.msk [vmem:[#allocation2 + $0x98] sm:$0xff] %vm3577, %v3561
      %3601 = vst.msk [vmem:[#allocation2 + $0xa0] sm:$0xff] %vm3577, %v3562
      %3602 = vst.msk [vmem:[#allocation2 + $0xa8] sm:$0xff] %vm3577, %v3563
      %3603 = vst.msk [vmem:[#allocation2 + $0xb0] sm:$0xff] %vm3577, %v3564
      %3604 = vst.msk [vmem:[#allocation2 + $0xb8] sm:$0xff] %vm3577, %v3565
      %3605 = vst.msk [vmem:[#allocation2 + $0xc0] sm:$0xff] %vm3577, %v3566
      %3606 = vst.msk [vmem:[#allocation2 + $0xc8] sm:$0xff] %vm3577, %v3567
      %3607 = vst.msk [vmem:[#allocation2 + $0xd0] sm:$0xff] %vm3577, %v3568
      %3608 = vst.msk [vmem:[#allocation2 + $0xd8] sm:$0xff] %vm3577, %v3569
      %3609 = vst.msk [vmem:[#allocation2 + $0xe0] sm:$0xff] %vm3577, %v3570
      %3610 = vst.msk [vmem:[#allocation2 + $0xe8] sm:$0xff] %vm3577, %v3571
      %3611 = vst.msk [vmem:[#allocation2 + $0xf0] sm:$0xff] %vm3577, %v3572
      %3612 = vst.msk [vmem:[#allocation2 + $0xf8] sm:$0xff] %vm3577, %v3573
      %3613 = vst.msk [vmem:[#allocation2 + $0x100] sm:$0xff] %vm3577, %v3574
      %3614 = vst.msk [vmem:[#allocation2 + $0x108] sm:$0xff] %vm3577, %v3575
      %3615 = vst.msk [vmem:[#allocation2 + $0x110] sm:$0xff] %vm3577, %v3576
      %v3616 = vld [vmem:[#allocation2 + $0x7] sm:$0xff]
      %v3617 = vld [vmem:[#allocation2 + $0xf] sm:$0xff]
      %v3618 = vld [vmem:[#allocation2 + $0x17] sm:$0xff]
      %v3619 = vld [vmem:[#allocation2 + $0x1f] sm:$0xff]
      %v3620 = vld [vmem:[#allocation2 + $0x27] sm:$0xff]
      %v3621 = vld [vmem:[#allocation2 + $0x2f] sm:$0xff]
      %v3622 = vld [vmem:[#allocation2 + $0x37] sm:$0xff]
      %v3623 = vld [vmem:[#allocation2 + $0x3f] sm:$0xff]
      %v3624 = vld [vmem:[#allocation2 + $0x47] sm:$0xff]
      %v3625 = vld [vmem:[#allocation2 + $0x4f] sm:$0xff]
      %v3626 = vld [vmem:[#allocation2 + $0x57] sm:$0xff]
      %v3627 = vld [vmem:[#allocation2 + $0x5f] sm:$0xff]
      %v3628 = vld [vmem:[#allocation2 + $0x67] sm:$0xff]
      %v3629 = vld [vmem:[#allocation2 + $0x6f] sm:$0xff]
      %v3630 = vld [vmem:[#allocation2 + $0x77] sm:$0xff]
      %v3631 = vld [vmem:[#allocation2 + $0x7f] sm:$0xff]
      %v3632 = vld [vmem:[#allocation2 + $0x87] sm:$0xff]
      %v3633 = vld [vmem:[#allocation2 + $0x8f] sm:$0xff]
      %v3634 = vld [vmem:[#allocation2 + $0x97] sm:$0xff]
      %v3635 = vld [vmem:[#allocation2 + $0x9f] sm:$0xff]
      %v3636 = vld [vmem:[#allocation2 + $0xa7] sm:$0xff]
      %v3637 = vld [vmem:[#allocation2 + $0xaf] sm:$0xff]
      %v3638 = vld [vmem:[#allocation2 + $0xb7] sm:$0xff]
      %v3639 = vld [vmem:[#allocation2 + $0xbf] sm:$0xff]
      %v3640 = vld [vmem:[#allocation2 + $0xc7] sm:$0xff]
      %v3641 = vld [vmem:[#allocation2 + $0xcf] sm:$0xff]
      %v3642 = vld [vmem:[#allocation2 + $0xd7] sm:$0xff]
      %v3643 = vld [vmem:[#allocation2 + $0xdf] sm:$0xff]
      %v3644 = vld [vmem:[#allocation2 + $0xe7] sm:$0xff]
      %v3645 = vld [vmem:[#allocation2 + $0xef] sm:$0xff]
      %v3646 = vld [vmem:[#allocation2 + $0xf7] sm:$0xff]
      %v3647 = vld [vmem:[#allocation2 + $0xff] sm:$0xff]
      %v3648 = vmul.f32 %v3616, %v760
      %v3649 = vmul.f32 %v3617, %v761
      %v3650 = vmul.f32 %v3618, %v762
      %v3651 = vmul.f32 %v3619, %v763
      %v3652 = vmul.f32 %v3620, %v764
      %v3653 = vmul.f32 %v3621, %v765
      %v3654 = vmul.f32 %v3622, %v766
      %v3655 = vmul.f32 %v3623, %v767
      %v3656 = vmul.f32 %v3624, %v768
      %v3657 = vmul.f32 %v3625, %v769
      %v3658 = vmul.f32 %v3626, %v770
      %v3659 = vmul.f32 %v3627, %v771
      %v3660 = vmul.f32 %v3628, %v772
      %v3661 = vmul.f32 %v3629, %v773
      %v3662 = vmul.f32 %v3630, %v774
      %v3663 = vmul.f32 %v3631, %v775
      %v3664 = vmul.f32 %v3632, %v776
      %v3665 = vmul.f32 %v3633, %v777
      %v3666 = vmul.f32 %v3634, %v778
      %v3667 = vmul.f32 %v3635, %v779
      %v3668 = vmul.f32 %v3636, %v780
      %v3669 = vmul.f32 %v3637, %v781
      %v3670 = vmul.f32 %v3638, %v782
      %v3671 = vmul.f32 %v3639, %v783
      %v3672 = vmul.f32 %v3640, %v784
      %v3673 = vmul.f32 %v3641, %v785
      %v3674 = vmul.f32 %v3642, %v786
      %v3675 = vmul.f32 %v3643, %v787
      %v3676 = vmul.f32 %v3644, %v788
      %v3677 = vmul.f32 %v3645, %v789
      %v3678 = vmul.f32 %v3646, %v790
      %v3679 = vmul.f32 %v3647, %v791
      %v3680 = vld [vmem:[%s3] sm:$0xff]
      %v3681 = vld [vmem:[%s3 + $0x8] sm:$0xff]
      %v3682 = vld [vmem:[%s3 + $0x10] sm:$0xff]
      %v3683 = vld [vmem:[%s3 + $0x18] sm:$0xff]
      %v3684 = vld [vmem:[#allocation2 + $0x8] sm:$0xff]
      %v3685 = vld [vmem:[#allocation2 + $0x10] sm:$0xff]
      %v3686 = vld [vmem:[#allocation2 + $0x18] sm:$0xff]
      %v3687 = vld [vmem:[#allocation2 + $0x20] sm:$0xff]
      %v3688 = vld [vmem:[#allocation2 + $0x28] sm:$0xff]
      %v3689 = vld [vmem:[#allocation2 + $0x30] sm:$0xff]
      %v3690 = vld [vmem:[#allocation2 + $0x38] sm:$0xff]
      %v3691 = vld [vmem:[#allocation2 + $0x40] sm:$0xff]
      %v3692 = vld [vmem:[#allocation2 + $0x48] sm:$0xff]
      %v3693 = vld [vmem:[#allocation2 + $0x50] sm:$0xff]
      %v3694 = vld [vmem:[#allocation2 + $0x58] sm:$0xff]
      %v3695 = vld [vmem:[#allocation2 + $0x60] sm:$0xff]
      %v3696 = vld [vmem:[#allocation2 + $0x68] sm:$0xff]
      %v3697 = vld [vmem:[#allocation2 + $0x70] sm:$0xff]
      %v3698 = vld [vmem:[#allocation2 + $0x78] sm:$0xff]
      %v3699 = vld [vmem:[#allocation2 + $0x80] sm:$0xff]
      %v3700 = vld [vmem:[#allocation2 + $0x88] sm:$0xff]
      %v3701 = vld [vmem:[#allocation2 + $0x90] sm:$0xff]
      %v3702 = vld [vmem:[#allocation2 + $0x98] sm:$0xff]
      %v3703 = vld [vmem:[#allocation2 + $0xa0] sm:$0xff]
      %v3704 = vld [vmem:[#allocation2 + $0xa8] sm:$0xff]
      %v3705 = vld [vmem:[#allocation2 + $0xb0] sm:$0xff]
      %v3706 = vld [vmem:[#allocation2 + $0xb8] sm:$0xff]
      %v3707 = vld [vmem:[#allocation2 + $0xc0] sm:$0xff]
      %v3708 = vld [vmem:[#allocation2 + $0xc8] sm:$0xff]
      %v3709 = vld [vmem:[#allocation2 + $0xd0] sm:$0xff]
      %v3710 = vld [vmem:[#allocation2 + $0xd8] sm:$0xff]
      %v3711 = vld [vmem:[#allocation2 + $0xe0] sm:$0xff]
      %v3712 = vld [vmem:[#allocation2 + $0xe8] sm:$0xff]
      %v3713 = vld [vmem:[#allocation2 + $0xf0] sm:$0xff]
      %v3714 = vld [vmem:[#allocation2 + $0xf8] sm:$0xff]
      %v3715 = vld [vmem:[#allocation2 + $0x100] sm:$0xff]
      %s3716 = scalar_lea.vmem %s3, 32
      %v3717 = vld [vmem:[%s3716] sm:$0xff]
      %v3718 = vld [vmem:[%s3716 + $0x8] sm:$0xff]
      %v3719 = vld [vmem:[%s3716 + $0x10] sm:$0xff]
      %v3720 = vld [vmem:[%s3716 + $0x18] sm:$0xff]
      %v3722 = vsel %vm3577, %v3684, 0
      %v3725 = vsel %vm3577, %v3685, 0
      %v3728 = vsel %vm3577, %v3686, 0
      %v3731 = vsel %vm3577, %v3687, 0
      %v3734 = vsel %vm3577, %v3688, 0
      %v3737 = vsel %vm3577, %v3689, 0
      %v3740 = vsel %vm3577, %v3690, 0
      %v3743 = vsel %vm3577, %v3691, 0
      %v3746 = vsel %vm3577, %v3692, 0
      %v3749 = vsel %vm3577, %v3693, 0
      %v3752 = vsel %vm3577, %v3694, 0
      %v3755 = vsel %vm3577, %v3695, 0
      %v3758 = vsel %vm3577, %v3696, 0
      %v3761 = vsel %vm3577, %v3697, 0
      %v3764 = vsel %vm3577, %v3698, 0
      %v3767 = vsel %vm3577, %v3699, 0
      %v3770 = vsel %vm3577, %v3700, 0
      %v3773 = vsel %vm3577, %v3701, 0
      %v3776 = vsel %vm3577, %v3702, 0
      %v3779 = vsel %vm3577, %v3703, 0
      %v3782 = vsel %vm3577, %v3704, 0
      %v3785 = vsel %vm3577, %v3705, 0
      %v3788 = vsel %vm3577, %v3706, 0
      %v3791 = vsel %vm3577, %v3707, 0
      %v3794 = vsel %vm3577, %v3708, 0
      %v3797 = vsel %vm3577, %v3709, 0
      %v3800 = vsel %vm3577, %v3710, 0
      %v3803 = vsel %vm3577, %v3711, 0
      %v3806 = vsel %vm3577, %v3712, 0
      %v3809 = vsel %vm3577, %v3713, 0
      %v3812 = vsel %vm3577, %v3714, 0
      %v3815 = vsel %vm3577, %v3715, 0
      %3817 = vmatpush.msra.mxu0 0.0
      %3818 = vmatpush.msra.mxu0 0.0
      %3819 = vmatpush.msra.mxu0 0.0
      %3820 = vmatpush.msra.mxu0 0.0
      %3821 = vmatpush.msra.mxu0 0.0
      %3822 = vmatpush.msra.mxu0 0.0
      %3823 = vmatpush.msra.mxu0 0.0
      %3824 = vmatpush.msra.mxu0 0.0
      %3825 = vmatpush.msra.mxu0 0.0
      %3826 = vmatpush.msra.mxu0 0.0
      %3827 = vmatpush.msra.mxu0 0.0
      %3828 = vmatpush.msra.mxu0 0.0
      %3829 = vmatpush.msra.mxu0 %v3720
      %3830 = vmatpush.msra.mxu0 %v3719
      %3831 = vmatpush.msra.mxu0 %v3718
      %3832 = vmatpush.msra.mxu0 %v3717
      %3833 = vmatmul.f32.gmra.mxu0 %v3722
      %v3834 = vpop.f32.mrf.mxu0
      %v3835 = vadd.f32 0.0, %v3834
      %3836 = vmatmul.f32.gmra.mxu0 %v3725
      %v3837 = vpop.f32.mrf.mxu0
      %v3838 = vadd.f32 0.0, %v3837
      %3839 = vmatmul.f32.gmra.mxu0 %v3728
      %v3840 = vpop.f32.mrf.mxu0
      %v3841 = vadd.f32 0.0, %v3840
      %3842 = vmatmul.f32.gmra.mxu0 %v3731
      %v3843 = vpop.f32.mrf.mxu0
      %v3844 = vadd.f32 0.0, %v3843
      %3845 = vmatmul.f32.gmra.mxu0 %v3734
      %v3846 = vpop.f32.mrf.mxu0
      %v3847 = vadd.f32 0.0, %v3846
      %3848 = vmatmul.f32.gmra.mxu0 %v3737
      %v3849 = vpop.f32.mrf.mxu0
      %v3850 = vadd.f32 0.0, %v3849
      %3851 = vmatmul.f32.gmra.mxu0 %v3740
      %v3852 = vpop.f32.mrf.mxu0
      %v3853 = vadd.f32 0.0, %v3852
      %3854 = vmatmul.f32.gmra.mxu0 %v3743
      %v3855 = vpop.f32.mrf.mxu0
      %v3856 = vadd.f32 0.0, %v3855
      %3857 = vmatmul.f32.gmra.mxu0 %v3746
      %v3858 = vpop.f32.mrf.mxu0
      %v3859 = vadd.f32 0.0, %v3858
      %3860 = vmatmul.f32.gmra.mxu0 %v3749
      %v3861 = vpop.f32.mrf.mxu0
      %v3862 = vadd.f32 0.0, %v3861
      %3863 = vmatmul.f32.gmra.mxu0 %v3752
      %v3864 = vpop.f32.mrf.mxu0
      %v3865 = vadd.f32 0.0, %v3864
      %3866 = vmatmul.f32.gmra.mxu0 %v3755
      %v3867 = vpop.f32.mrf.mxu0
      %v3868 = vadd.f32 0.0, %v3867
      %3869 = vmatmul.f32.gmra.mxu0 %v3758
      %v3870 = vpop.f32.mrf.mxu0
      %v3871 = vadd.f32 0.0, %v3870
      %3872 = vmatmul.f32.gmra.mxu0 %v3761
      %v3873 = vpop.f32.mrf.mxu0
      %v3874 = vadd.f32 0.0, %v3873
      %3875 = vmatmul.f32.gmra.mxu0 %v3764
      %v3876 = vpop.f32.mrf.mxu0
      %v3877 = vadd.f32 0.0, %v3876
      %3878 = vmatmul.f32.gmra.mxu0 %v3767
      %v3879 = vpop.f32.mrf.mxu0
      %v3880 = vadd.f32 0.0, %v3879
      %3881 = vmatmul.f32.gmra.mxu0 %v3770
      %v3882 = vpop.f32.mrf.mxu0
      %v3883 = vadd.f32 0.0, %v3882
      %3884 = vmatmul.f32.gmra.mxu0 %v3773
      %v3885 = vpop.f32.mrf.mxu0
      %v3886 = vadd.f32 0.0, %v3885
      %3887 = vmatmul.f32.gmra.mxu0 %v3776
      %v3888 = vpop.f32.mrf.mxu0
      %v3889 = vadd.f32 0.0, %v3888
      %3890 = vmatmul.f32.gmra.mxu0 %v3779
      %v3891 = vpop.f32.mrf.mxu0
      %v3892 = vadd.f32 0.0, %v3891
      %3893 = vmatmul.f32.gmra.mxu0 %v3782
      %v3894 = vpop.f32.mrf.mxu0
      %v3895 = vadd.f32 0.0, %v3894
      %3896 = vmatmul.f32.gmra.mxu0 %v3785
      %v3897 = vpop.f32.mrf.mxu0
      %v3898 = vadd.f32 0.0, %v3897
      %3899 = vmatmul.f32.gmra.mxu0 %v3788
      %v3900 = vpop.f32.mrf.mxu0
      %v3901 = vadd.f32 0.0, %v3900
      %3902 = vmatmul.f32.gmra.mxu0 %v3791
      %v3903 = vpop.f32.mrf.mxu0
      %v3904 = vadd.f32 0.0, %v3903
      %3905 = vmatmul.f32.gmra.mxu0 %v3794
      %v3906 = vpop.f32.mrf.mxu0
      %v3907 = vadd.f32 0.0, %v3906
      %3908 = vmatmul.f32.gmra.mxu0 %v3797
      %v3909 = vpop.f32.mrf.mxu0
      %v3910 = vadd.f32 0.0, %v3909
      %3911 = vmatmul.f32.gmra.mxu0 %v3800
      %v3912 = vpop.f32.mrf.mxu0
      %v3913 = vadd.f32 0.0, %v3912
      %3914 = vmatmul.f32.gmra.mxu0 %v3803
      %v3915 = vpop.f32.mrf.mxu0
      %v3916 = vadd.f32 0.0, %v3915
      %3917 = vmatmul.f32.gmra.mxu0 %v3806
      %v3918 = vpop.f32.mrf.mxu0
      %v3919 = vadd.f32 0.0, %v3918
      %3920 = vmatmul.f32.gmra.mxu0 %v3809
      %v3921 = vpop.f32.mrf.mxu0
      %v3922 = vadd.f32 0.0, %v3921
      %3923 = vmatmul.f32.gmra.mxu0 %v3812
      %v3924 = vpop.f32.mrf.mxu0
      %v3925 = vadd.f32 0.0, %v3924
      %3926 = vmatmul.f32.gmra.mxu0 %v3815
      %v3927 = vpop.f32.mrf.mxu0
      %v3928 = vadd.f32 0.0, %v3927
      %3929 = vdwg.mxu0
      %v3931 = vsel %vm3577, %v3648, 0
      %v3934 = vsel %vm3577, %v3649, 0
      %v3937 = vsel %vm3577, %v3650, 0
      %v3940 = vsel %vm3577, %v3651, 0
      %v3943 = vsel %vm3577, %v3652, 0
      %v3946 = vsel %vm3577, %v3653, 0
      %v3949 = vsel %vm3577, %v3654, 0
      %v3952 = vsel %vm3577, %v3655, 0
      %v3955 = vsel %vm3577, %v3656, 0
      %v3958 = vsel %vm3577, %v3657, 0
      %v3961 = vsel %vm3577, %v3658, 0
      %v3964 = vsel %vm3577, %v3659, 0
      %v3967 = vsel %vm3577, %v3660, 0
      %v3970 = vsel %vm3577, %v3661, 0
      %v3973 = vsel %vm3577, %v3662, 0
      %v3976 = vsel %vm3577, %v3663, 0
      %v3979 = vsel %vm3577, %v3664, 0
      %v3982 = vsel %vm3577, %v3665, 0
      %v3985 = vsel %vm3577, %v3666, 0
      %v3988 = vsel %vm3577, %v3667, 0
      %v3991 = vsel %vm3577, %v3668, 0
      %v3994 = vsel %vm3577, %v3669, 0
      %v3997 = vsel %vm3577, %v3670, 0
      %v4000 = vsel %vm3577, %v3671, 0
      %v4003 = vsel %vm3577, %v3672, 0
      %v4006 = vsel %vm3577, %v3673, 0
      %v4009 = vsel %vm3577, %v3674, 0
      %v4012 = vsel %vm3577, %v3675, 0
      %v4015 = vsel %vm3577, %v3676, 0
      %v4018 = vsel %vm3577, %v3677, 0
      %v4021 = vsel %vm3577, %v3678, 0
      %v4024 = vsel %vm3577, %v3679, 0
      %4026 = vmatpush.msra.mxu0 0.0
      %4027 = vmatpush.msra.mxu0 0.0
      %4028 = vmatpush.msra.mxu0 0.0
      %4029 = vmatpush.msra.mxu0 0.0
      %4030 = vmatpush.msra.mxu0 0.0
      %4031 = vmatpush.msra.mxu0 0.0
      %4032 = vmatpush.msra.mxu0 0.0
      %4033 = vmatpush.msra.mxu0 0.0
      %4034 = vmatpush.msra.mxu0 0.0
      %4035 = vmatpush.msra.mxu0 0.0
      %4036 = vmatpush.msra.mxu0 0.0
      %4037 = vmatpush.msra.mxu0 0.0
      %4038 = vmatpush.msra.mxu0 %v3683
      %4039 = vmatpush.msra.mxu0 %v3682
      %4040 = vmatpush.msra.mxu0 %v3681
      %4041 = vmatpush.msra.mxu0 %v3680
      %4042 = vmatmul.f32.gmra.mxu0 %v3931
      %v4043 = vpop.f32.mrf.mxu0
      %v4044 = vadd.f32 %v3835, %v4043
      %4045 = vmatmul.f32.gmra.mxu0 %v3934
      %v4046 = vpop.f32.mrf.mxu0
      %v4047 = vadd.f32 %v3838, %v4046
      %4048 = vmatmul.f32.gmra.mxu0 %v3937
      %v4049 = vpop.f32.mrf.mxu0
      %v4050 = vadd.f32 %v3841, %v4049
      %4051 = vmatmul.f32.gmra.mxu0 %v3940
      %v4052 = vpop.f32.mrf.mxu0
      %v4053 = vadd.f32 %v3844, %v4052
      %4054 = vmatmul.f32.gmra.mxu0 %v3943
      %v4055 = vpop.f32.mrf.mxu0
      %v4056 = vadd.f32 %v3847, %v4055
      %4057 = vmatmul.f32.gmra.mxu0 %v3946
      %v4058 = vpop.f32.mrf.mxu0
      %v4059 = vadd.f32 %v3850, %v4058
      %4060 = vmatmul.f32.gmra.mxu0 %v3949
      %v4061 = vpop.f32.mrf.mxu0
      %v4062 = vadd.f32 %v3853, %v4061
      %4063 = vmatmul.f32.gmra.mxu0 %v3952
      %v4064 = vpop.f32.mrf.mxu0
      %v4065 = vadd.f32 %v3856, %v4064
      %4066 = vmatmul.f32.gmra.mxu0 %v3955
      %v4067 = vpop.f32.mrf.mxu0
      %v4068 = vadd.f32 %v3859, %v4067
      %4069 = vmatmul.f32.gmra.mxu0 %v3958
      %v4070 = vpop.f32.mrf.mxu0
      %v4071 = vadd.f32 %v3862, %v4070
      %4072 = vmatmul.f32.gmra.mxu0 %v3961
      %v4073 = vpop.f32.mrf.mxu0
      %v4074 = vadd.f32 %v3865, %v4073
      %4075 = vmatmul.f32.gmra.mxu0 %v3964
      %v4076 = vpop.f32.mrf.mxu0
      %v4077 = vadd.f32 %v3868, %v4076
      %4078 = vmatmul.f32.gmra.mxu0 %v3967
      %v4079 = vpop.f32.mrf.mxu0
      %v4080 = vadd.f32 %v3871, %v4079
      %4081 = vmatmul.f32.gmra.mxu0 %v3970
      %v4082 = vpop.f32.mrf.mxu0
      %v4083 = vadd.f32 %v3874, %v4082
      %4084 = vmatmul.f32.gmra.mxu0 %v3973
      %v4085 = vpop.f32.mrf.mxu0
      %v4086 = vadd.f32 %v3877, %v4085
      %4087 = vmatmul.f32.gmra.mxu0 %v3976
      %v4088 = vpop.f32.mrf.mxu0
      %v4089 = vadd.f32 %v3880, %v4088
      %4090 = vmatmul.f32.gmra.mxu0 %v3979
      %v4091 = vpop.f32.mrf.mxu0
      %v4092 = vadd.f32 %v3883, %v4091
      %4093 = vmatmul.f32.gmra.mxu0 %v3982
      %v4094 = vpop.f32.mrf.mxu0
      %v4095 = vadd.f32 %v3886, %v4094
      %4096 = vmatmul.f32.gmra.mxu0 %v3985
      %v4097 = vpop.f32.mrf.mxu0
      %v4098 = vadd.f32 %v3889, %v4097
      %4099 = vmatmul.f32.gmra.mxu0 %v3988
      %v4100 = vpop.f32.mrf.mxu0
      %v4101 = vadd.f32 %v3892, %v4100
      %4102 = vmatmul.f32.gmra.mxu0 %v3991
      %v4103 = vpop.f32.mrf.mxu0
      %v4104 = vadd.f32 %v3895, %v4103
      %4105 = vmatmul.f32.gmra.mxu0 %v3994
      %v4106 = vpop.f32.mrf.mxu0
      %v4107 = vadd.f32 %v3898, %v4106
      %4108 = vmatmul.f32.gmra.mxu0 %v3997
      %v4109 = vpop.f32.mrf.mxu0
      %v4110 = vadd.f32 %v3901, %v4109
      %4111 = vmatmul.f32.gmra.mxu0 %v4000
      %v4112 = vpop.f32.mrf.mxu0
      %v4113 = vadd.f32 %v3904, %v4112
      %4114 = vmatmul.f32.gmra.mxu0 %v4003
      %v4115 = vpop.f32.mrf.mxu0
      %v4116 = vadd.f32 %v3907, %v4115
      %4117 = vmatmul.f32.gmra.mxu0 %v4006
      %v4118 = vpop.f32.mrf.mxu0
      %v4119 = vadd.f32 %v3910, %v4118
      %4120 = vmatmul.f32.gmra.mxu0 %v4009
      %v4121 = vpop.f32.mrf.mxu0
      %v4122 = vadd.f32 %v3913, %v4121
      %4123 = vmatmul.f32.gmra.mxu0 %v4012
      %v4124 = vpop.f32.mrf.mxu0
      %v4125 = vadd.f32 %v3916, %v4124
      %4126 = vmatmul.f32.gmra.mxu0 %v4015
      %v4127 = vpop.f32.mrf.mxu0
      %v4128 = vadd.f32 %v3919, %v4127
      %4129 = vmatmul.f32.gmra.mxu0 %v4018
      %v4130 = vpop.f32.mrf.mxu0
      %v4131 = vadd.f32 %v3922, %v4130
      %4132 = vmatmul.f32.gmra.mxu0 %v4021
      %v4133 = vpop.f32.mrf.mxu0
      %v4134 = vadd.f32 %v3925, %v4133
      %4135 = vmatmul.f32.gmra.mxu0 %v4024
      %v4136 = vpop.f32.mrf.mxu0
      %v4137 = vadd.f32 %v3928, %v4136
      %4138 = vdwg.mxu0
      %v4139 = vld [vmem:[#allocation2 + $0x9] sm:$0xff]
      %v4140 = vld [vmem:[#allocation2 + $0x11] sm:$0xff]
      %v4141 = vld [vmem:[#allocation2 + $0x19] sm:$0xff]
      %v4142 = vld [vmem:[#allocation2 + $0x21] sm:$0xff]
      %v4143 = vld [vmem:[#allocation2 + $0x29] sm:$0xff]
      %v4144 = vld [vmem:[#allocation2 + $0x31] sm:$0xff]
      %v4145 = vld [vmem:[#allocation2 + $0x39] sm:$0xff]
      %v4146 = vld [vmem:[#allocation2 + $0x41] sm:$0xff]
      %v4147 = vld [vmem:[#allocation2 + $0x49] sm:$0xff]
      %v4148 = vld [vmem:[#allocation2 + $0x51] sm:$0xff]
      %v4149 = vld [vmem:[#allocation2 + $0x59] sm:$0xff]
      %v4150 = vld [vmem:[#allocation2 + $0x61] sm:$0xff]
      %v4151 = vld [vmem:[#allocation2 + $0x69] sm:$0xff]
      %v4152 = vld [vmem:[#allocation2 + $0x71] sm:$0xff]
      %v4153 = vld [vmem:[#allocation2 + $0x79] sm:$0xff]
      %v4154 = vld [vmem:[#allocation2 + $0x81] sm:$0xff]
      %v4155 = vld [vmem:[#allocation2 + $0x89] sm:$0xff]
      %v4156 = vld [vmem:[#allocation2 + $0x91] sm:$0xff]
      %v4157 = vld [vmem:[#allocation2 + $0x99] sm:$0xff]
      %v4158 = vld [vmem:[#allocation2 + $0xa1] sm:$0xff]
      %v4159 = vld [vmem:[#allocation2 + $0xa9] sm:$0xff]
      %v4160 = vld [vmem:[#allocation2 + $0xb1] sm:$0xff]
      %v4161 = vld [vmem:[#allocation2 + $0xb9] sm:$0xff]
      %v4162 = vld [vmem:[#allocation2 + $0xc1] sm:$0xff]
      %v4163 = vld [vmem:[#allocation2 + $0xc9] sm:$0xff]
      %v4164 = vld [vmem:[#allocation2 + $0xd1] sm:$0xff]
      %v4165 = vld [vmem:[#allocation2 + $0xd9] sm:$0xff]
      %v4166 = vld [vmem:[#allocation2 + $0xe1] sm:$0xff]
      %v4167 = vld [vmem:[#allocation2 + $0xe9] sm:$0xff]
      %v4168 = vld [vmem:[#allocation2 + $0xf1] sm:$0xff]
      %v4169 = vld [vmem:[#allocation2 + $0xf9] sm:$0xff]
      %v4170 = vld [vmem:[#allocation2 + $0x101] sm:$0xff]
      %v4171 = vmul.f32 %v4139, %v856
      %v4172 = vmul.f32 %v4140, %v857
      %v4173 = vmul.f32 %v4141, %v858
      %v4174 = vmul.f32 %v4142, %v859
      %v4175 = vmul.f32 %v4143, %v860
      %v4176 = vmul.f32 %v4144, %v861
      %v4177 = vmul.f32 %v4145, %v862
      %v4178 = vmul.f32 %v4146, %v863
      %v4179 = vmul.f32 %v4147, %v864
      %v4180 = vmul.f32 %v4148, %v865
      %v4181 = vmul.f32 %v4149, %v866
      %v4182 = vmul.f32 %v4150, %v867
      %v4183 = vmul.f32 %v4151, %v868
      %v4184 = vmul.f32 %v4152, %v869
      %v4185 = vmul.f32 %v4153, %v870
      %v4186 = vmul.f32 %v4154, %v871
      %v4187 = vmul.f32 %v4155, %v872
      %v4188 = vmul.f32 %v4156, %v873
      %v4189 = vmul.f32 %v4157, %v874
      %v4190 = vmul.f32 %v4158, %v875
      %v4191 = vmul.f32 %v4159, %v876
      %v4192 = vmul.f32 %v4160, %v877
      %v4193 = vmul.f32 %v4161, %v878
      %v4194 = vmul.f32 %v4162, %v879
      %v4195 = vmul.f32 %v4163, %v880
      %v4196 = vmul.f32 %v4164, %v881
      %v4197 = vmul.f32 %v4165, %v882
      %v4198 = vmul.f32 %v4166, %v883
      %v4199 = vmul.f32 %v4167, %v884
      %v4200 = vmul.f32 %v4168, %v885
      %v4201 = vmul.f32 %v4169, %v886
      %v4202 = vmul.f32 %v4170, %v887
      %s4203 = scalar_lea.vmem %s3, 64
      %v4204 = vld [vmem:[%s4203] sm:$0xff]
      %v4205 = vld [vmem:[%s4203 + $0x8] sm:$0xff]
      %v4206 = vld [vmem:[%s4203 + $0x10] sm:$0xff]
      %v4207 = vld [vmem:[%s4203 + $0x18] sm:$0xff]
      %v4209 = vsel %vm3577, %v4171, 0
      %v4212 = vsel %vm3577, %v4172, 0
      %v4215 = vsel %vm3577, %v4173, 0
      %v4218 = vsel %vm3577, %v4174, 0
      %v4221 = vsel %vm3577, %v4175, 0
      %v4224 = vsel %vm3577, %v4176, 0
      %v4227 = vsel %vm3577, %v4177, 0
      %v4230 = vsel %vm3577, %v4178, 0
      %v4233 = vsel %vm3577, %v4179, 0
      %v4236 = vsel %vm3577, %v4180, 0
      %v4239 = vsel %vm3577, %v4181, 0
      %v4242 = vsel %vm3577, %v4182, 0
      %v4245 = vsel %vm3577, %v4183, 0
      %v4248 = vsel %vm3577, %v4184, 0
      %v4251 = vsel %vm3577, %v4185, 0
      %v4254 = vsel %vm3577, %v4186, 0
      %v4257 = vsel %vm3577, %v4187, 0
      %v4260 = vsel %vm3577, %v4188, 0
      %v4263 = vsel %vm3577, %v4189, 0
      %v4266 = vsel %vm3577, %v4190, 0
      %v4269 = vsel %vm3577, %v4191, 0
      %v4272 = vsel %vm3577, %v4192, 0
      %v4275 = vsel %vm3577, %v4193, 0
      %v4278 = vsel %vm3577, %v4194, 0
      %v4281 = vsel %vm3577, %v4195, 0
      %v4284 = vsel %vm3577, %v4196, 0
      %v4287 = vsel %vm3577, %v4197, 0
      %v4290 = vsel %vm3577, %v4198, 0
      %v4293 = vsel %vm3577, %v4199, 0
      %v4296 = vsel %vm3577, %v4200, 0
      %v4299 = vsel %vm3577, %v4201, 0
      %v4302 = vsel %vm3577, %v4202, 0
      %4304 = vmatpush.msra.mxu0 0.0
      %4305 = vmatpush.msra.mxu0 0.0
      %4306 = vmatpush.msra.mxu0 0.0
      %4307 = vmatpush.msra.mxu0 0.0
      %4308 = vmatpush.msra.mxu0 0.0
      %4309 = vmatpush.msra.mxu0 0.0
      %4310 = vmatpush.msra.mxu0 0.0
      %4311 = vmatpush.msra.mxu0 0.0
      %4312 = vmatpush.msra.mxu0 0.0
      %4313 = vmatpush.msra.mxu0 0.0
      %4314 = vmatpush.msra.mxu0 0.0
      %4315 = vmatpush.msra.mxu0 0.0
      %4316 = vmatpush.msra.mxu0 %v4207
      %4317 = vmatpush.msra.mxu0 %v4206
      %4318 = vmatpush.msra.mxu0 %v4205
      %4319 = vmatpush.msra.mxu0 %v4204
      %4320 = vmatmul.f32.gmra.mxu0 %v4209
      %v4321 = vpop.f32.mrf.mxu0
      %v4322 = vadd.f32 0.0, %v4321
      %4323 = vmatmul.f32.gmra.mxu0 %v4212
      %v4324 = vpop.f32.mrf.mxu0
      %v4325 = vadd.f32 0.0, %v4324
      %4326 = vmatmul.f32.gmra.mxu0 %v4215
      %v4327 = vpop.f32.mrf.mxu0
      %v4328 = vadd.f32 0.0, %v4327
      %4329 = vmatmul.f32.gmra.mxu0 %v4218
      %v4330 = vpop.f32.mrf.mxu0
      %v4331 = vadd.f32 0.0, %v4330
      %4332 = vmatmul.f32.gmra.mxu0 %v4221
      %v4333 = vpop.f32.mrf.mxu0
      %v4334 = vadd.f32 0.0, %v4333
      %4335 = vmatmul.f32.gmra.mxu0 %v4224
      %v4336 = vpop.f32.mrf.mxu0
      %v4337 = vadd.f32 0.0, %v4336
      %4338 = vmatmul.f32.gmra.mxu0 %v4227
      %v4339 = vpop.f32.mrf.mxu0
      %v4340 = vadd.f32 0.0, %v4339
      %4341 = vmatmul.f32.gmra.mxu0 %v4230
      %v4342 = vpop.f32.mrf.mxu0
      %v4343 = vadd.f32 0.0, %v4342
      %4344 = vmatmul.f32.gmra.mxu0 %v4233
      %v4345 = vpop.f32.mrf.mxu0
      %v4346 = vadd.f32 0.0, %v4345
      %4347 = vmatmul.f32.gmra.mxu0 %v4236
      %v4348 = vpop.f32.mrf.mxu0
      %v4349 = vadd.f32 0.0, %v4348
      %4350 = vmatmul.f32.gmra.mxu0 %v4239
      %v4351 = vpop.f32.mrf.mxu0
      %v4352 = vadd.f32 0.0, %v4351
      %4353 = vmatmul.f32.gmra.mxu0 %v4242
      %v4354 = vpop.f32.mrf.mxu0
      %v4355 = vadd.f32 0.0, %v4354
      %4356 = vmatmul.f32.gmra.mxu0 %v4245
      %v4357 = vpop.f32.mrf.mxu0
      %v4358 = vadd.f32 0.0, %v4357
      %4359 = vmatmul.f32.gmra.mxu0 %v4248
      %v4360 = vpop.f32.mrf.mxu0
      %v4361 = vadd.f32 0.0, %v4360
      %4362 = vmatmul.f32.gmra.mxu0 %v4251
      %v4363 = vpop.f32.mrf.mxu0
      %v4364 = vadd.f32 0.0, %v4363
      %4365 = vmatmul.f32.gmra.mxu0 %v4254
      %v4366 = vpop.f32.mrf.mxu0
      %v4367 = vadd.f32 0.0, %v4366
      %4368 = vmatmul.f32.gmra.mxu0 %v4257
      %v4369 = vpop.f32.mrf.mxu0
      %v4370 = vadd.f32 0.0, %v4369
      %4371 = vmatmul.f32.gmra.mxu0 %v4260
      %v4372 = vpop.f32.mrf.mxu0
      %v4373 = vadd.f32 0.0, %v4372
      %4374 = vmatmul.f32.gmra.mxu0 %v4263
      %v4375 = vpop.f32.mrf.mxu0
      %v4376 = vadd.f32 0.0, %v4375
      %4377 = vmatmul.f32.gmra.mxu0 %v4266
      %v4378 = vpop.f32.mrf.mxu0
      %v4379 = vadd.f32 0.0, %v4378
      %4380 = vmatmul.f32.gmra.mxu0 %v4269
      %v4381 = vpop.f32.mrf.mxu0
      %v4382 = vadd.f32 0.0, %v4381
      %4383 = vmatmul.f32.gmra.mxu0 %v4272
      %v4384 = vpop.f32.mrf.mxu0
      %v4385 = vadd.f32 0.0, %v4384
      %4386 = vmatmul.f32.gmra.mxu0 %v4275
      %v4387 = vpop.f32.mrf.mxu0
      %v4388 = vadd.f32 0.0, %v4387
      %4389 = vmatmul.f32.gmra.mxu0 %v4278
      %v4390 = vpop.f32.mrf.mxu0
      %v4391 = vadd.f32 0.0, %v4390
      %4392 = vmatmul.f32.gmra.mxu0 %v4281
      %v4393 = vpop.f32.mrf.mxu0
      %v4394 = vadd.f32 0.0, %v4393
      %4395 = vmatmul.f32.gmra.mxu0 %v4284
      %v4396 = vpop.f32.mrf.mxu0
      %v4397 = vadd.f32 0.0, %v4396
      %4398 = vmatmul.f32.gmra.mxu0 %v4287
      %v4399 = vpop.f32.mrf.mxu0
      %v4400 = vadd.f32 0.0, %v4399
      %4401 = vmatmul.f32.gmra.mxu0 %v4290
      %v4402 = vpop.f32.mrf.mxu0
      %v4403 = vadd.f32 0.0, %v4402
      %4404 = vmatmul.f32.gmra.mxu0 %v4293
      %v4405 = vpop.f32.mrf.mxu0
      %v4406 = vadd.f32 0.0, %v4405
      %4407 = vmatmul.f32.gmra.mxu0 %v4296
      %v4408 = vpop.f32.mrf.mxu0
      %v4409 = vadd.f32 0.0, %v4408
      %4410 = vmatmul.f32.gmra.mxu0 %v4299
      %v4411 = vpop.f32.mrf.mxu0
      %v4412 = vadd.f32 0.0, %v4411
      %4413 = vmatmul.f32.gmra.mxu0 %v4302
      %v4414 = vpop.f32.mrf.mxu0
      %v4415 = vadd.f32 0.0, %v4414
      %4416 = vdwg.mxu0
      %v4417 = vadd.f32 %v4044, %v4322
      %v4418 = vadd.f32 %v4047, %v4325
      %v4419 = vadd.f32 %v4050, %v4328
      %v4420 = vadd.f32 %v4053, %v4331
      %v4421 = vadd.f32 %v4056, %v4334
      %v4422 = vadd.f32 %v4059, %v4337
      %v4423 = vadd.f32 %v4062, %v4340
      %v4424 = vadd.f32 %v4065, %v4343
      %v4425 = vadd.f32 %v4068, %v4346
      %v4426 = vadd.f32 %v4071, %v4349
      %v4427 = vadd.f32 %v4074, %v4352
      %v4428 = vadd.f32 %v4077, %v4355
      %v4429 = vadd.f32 %v4080, %v4358
      %v4430 = vadd.f32 %v4083, %v4361
      %v4431 = vadd.f32 %v4086, %v4364
      %v4432 = vadd.f32 %v4089, %v4367
      %v4433 = vadd.f32 %v4092, %v4370
      %v4434 = vadd.f32 %v4095, %v4373
      %v4435 = vadd.f32 %v4098, %v4376
      %v4436 = vadd.f32 %v4101, %v4379
      %v4437 = vadd.f32 %v4104, %v4382
      %v4438 = vadd.f32 %v4107, %v4385
      %v4439 = vadd.f32 %v4110, %v4388
      %v4440 = vadd.f32 %v4113, %v4391
      %v4441 = vadd.f32 %v4116, %v4394
      %v4442 = vadd.f32 %v4119, %v4397
      %v4443 = vadd.f32 %v4122, %v4400
      %v4444 = vadd.f32 %v4125, %v4403
      %v4445 = vadd.f32 %v4128, %v4406
      %v4446 = vadd.f32 %v4131, %v4409
      %v4447 = vadd.f32 %v4134, %v4412
      %v4448 = vadd.f32 %v4137, %v4415
      %v4449 = vld [vmem:[#allocation2 + $0x17] sm:$0xff]
      %v4450 = vld [vmem:[#allocation2 + $0x1f] sm:$0xff]
      %v4451 = vld [vmem:[#allocation2 + $0x27] sm:$0xff]
      %v4452 = vld [vmem:[#allocation2 + $0x2f] sm:$0xff]
      %v4453 = vld [vmem:[#allocation2 + $0x37] sm:$0xff]
      %v4454 = vld [vmem:[#allocation2 + $0x3f] sm:$0xff]
      %v4455 = vld [vmem:[#allocation2 + $0x47] sm:$0xff]
      %v4456 = vld [vmem:[#allocation2 + $0x4f] sm:$0xff]
      %v4457 = vld [vmem:[#allocation2 + $0x57] sm:$0xff]
      %v4458 = vld [vmem:[#allocation2 + $0x5f] sm:$0xff]
      %v4459 = vld [vmem:[#allocation2 + $0x67] sm:$0xff]
      %v4460 = vld [vmem:[#allocation2 + $0x6f] sm:$0xff]
      %v4461 = vld [vmem:[#allocation2 + $0x77] sm:$0xff]
      %v4462 = vld [vmem:[#allocation2 + $0x7f] sm:$0xff]
      %v4463 = vld [vmem:[#allocation2 + $0x87] sm:$0xff]
      %v4464 = vld [vmem:[#allocation2 + $0x8f] sm:$0xff]
      %v4465 = vld [vmem:[#allocation2 + $0x97] sm:$0xff]
      %v4466 = vld [vmem:[#allocation2 + $0x9f] sm:$0xff]
      %v4467 = vld [vmem:[#allocation2 + $0xa7] sm:$0xff]
      %v4468 = vld [vmem:[#allocation2 + $0xaf] sm:$0xff]
      %v4469 = vld [vmem:[#allocation2 + $0xb7] sm:$0xff]
      %v4470 = vld [vmem:[#allocation2 + $0xbf] sm:$0xff]
      %v4471 = vld [vmem:[#allocation2 + $0xc7] sm:$0xff]
      %v4472 = vld [vmem:[#allocation2 + $0xcf] sm:$0xff]
      %v4473 = vld [vmem:[#allocation2 + $0xd7] sm:$0xff]
      %v4474 = vld [vmem:[#allocation2 + $0xdf] sm:$0xff]
      %v4475 = vld [vmem:[#allocation2 + $0xe7] sm:$0xff]
      %v4476 = vld [vmem:[#allocation2 + $0xef] sm:$0xff]
      %v4477 = vld [vmem:[#allocation2 + $0xf7] sm:$0xff]
      %v4478 = vld [vmem:[#allocation2 + $0xff] sm:$0xff]
      %v4479 = vld [vmem:[#allocation2 + $0x107] sm:$0xff]
      %v4480 = vld [vmem:[#allocation2 + $0x10f] sm:$0xff]
      %v4481 = vmul.f32 %v4449, %v760
      %v4482 = vmul.f32 %v4450, %v761
      %v4483 = vmul.f32 %v4451, %v762
      %v4484 = vmul.f32 %v4452, %v763
      %v4485 = vmul.f32 %v4453, %v764
      %v4486 = vmul.f32 %v4454, %v765
      %v4487 = vmul.f32 %v4455, %v766
      %v4488 = vmul.f32 %v4456, %v767
      %v4489 = vmul.f32 %v4457, %v768
      %v4490 = vmul.f32 %v4458, %v769
      %v4491 = vmul.f32 %v4459, %v770
      %v4492 = vmul.f32 %v4460, %v771
      %v4493 = vmul.f32 %v4461, %v772
      %v4494 = vmul.f32 %v4462, %v773
      %v4495 = vmul.f32 %v4463, %v774
      %v4496 = vmul.f32 %v4464, %v775
      %v4497 = vmul.f32 %v4465, %v776
      %v4498 = vmul.f32 %v4466, %v777
      %v4499 = vmul.f32 %v4467, %v778
      %v4500 = vmul.f32 %v4468, %v779
      %v4501 = vmul.f32 %v4469, %v780
      %v4502 = vmul.f32 %v4470, %v781
      %v4503 = vmul.f32 %v4471, %v782
      %v4504 = vmul.f32 %v4472, %v783
      %v4505 = vmul.f32 %v4473, %v784
      %v4506 = vmul.f32 %v4474, %v785
      %v4507 = vmul.f32 %v4475, %v786
      %v4508 = vmul.f32 %v4476, %v787
      %v4509 = vmul.f32 %v4477, %v788
      %v4510 = vmul.f32 %v4478, %v789
      %v4511 = vmul.f32 %v4479, %v790
      %v4512 = vmul.f32 %v4480, %v791
      %s4513 = scalar_lea.vmem %s3, 96
      %v4514 = vld [vmem:[%s4513] sm:$0xff]
      %v4515 = vld [vmem:[%s4513 + $0x8] sm:$0xff]
      %v4516 = vld [vmem:[%s4513 + $0x10] sm:$0xff]
      %v4517 = vld [vmem:[%s4513 + $0x18] sm:$0xff]
      %v4519 = vsel %vm3577, %v4481, 0
      %v4522 = vsel %vm3577, %v4482, 0
      %v4525 = vsel %vm3577, %v4483, 0
      %v4528 = vsel %vm3577, %v4484, 0
      %v4531 = vsel %vm3577, %v4485, 0
      %v4534 = vsel %vm3577, %v4486, 0
      %v4537 = vsel %vm3577, %v4487, 0
      %v4540 = vsel %vm3577, %v4488, 0
      %v4543 = vsel %vm3577, %v4489, 0
      %v4546 = vsel %vm3577, %v4490, 0
      %v4549 = vsel %vm3577, %v4491, 0
      %v4552 = vsel %vm3577, %v4492, 0
      %v4555 = vsel %vm3577, %v4493, 0
      %v4558 = vsel %vm3577, %v4494, 0
      %v4561 = vsel %vm3577, %v4495, 0
      %v4564 = vsel %vm3577, %v4496, 0
      %v4567 = vsel %vm3577, %v4497, 0
      %v4570 = vsel %vm3577, %v4498, 0
      %v4573 = vsel %vm3577, %v4499, 0
      %v4576 = vsel %vm3577, %v4500, 0
      %v4579 = vsel %vm3577, %v4501, 0
      %v4582 = vsel %vm3577, %v4502, 0
      %v4585 = vsel %vm3577, %v4503, 0
      %v4588 = vsel %vm3577, %v4504, 0
      %v4591 = vsel %vm3577, %v4505, 0
      %v4594 = vsel %vm3577, %v4506, 0
      %v4597 = vsel %vm3577, %v4507, 0
      %v4600 = vsel %vm3577, %v4508, 0
      %v4603 = vsel %vm3577, %v4509, 0
      %v4606 = vsel %vm3577, %v4510, 0
      %v4609 = vsel %vm3577, %v4511, 0
      %v4612 = vsel %vm3577, %v4512, 0
      %4614 = vmatpush.msra.mxu0 0.0
      %4615 = vmatpush.msra.mxu0 0.0
      %4616 = vmatpush.msra.mxu0 0.0
      %4617 = vmatpush.msra.mxu0 0.0
      %4618 = vmatpush.msra.mxu0 0.0
      %4619 = vmatpush.msra.mxu0 0.0
      %4620 = vmatpush.msra.mxu0 0.0
      %4621 = vmatpush.msra.mxu0 0.0
      %4622 = vmatpush.msra.mxu0 0.0
      %4623 = vmatpush.msra.mxu0 0.0
      %4624 = vmatpush.msra.mxu0 0.0
      %4625 = vmatpush.msra.mxu0 0.0
      %4626 = vmatpush.msra.mxu0 %v4517
      %4627 = vmatpush.msra.mxu0 %v4516
      %4628 = vmatpush.msra.mxu0 %v4515
      %4629 = vmatpush.msra.mxu0 %v4514
      %4630 = vmatmul.f32.gmra.mxu0 %v4519
      %v4631 = vpop.f32.mrf.mxu0
      %v4632 = vadd.f32 0.0, %v4631
      %4633 = vmatmul.f32.gmra.mxu0 %v4522
      %v4634 = vpop.f32.mrf.mxu0
      %v4635 = vadd.f32 0.0, %v4634
      %4636 = vmatmul.f32.gmra.mxu0 %v4525
      %v4637 = vpop.f32.mrf.mxu0
      %v4638 = vadd.f32 0.0, %v4637
      %4639 = vmatmul.f32.gmra.mxu0 %v4528
      %v4640 = vpop.f32.mrf.mxu0
      %v4641 = vadd.f32 0.0, %v4640
      %4642 = vmatmul.f32.gmra.mxu0 %v4531
      %v4643 = vpop.f32.mrf.mxu0
      %v4644 = vadd.f32 0.0, %v4643
      %4645 = vmatmul.f32.gmra.mxu0 %v4534
      %v4646 = vpop.f32.mrf.mxu0
      %v4647 = vadd.f32 0.0, %v4646
      %4648 = vmatmul.f32.gmra.mxu0 %v4537
      %v4649 = vpop.f32.mrf.mxu0
      %v4650 = vadd.f32 0.0, %v4649
      %4651 = vmatmul.f32.gmra.mxu0 %v4540
      %v4652 = vpop.f32.mrf.mxu0
      %v4653 = vadd.f32 0.0, %v4652
      %4654 = vmatmul.f32.gmra.mxu0 %v4543
      %v4655 = vpop.f32.mrf.mxu0
      %v4656 = vadd.f32 0.0, %v4655
      %4657 = vmatmul.f32.gmra.mxu0 %v4546
      %v4658 = vpop.f32.mrf.mxu0
      %v4659 = vadd.f32 0.0, %v4658
      %4660 = vmatmul.f32.gmra.mxu0 %v4549
      %v4661 = vpop.f32.mrf.mxu0
      %v4662 = vadd.f32 0.0, %v4661
      %4663 = vmatmul.f32.gmra.mxu0 %v4552
      %v4664 = vpop.f32.mrf.mxu0
      %v4665 = vadd.f32 0.0, %v4664
      %4666 = vmatmul.f32.gmra.mxu0 %v4555
      %v4667 = vpop.f32.mrf.mxu0
      %v4668 = vadd.f32 0.0, %v4667
      %4669 = vmatmul.f32.gmra.mxu0 %v4558
      %v4670 = vpop.f32.mrf.mxu0
      %v4671 = vadd.f32 0.0, %v4670
      %4672 = vmatmul.f32.gmra.mxu0 %v4561
      %v4673 = vpop.f32.mrf.mxu0
      %v4674 = vadd.f32 0.0, %v4673
      %4675 = vmatmul.f32.gmra.mxu0 %v4564
      %v4676 = vpop.f32.mrf.mxu0
      %v4677 = vadd.f32 0.0, %v4676
      %4678 = vmatmul.f32.gmra.mxu0 %v4567
      %v4679 = vpop.f32.mrf.mxu0
      %v4680 = vadd.f32 0.0, %v4679
      %4681 = vmatmul.f32.gmra.mxu0 %v4570
      %v4682 = vpop.f32.mrf.mxu0
      %v4683 = vadd.f32 0.0, %v4682
      %4684 = vmatmul.f32.gmra.mxu0 %v4573
      %v4685 = vpop.f32.mrf.mxu0
      %v4686 = vadd.f32 0.0, %v4685
      %4687 = vmatmul.f32.gmra.mxu0 %v4576
      %v4688 = vpop.f32.mrf.mxu0
      %v4689 = vadd.f32 0.0, %v4688
      %4690 = vmatmul.f32.gmra.mxu0 %v4579
      %v4691 = vpop.f32.mrf.mxu0
      %v4692 = vadd.f32 0.0, %v4691
      %4693 = vmatmul.f32.gmra.mxu0 %v4582
      %v4694 = vpop.f32.mrf.mxu0
      %v4695 = vadd.f32 0.0, %v4694
      %4696 = vmatmul.f32.gmra.mxu0 %v4585
      %v4697 = vpop.f32.mrf.mxu0
      %v4698 = vadd.f32 0.0, %v4697
      %4699 = vmatmul.f32.gmra.mxu0 %v4588
      %v4700 = vpop.f32.mrf.mxu0
      %v4701 = vadd.f32 0.0, %v4700
      %4702 = vmatmul.f32.gmra.mxu0 %v4591
      %v4703 = vpop.f32.mrf.mxu0
      %v4704 = vadd.f32 0.0, %v4703
      %4705 = vmatmul.f32.gmra.mxu0 %v4594
      %v4706 = vpop.f32.mrf.mxu0
      %v4707 = vadd.f32 0.0, %v4706
      %4708 = vmatmul.f32.gmra.mxu0 %v4597
      %v4709 = vpop.f32.mrf.mxu0
      %v4710 = vadd.f32 0.0, %v4709
      %4711 = vmatmul.f32.gmra.mxu0 %v4600
      %v4712 = vpop.f32.mrf.mxu0
      %v4713 = vadd.f32 0.0, %v4712
      %4714 = vmatmul.f32.gmra.mxu0 %v4603
      %v4715 = vpop.f32.mrf.mxu0
      %v4716 = vadd.f32 0.0, %v4715
      %4717 = vmatmul.f32.gmra.mxu0 %v4606
      %v4718 = vpop.f32.mrf.mxu0
      %v4719 = vadd.f32 0.0, %v4718
      %4720 = vmatmul.f32.gmra.mxu0 %v4609
      %v4721 = vpop.f32.mrf.mxu0
      %v4722 = vadd.f32 0.0, %v4721
      %4723 = vmatmul.f32.gmra.mxu0 %v4612
      %v4724 = vpop.f32.mrf.mxu0
      %v4725 = vadd.f32 0.0, %v4724
      %4726 = vdwg.mxu0
      %v4727 = vadd.f32 %v4417, %v4632
      %v4728 = vadd.f32 %v4418, %v4635
      %v4729 = vadd.f32 %v4419, %v4638
      %v4730 = vadd.f32 %v4420, %v4641
      %v4731 = vadd.f32 %v4421, %v4644
      %v4732 = vadd.f32 %v4422, %v4647
      %v4733 = vadd.f32 %v4423, %v4650
      %v4734 = vadd.f32 %v4424, %v4653
      %v4735 = vadd.f32 %v4425, %v4656
      %v4736 = vadd.f32 %v4426, %v4659
      %v4737 = vadd.f32 %v4427, %v4662
      %v4738 = vadd.f32 %v4428, %v4665
      %v4739 = vadd.f32 %v4429, %v4668
      %v4740 = vadd.f32 %v4430, %v4671
      %v4741 = vadd.f32 %v4431, %v4674
      %v4742 = vadd.f32 %v4432, %v4677
      %v4743 = vadd.f32 %v4433, %v4680
      %v4744 = vadd.f32 %v4434, %v4683
      %v4745 = vadd.f32 %v4435, %v4686
      %v4746 = vadd.f32 %v4436, %v4689
      %v4747 = vadd.f32 %v4437, %v4692
      %v4748 = vadd.f32 %v4438, %v4695
      %v4749 = vadd.f32 %v4439, %v4698
      %v4750 = vadd.f32 %v4440, %v4701
      %v4751 = vadd.f32 %v4441, %v4704
      %v4752 = vadd.f32 %v4442, %v4707
      %v4753 = vadd.f32 %v4443, %v4710
      %v4754 = vadd.f32 %v4444, %v4713
      %v4755 = vadd.f32 %v4445, %v4716
      %v4756 = vadd.f32 %v4446, %v4719
      %v4757 = vadd.f32 %v4447, %v4722
      %v4758 = vadd.f32 %v4448, %v4725
      %v4759 = vld [vmem:[#allocation2 + $0x18] sm:$0xff]
      %v4760 = vld [vmem:[#allocation2 + $0x20] sm:$0xff]
      %v4761 = vld [vmem:[#allocation2 + $0x28] sm:$0xff]
      %v4762 = vld [vmem:[#allocation2 + $0x30] sm:$0xff]
      %v4763 = vld [vmem:[#allocation2 + $0x38] sm:$0xff]
      %v4764 = vld [vmem:[#allocation2 + $0x40] sm:$0xff]
      %v4765 = vld [vmem:[#allocation2 + $0x48] sm:$0xff]
      %v4766 = vld [vmem:[#allocation2 + $0x50] sm:$0xff]
      %v4767 = vld [vmem:[#allocation2 + $0x58] sm:$0xff]
      %v4768 = vld [vmem:[#allocation2 + $0x60] sm:$0xff]
      %v4769 = vld [vmem:[#allocation2 + $0x68] sm:$0xff]
      %v4770 = vld [vmem:[#allocation2 + $0x70] sm:$0xff]
      %v4771 = vld [vmem:[#allocation2 + $0x78] sm:$0xff]
      %v4772 = vld [vmem:[#allocation2 + $0x80] sm:$0xff]
      %v4773 = vld [vmem:[#allocation2 + $0x88] sm:$0xff]
      %v4774 = vld [vmem:[#allocation2 + $0x90] sm:$0xff]
      %v4775 = vld [vmem:[#allocation2 + $0x98] sm:$0xff]
      %v4776 = vld [vmem:[#allocation2 + $0xa0] sm:$0xff]
      %v4777 = vld [vmem:[#allocation2 + $0xa8] sm:$0xff]
      %v4778 = vld [vmem:[#allocation2 + $0xb0] sm:$0xff]
      %v4779 = vld [vmem:[#allocation2 + $0xb8] sm:$0xff]
      %v4780 = vld [vmem:[#allocation2 + $0xc0] sm:$0xff]
      %v4781 = vld [vmem:[#allocation2 + $0xc8] sm:$0xff]
      %v4782 = vld [vmem:[#allocation2 + $0xd0] sm:$0xff]
      %v4783 = vld [vmem:[#allocation2 + $0xd8] sm:$0xff]
      %v4784 = vld [vmem:[#allocation2 + $0xe0] sm:$0xff]
      %v4785 = vld [vmem:[#allocation2 + $0xe8] sm:$0xff]
      %v4786 = vld [vmem:[#allocation2 + $0xf0] sm:$0xff]
      %v4787 = vld [vmem:[#allocation2 + $0xf8] sm:$0xff]
      %v4788 = vld [vmem:[#allocation2 + $0x100] sm:$0xff]
      %v4789 = vld [vmem:[#allocation2 + $0x108] sm:$0xff]
      %v4790 = vld [vmem:[#allocation2 + $0x110] sm:$0xff]
      %s4791 = scalar_lea.vmem %s3, 128
      %v4792 = vld [vmem:[%s4791] sm:$0xff]
      %v4793 = vld [vmem:[%s4791 + $0x8] sm:$0xff]
      %v4794 = vld [vmem:[%s4791 + $0x10] sm:$0xff]
      %v4795 = vld [vmem:[%s4791 + $0x18] sm:$0xff]
      %v4797 = vsel %vm3577, %v4759, 0
      %v4800 = vsel %vm3577, %v4760, 0
      %v4803 = vsel %vm3577, %v4761, 0
      %v4806 = vsel %vm3577, %v4762, 0
      %v4809 = vsel %vm3577, %v4763, 0
      %v4812 = vsel %vm3577, %v4764, 0
      %v4815 = vsel %vm3577, %v4765, 0
      %v4818 = vsel %vm3577, %v4766, 0
      %v4821 = vsel %vm3577, %v4767, 0
      %v4824 = vsel %vm3577, %v4768, 0
      %v4827 = vsel %vm3577, %v4769, 0
      %v4830 = vsel %vm3577, %v4770, 0
      %v4833 = vsel %vm3577, %v4771, 0
      %v4836 = vsel %vm3577, %v4772, 0
      %v4839 = vsel %vm3577, %v4773, 0
      %v4842 = vsel %vm3577, %v4774, 0
      %v4845 = vsel %vm3577, %v4775, 0
      %v4848 = vsel %vm3577, %v4776, 0
      %v4851 = vsel %vm3577, %v4777, 0
      %v4854 = vsel %vm3577, %v4778, 0
      %v4857 = vsel %vm3577, %v4779, 0
      %v4860 = vsel %vm3577, %v4780, 0
      %v4863 = vsel %vm3577, %v4781, 0
      %v4866 = vsel %vm3577, %v4782, 0
      %v4869 = vsel %vm3577, %v4783, 0
      %v4872 = vsel %vm3577, %v4784, 0
      %v4875 = vsel %vm3577, %v4785, 0
      %v4878 = vsel %vm3577, %v4786, 0
      %v4881 = vsel %vm3577, %v4787, 0
      %v4884 = vsel %vm3577, %v4788, 0
      %v4887 = vsel %vm3577, %v4789, 0
      %v4890 = vsel %vm3577, %v4790, 0
      %4892 = vmatpush.msra.mxu0 0.0
      %4893 = vmatpush.msra.mxu0 0.0
      %4894 = vmatpush.msra.mxu0 0.0
      %4895 = vmatpush.msra.mxu0 0.0
      %4896 = vmatpush.msra.mxu0 0.0
      %4897 = vmatpush.msra.mxu0 0.0
      %4898 = vmatpush.msra.mxu0 0.0
      %4899 = vmatpush.msra.mxu0 0.0
      %4900 = vmatpush.msra.mxu0 0.0
      %4901 = vmatpush.msra.mxu0 0.0
      %4902 = vmatpush.msra.mxu0 0.0
      %4903 = vmatpush.msra.mxu0 0.0
      %4904 = vmatpush.msra.mxu0 %v4795
      %4905 = vmatpush.msra.mxu0 %v4794
      %4906 = vmatpush.msra.mxu0 %v4793
      %4907 = vmatpush.msra.mxu0 %v4792
      %4908 = vmatmul.f32.gmra.mxu0 %v4797
      %v4909 = vpop.f32.mrf.mxu0
      %v4910 = vadd.f32 0.0, %v4909
      %4911 = vmatmul.f32.gmra.mxu0 %v4800
      %v4912 = vpop.f32.mrf.mxu0
      %v4913 = vadd.f32 0.0, %v4912
      %4914 = vmatmul.f32.gmra.mxu0 %v4803
      %v4915 = vpop.f32.mrf.mxu0
      %v4916 = vadd.f32 0.0, %v4915
      %4917 = vmatmul.f32.gmra.mxu0 %v4806
      %v4918 = vpop.f32.mrf.mxu0
      %v4919 = vadd.f32 0.0, %v4918
      %4920 = vmatmul.f32.gmra.mxu0 %v4809
      %v4921 = vpop.f32.mrf.mxu0
      %v4922 = vadd.f32 0.0, %v4921
      %4923 = vmatmul.f32.gmra.mxu0 %v4812
      %v4924 = vpop.f32.mrf.mxu0
      %v4925 = vadd.f32 0.0, %v4924
      %4926 = vmatmul.f32.gmra.mxu0 %v4815
      %v4927 = vpop.f32.mrf.mxu0
      %v4928 = vadd.f32 0.0, %v4927
      %4929 = vmatmul.f32.gmra.mxu0 %v4818
      %v4930 = vpop.f32.mrf.mxu0
      %v4931 = vadd.f32 0.0, %v4930
      %4932 = vmatmul.f32.gmra.mxu0 %v4821
      %v4933 = vpop.f32.mrf.mxu0
      %v4934 = vadd.f32 0.0, %v4933
      %4935 = vmatmul.f32.gmra.mxu0 %v4824
      %v4936 = vpop.f32.mrf.mxu0
      %v4937 = vadd.f32 0.0, %v4936
      %4938 = vmatmul.f32.gmra.mxu0 %v4827
      %v4939 = vpop.f32.mrf.mxu0
      %v4940 = vadd.f32 0.0, %v4939
      %4941 = vmatmul.f32.gmra.mxu0 %v4830
      %v4942 = vpop.f32.mrf.mxu0
      %v4943 = vadd.f32 0.0, %v4942
      %4944 = vmatmul.f32.gmra.mxu0 %v4833
      %v4945 = vpop.f32.mrf.mxu0
      %v4946 = vadd.f32 0.0, %v4945
      %4947 = vmatmul.f32.gmra.mxu0 %v4836
      %v4948 = vpop.f32.mrf.mxu0
      %v4949 = vadd.f32 0.0, %v4948
      %4950 = vmatmul.f32.gmra.mxu0 %v4839
      %v4951 = vpop.f32.mrf.mxu0
      %v4952 = vadd.f32 0.0, %v4951
      %4953 = vmatmul.f32.gmra.mxu0 %v4842
      %v4954 = vpop.f32.mrf.mxu0
      %v4955 = vadd.f32 0.0, %v4954
      %4956 = vmatmul.f32.gmra.mxu0 %v4845
      %v4957 = vpop.f32.mrf.mxu0
      %v4958 = vadd.f32 0.0, %v4957
      %4959 = vmatmul.f32.gmra.mxu0 %v4848
      %v4960 = vpop.f32.mrf.mxu0
      %v4961 = vadd.f32 0.0, %v4960
      %4962 = vmatmul.f32.gmra.mxu0 %v4851
      %v4963 = vpop.f32.mrf.mxu0
      %v4964 = vadd.f32 0.0, %v4963
      %4965 = vmatmul.f32.gmra.mxu0 %v4854
      %v4966 = vpop.f32.mrf.mxu0
      %v4967 = vadd.f32 0.0, %v4966
      %4968 = vmatmul.f32.gmra.mxu0 %v4857
      %v4969 = vpop.f32.mrf.mxu0
      %v4970 = vadd.f32 0.0, %v4969
      %4971 = vmatmul.f32.gmra.mxu0 %v4860
      %v4972 = vpop.f32.mrf.mxu0
      %v4973 = vadd.f32 0.0, %v4972
      %4974 = vmatmul.f32.gmra.mxu0 %v4863
      %v4975 = vpop.f32.mrf.mxu0
      %v4976 = vadd.f32 0.0, %v4975
      %4977 = vmatmul.f32.gmra.mxu0 %v4866
      %v4978 = vpop.f32.mrf.mxu0
      %v4979 = vadd.f32 0.0, %v4978
      %4980 = vmatmul.f32.gmra.mxu0 %v4869
      %v4981 = vpop.f32.mrf.mxu0
      %v4982 = vadd.f32 0.0, %v4981
      %4983 = vmatmul.f32.gmra.mxu0 %v4872
      %v4984 = vpop.f32.mrf.mxu0
      %v4985 = vadd.f32 0.0, %v4984
      %4986 = vmatmul.f32.gmra.mxu0 %v4875
      %v4987 = vpop.f32.mrf.mxu0
      %v4988 = vadd.f32 0.0, %v4987
      %4989 = vmatmul.f32.gmra.mxu0 %v4878
      %v4990 = vpop.f32.mrf.mxu0
      %v4991 = vadd.f32 0.0, %v4990
      %4992 = vmatmul.f32.gmra.mxu0 %v4881
      %v4993 = vpop.f32.mrf.mxu0
      %v4994 = vadd.f32 0.0, %v4993
      %4995 = vmatmul.f32.gmra.mxu0 %v4884
      %v4996 = vpop.f32.mrf.mxu0
      %v4997 = vadd.f32 0.0, %v4996
      %4998 = vmatmul.f32.gmra.mxu0 %v4887
      %v4999 = vpop.f32.mrf.mxu0
      %v5000 = vadd.f32 0.0, %v4999
      %5001 = vmatmul.f32.gmra.mxu0 %v4890
      %v5002 = vpop.f32.mrf.mxu0
      %v5003 = vadd.f32 0.0, %v5002
      %5004 = vdwg.mxu0
      %v5005 = vadd.f32 %v4727, %v4910
      %v5006 = vadd.f32 %v4728, %v4913
      %v5007 = vadd.f32 %v4729, %v4916
      %v5008 = vadd.f32 %v4730, %v4919
      %v5009 = vadd.f32 %v4731, %v4922
      %v5010 = vadd.f32 %v4732, %v4925
      %v5011 = vadd.f32 %v4733, %v4928
      %v5012 = vadd.f32 %v4734, %v4931
      %v5013 = vadd.f32 %v4735, %v4934
      %v5014 = vadd.f32 %v4736, %v4937
      %v5015 = vadd.f32 %v4737, %v4940
      %v5016 = vadd.f32 %v4738, %v4943
      %v5017 = vadd.f32 %v4739, %v4946
      %v5018 = vadd.f32 %v4740, %v4949
      %v5019 = vadd.f32 %v4741, %v4952
      %v5020 = vadd.f32 %v4742, %v4955
      %v5021 = vadd.f32 %v4743, %v4958
      %v5022 = vadd.f32 %v4744, %v4961
      %v5023 = vadd.f32 %v4745, %v4964
      %v5024 = vadd.f32 %v4746, %v4967
      %v5025 = vadd.f32 %v4747, %v4970
      %v5026 = vadd.f32 %v4748, %v4973
      %v5027 = vadd.f32 %v4749, %v4976
      %v5028 = vadd.f32 %v4750, %v4979
      %v5029 = vadd.f32 %v4751, %v4982
      %v5030 = vadd.f32 %v4752, %v4985
      %v5031 = vadd.f32 %v4753, %v4988
      %v5032 = vadd.f32 %v4754, %v4991
      %v5033 = vadd.f32 %v4755, %v4994
      %v5034 = vadd.f32 %v4756, %v4997
      %v5035 = vadd.f32 %v4757, %v5000
      %v5036 = vadd.f32 %v4758, %v5003
      %v5037 = vld [vmem:[#allocation2 + $0x19] sm:$0xff]
      %v5038 = vld [vmem:[#allocation2 + $0x21] sm:$0xff]
      %v5039 = vld [vmem:[#allocation2 + $0x29] sm:$0xff]
      %v5040 = vld [vmem:[#allocation2 + $0x31] sm:$0xff]
      %v5041 = vld [vmem:[#allocation2 + $0x39] sm:$0xff]
      %v5042 = vld [vmem:[#allocation2 + $0x41] sm:$0xff]
      %v5043 = vld [vmem:[#allocation2 + $0x49] sm:$0xff]
      %v5044 = vld [vmem:[#allocation2 + $0x51] sm:$0xff]
      %v5045 = vld [vmem:[#allocation2 + $0x59] sm:$0xff]
      %v5046 = vld [vmem:[#allocation2 + $0x61] sm:$0xff]
      %v5047 = vld [vmem:[#allocation2 + $0x69] sm:$0xff]
      %v5048 = vld [vmem:[#allocation2 + $0x71] sm:$0xff]
      %v5049 = vld [vmem:[#allocation2 + $0x79] sm:$0xff]
      %v5050 = vld [vmem:[#allocation2 + $0x81] sm:$0xff]
      %v5051 = vld [vmem:[#allocation2 + $0x89] sm:$0xff]
      %v5052 = vld [vmem:[#allocation2 + $0x91] sm:$0xff]
      %v5053 = vld [vmem:[#allocation2 + $0x99] sm:$0xff]
      %v5054 = vld [vmem:[#allocation2 + $0xa1] sm:$0xff]
      %v5055 = vld [vmem:[#allocation2 + $0xa9] sm:$0xff]
      %v5056 = vld [vmem:[#allocation2 + $0xb1] sm:$0xff]
      %v5057 = vld [vmem:[#allocation2 + $0xb9] sm:$0xff]
      %v5058 = vld [vmem:[#allocation2 + $0xc1] sm:$0xff]
      %v5059 = vld [vmem:[#allocation2 + $0xc9] sm:$0xff]
      %v5060 = vld [vmem:[#allocation2 + $0xd1] sm:$0xff]
      %v5061 = vld [vmem:[#allocation2 + $0xd9] sm:$0xff]
      %v5062 = vld [vmem:[#allocation2 + $0xe1] sm:$0xff]
      %v5063 = vld [vmem:[#allocation2 + $0xe9] sm:$0xff]
      %v5064 = vld [vmem:[#allocation2 + $0xf1] sm:$0xff]
      %v5065 = vld [vmem:[#allocation2 + $0xf9] sm:$0xff]
      %v5066 = vld [vmem:[#allocation2 + $0x101] sm:$0xff]
      %v5067 = vld [vmem:[#allocation2 + $0x109] sm:$0xff]
      %v5068 = vld [vmem:[#allocation2 + $0x111] sm:$0xff]
      %v5069 = vmul.f32 %v5037, %v856
      %v5070 = vmul.f32 %v5038, %v857
      %v5071 = vmul.f32 %v5039, %v858
      %v5072 = vmul.f32 %v5040, %v859
      %v5073 = vmul.f32 %v5041, %v860
      %v5074 = vmul.f32 %v5042, %v861
      %v5075 = vmul.f32 %v5043, %v862
      %v5076 = vmul.f32 %v5044, %v863
      %v5077 = vmul.f32 %v5045, %v864
      %v5078 = vmul.f32 %v5046, %v865
      %v5079 = vmul.f32 %v5047, %v866
      %v5080 = vmul.f32 %v5048, %v867
      %v5081 = vmul.f32 %v5049, %v868
      %v5082 = vmul.f32 %v5050, %v869
      %v5083 = vmul.f32 %v5051, %v870
      %v5084 = vmul.f32 %v5052, %v871
      %v5085 = vmul.f32 %v5053, %v872
      %v5086 = vmul.f32 %v5054, %v873
      %v5087 = vmul.f32 %v5055, %v874
      %v5088 = vmul.f32 %v5056, %v875
      %v5089 = vmul.f32 %v5057, %v876
      %v5090 = vmul.f32 %v5058, %v877
      %v5091 = vmul.f32 %v5059, %v878
      %v5092 = vmul.f32 %v5060, %v879
      %v5093 = vmul.f32 %v5061, %v880
      %v5094 = vmul.f32 %v5062, %v881
      %v5095 = vmul.f32 %v5063, %v882
      %v5096 = vmul.f32 %v5064, %v883
      %v5097 = vmul.f32 %v5065, %v884
      %v5098 = vmul.f32 %v5066, %v885
      %v5099 = vmul.f32 %v5067, %v886
      %v5100 = vmul.f32 %v5068, %v887
      %s5101 = scalar_lea.vmem %s3, 160
      %v5102 = vld [vmem:[%s5101] sm:$0xff]
      %v5103 = vld [vmem:[%s5101 + $0x8] sm:$0xff]
      %v5104 = vld [vmem:[%s5101 + $0x10] sm:$0xff]
      %v5105 = vld [vmem:[%s5101 + $0x18] sm:$0xff]
      %v5107 = vsel %vm3577, %v5069, 0
      %v5110 = vsel %vm3577, %v5070, 0
      %v5113 = vsel %vm3577, %v5071, 0
      %v5116 = vsel %vm3577, %v5072, 0
      %v5119 = vsel %vm3577, %v5073, 0
      %v5122 = vsel %vm3577, %v5074, 0
      %v5125 = vsel %vm3577, %v5075, 0
      %v5128 = vsel %vm3577, %v5076, 0
      %v5131 = vsel %vm3577, %v5077, 0
      %v5134 = vsel %vm3577, %v5078, 0
      %v5137 = vsel %vm3577, %v5079, 0
      %v5140 = vsel %vm3577, %v5080, 0
      %v5143 = vsel %vm3577, %v5081, 0
      %v5146 = vsel %vm3577, %v5082, 0
      %v5149 = vsel %vm3577, %v5083, 0
      %v5152 = vsel %vm3577, %v5084, 0
      %v5155 = vsel %vm3577, %v5085, 0
      %v5158 = vsel %vm3577, %v5086, 0
      %v5161 = vsel %vm3577, %v5087, 0
      %v5164 = vsel %vm3577, %v5088, 0
      %v5167 = vsel %vm3577, %v5089, 0
      %v5170 = vsel %vm3577, %v5090, 0
      %v5173 = vsel %vm3577, %v5091, 0
      %v5176 = vsel %vm3577, %v5092, 0
      %v5179 = vsel %vm3577, %v5093, 0
      %v5182 = vsel %vm3577, %v5094, 0
      %v5185 = vsel %vm3577, %v5095, 0
      %v5188 = vsel %vm3577, %v5096, 0
      %v5191 = vsel %vm3577, %v5097, 0
      %v5194 = vsel %vm3577, %v5098, 0
      %v5197 = vsel %vm3577, %v5099, 0
      %v5200 = vsel %vm3577, %v5100, 0
      %5202 = vmatpush.msra.mxu0 0.0
      %5203 = vmatpush.msra.mxu0 0.0
      %5204 = vmatpush.msra.mxu0 0.0
      %5205 = vmatpush.msra.mxu0 0.0
      %5206 = vmatpush.msra.mxu0 0.0
      %5207 = vmatpush.msra.mxu0 0.0
      %5208 = vmatpush.msra.mxu0 0.0
      %5209 = vmatpush.msra.mxu0 0.0
      %5210 = vmatpush.msra.mxu0 0.0
      %5211 = vmatpush.msra.mxu0 0.0
      %5212 = vmatpush.msra.mxu0 0.0
      %5213 = vmatpush.msra.mxu0 0.0
      %5214 = vmatpush.msra.mxu0 %v5105
      %5215 = vmatpush.msra.mxu0 %v5104
      %5216 = vmatpush.msra.mxu0 %v5103
      %5217 = vmatpush.msra.mxu0 %v5102
      %5218 = vmatmul.f32.gmra.mxu0 %v5107
      %v5219 = vpop.f32.mrf.mxu0
      %v5220 = vadd.f32 0.0, %v5219
      %5221 = vmatmul.f32.gmra.mxu0 %v5110
      %v5222 = vpop.f32.mrf.mxu0
      %v5223 = vadd.f32 0.0, %v5222
      %5224 = vmatmul.f32.gmra.mxu0 %v5113
      %v5225 = vpop.f32.mrf.mxu0
      %v5226 = vadd.f32 0.0, %v5225
      %5227 = vmatmul.f32.gmra.mxu0 %v5116
      %v5228 = vpop.f32.mrf.mxu0
      %v5229 = vadd.f32 0.0, %v5228
      %5230 = vmatmul.f32.gmra.mxu0 %v5119
      %v5231 = vpop.f32.mrf.mxu0
      %v5232 = vadd.f32 0.0, %v5231
      %5233 = vmatmul.f32.gmra.mxu0 %v5122
      %v5234 = vpop.f32.mrf.mxu0
      %v5235 = vadd.f32 0.0, %v5234
      %5236 = vmatmul.f32.gmra.mxu0 %v5125
      %v5237 = vpop.f32.mrf.mxu0
      %v5238 = vadd.f32 0.0, %v5237
      %5239 = vmatmul.f32.gmra.mxu0 %v5128
      %v5240 = vpop.f32.mrf.mxu0
      %v5241 = vadd.f32 0.0, %v5240
      %5242 = vmatmul.f32.gmra.mxu0 %v5131
      %v5243 = vpop.f32.mrf.mxu0
      %v5244 = vadd.f32 0.0, %v5243
      %5245 = vmatmul.f32.gmra.mxu0 %v5134
      %v5246 = vpop.f32.mrf.mxu0
      %v5247 = vadd.f32 0.0, %v5246
      %5248 = vmatmul.f32.gmra.mxu0 %v5137
      %v5249 = vpop.f32.mrf.mxu0
      %v5250 = vadd.f32 0.0, %v5249
      %5251 = vmatmul.f32.gmra.mxu0 %v5140
      %v5252 = vpop.f32.mrf.mxu0
      %v5253 = vadd.f32 0.0, %v5252
      %5254 = vmatmul.f32.gmra.mxu0 %v5143
      %v5255 = vpop.f32.mrf.mxu0
      %v5256 = vadd.f32 0.0, %v5255
      %5257 = vmatmul.f32.gmra.mxu0 %v5146
      %v5258 = vpop.f32.mrf.mxu0
      %v5259 = vadd.f32 0.0, %v5258
      %5260 = vmatmul.f32.gmra.mxu0 %v5149
      %v5261 = vpop.f32.mrf.mxu0
      %v5262 = vadd.f32 0.0, %v5261
      %5263 = vmatmul.f32.gmra.mxu0 %v5152
      %v5264 = vpop.f32.mrf.mxu0
      %v5265 = vadd.f32 0.0, %v5264
      %5266 = vmatmul.f32.gmra.mxu0 %v5155
      %v5267 = vpop.f32.mrf.mxu0
      %v5268 = vadd.f32 0.0, %v5267
      %5269 = vmatmul.f32.gmra.mxu0 %v5158
      %v5270 = vpop.f32.mrf.mxu0
      %v5271 = vadd.f32 0.0, %v5270
      %5272 = vmatmul.f32.gmra.mxu0 %v5161
      %v5273 = vpop.f32.mrf.mxu0
      %v5274 = vadd.f32 0.0, %v5273
      %5275 = vmatmul.f32.gmra.mxu0 %v5164
      %v5276 = vpop.f32.mrf.mxu0
      %v5277 = vadd.f32 0.0, %v5276
      %5278 = vmatmul.f32.gmra.mxu0 %v5167
      %v5279 = vpop.f32.mrf.mxu0
      %v5280 = vadd.f32 0.0, %v5279
      %5281 = vmatmul.f32.gmra.mxu0 %v5170
      %v5282 = vpop.f32.mrf.mxu0
      %v5283 = vadd.f32 0.0, %v5282
      %5284 = vmatmul.f32.gmra.mxu0 %v5173
      %v5285 = vpop.f32.mrf.mxu0
      %v5286 = vadd.f32 0.0, %v5285
      %5287 = vmatmul.f32.gmra.mxu0 %v5176
      %v5288 = vpop.f32.mrf.mxu0
      %v5289 = vadd.f32 0.0, %v5288
      %5290 = vmatmul.f32.gmra.mxu0 %v5179
      %v5291 = vpop.f32.mrf.mxu0
      %v5292 = vadd.f32 0.0, %v5291
      %5293 = vmatmul.f32.gmra.mxu0 %v5182
      %v5294 = vpop.f32.mrf.mxu0
      %v5295 = vadd.f32 0.0, %v5294
      %5296 = vmatmul.f32.gmra.mxu0 %v5185
      %v5297 = vpop.f32.mrf.mxu0
      %v5298 = vadd.f32 0.0, %v5297
      %5299 = vmatmul.f32.gmra.mxu0 %v5188
      %v5300 = vpop.f32.mrf.mxu0
      %v5301 = vadd.f32 0.0, %v5300
      %5302 = vmatmul.f32.gmra.mxu0 %v5191
      %v5303 = vpop.f32.mrf.mxu0
      %v5304 = vadd.f32 0.0, %v5303
      %5305 = vmatmul.f32.gmra.mxu0 %v5194
      %v5306 = vpop.f32.mrf.mxu0
      %v5307 = vadd.f32 0.0, %v5306
      %5308 = vmatmul.f32.gmra.mxu0 %v5197
      %v5309 = vpop.f32.mrf.mxu0
      %v5310 = vadd.f32 0.0, %v5309
      %5311 = vmatmul.f32.gmra.mxu0 %v5200
      %v5312 = vpop.f32.mrf.mxu0
      %v5313 = vadd.f32 0.0, %v5312
      %5314 = vdwg.mxu0
      %v5315 = vadd.f32 %v5005, %v5220
      %v5316 = vadd.f32 %v5006, %v5223
      %v5317 = vadd.f32 %v5007, %v5226
      %v5318 = vadd.f32 %v5008, %v5229
      %v5319 = vadd.f32 %v5009, %v5232
      %v5320 = vadd.f32 %v5010, %v5235
      %v5321 = vadd.f32 %v5011, %v5238
      %v5322 = vadd.f32 %v5012, %v5241
      %v5323 = vadd.f32 %v5013, %v5244
      %v5324 = vadd.f32 %v5014, %v5247
      %v5325 = vadd.f32 %v5015, %v5250
      %v5326 = vadd.f32 %v5016, %v5253
      %v5327 = vadd.f32 %v5017, %v5256
      %v5328 = vadd.f32 %v5018, %v5259
      %v5329 = vadd.f32 %v5019, %v5262
      %v5330 = vadd.f32 %v5020, %v5265
      %v5331 = vadd.f32 %v5021, %v5268
      %v5332 = vadd.f32 %v5022, %v5271
      %v5333 = vadd.f32 %v5023, %v5274
      %v5334 = vadd.f32 %v5024, %v5277
      %v5335 = vadd.f32 %v5025, %v5280
      %v5336 = vadd.f32 %v5026, %v5283
      %v5337 = vadd.f32 %v5027, %v5286
      %v5338 = vadd.f32 %v5028, %v5289
      %v5339 = vadd.f32 %v5029, %v5292
      %v5340 = vadd.f32 %v5030, %v5295
      %v5341 = vadd.f32 %v5031, %v5298
      %v5342 = vadd.f32 %v5032, %v5301
      %v5343 = vadd.f32 %v5033, %v5304
      %v5344 = vadd.f32 %v5034, %v5307
      %v5345 = vadd.f32 %v5035, %v5310
      %v5346 = vadd.f32 %v5036, %v5313
      %v5347 = vld [vmem:[#allocation2 + $0x27] sm:$0xff]
      %v5348 = vld [vmem:[#allocation2 + $0x2f] sm:$0xff]
      %v5349 = vld [vmem:[#allocation2 + $0x37] sm:$0xff]
      %v5350 = vld [vmem:[#allocation2 + $0x3f] sm:$0xff]
      %v5351 = vld [vmem:[#allocation2 + $0x47] sm:$0xff]
      %v5352 = vld [vmem:[#allocation2 + $0x4f] sm:$0xff]
      %v5353 = vld [vmem:[#allocation2 + $0x57] sm:$0xff]
      %v5354 = vld [vmem:[#allocation2 + $0x5f] sm:$0xff]
      %v5355 = vld [vmem:[#allocation2 + $0x67] sm:$0xff]
      %v5356 = vld [vmem:[#allocation2 + $0x6f] sm:$0xff]
      %v5357 = vld [vmem:[#allocation2 + $0x77] sm:$0xff]
      %v5358 = vld [vmem:[#allocation2 + $0x7f] sm:$0xff]
      %v5359 = vld [vmem:[#allocation2 + $0x87] sm:$0xff]
      %v5360 = vld [vmem:[#allocation2 + $0x8f] sm:$0xff]
      %v5361 = vld [vmem:[#allocation2 + $0x97] sm:$0xff]
      %v5362 = vld [vmem:[#allocation2 + $0x9f] sm:$0xff]
      %v5363 = vld [vmem:[#allocation2 + $0xa7] sm:$0xff]
      %v5364 = vld [vmem:[#allocation2 + $0xaf] sm:$0xff]
      %v5365 = vld [vmem:[#allocation2 + $0xb7] sm:$0xff]
      %v5366 = vld [vmem:[#allocation2 + $0xbf] sm:$0xff]
      %v5367 = vld [vmem:[#allocation2 + $0xc7] sm:$0xff]
      %v5368 = vld [vmem:[#allocation2 + $0xcf] sm:$0xff]
      %v5369 = vld [vmem:[#allocation2 + $0xd7] sm:$0xff]
      %v5370 = vld [vmem:[#allocation2 + $0xdf] sm:$0xff]
      %v5371 = vld [vmem:[#allocation2 + $0xe7] sm:$0xff]
      %v5372 = vld [vmem:[#allocation2 + $0xef] sm:$0xff]
      %v5373 = vld [vmem:[#allocation2 + $0xf7] sm:$0xff]
      %v5374 = vld [vmem:[#allocation2 + $0xff] sm:$0xff]
      %v5375 = vld [vmem:[#allocation2 + $0x107] sm:$0xff]
      %v5376 = vld [vmem:[#allocation2 + $0x10f] sm:$0xff]
      %v5377 = vld [vmem:[#allocation2 + $0x117] sm:$0xff]
      %v5378 = vld [vmem:[#allocation2 + $0x11f] sm:$0xff]
      %v5379 = vmul.f32 %v5347, %v760
      %v5380 = vmul.f32 %v5348, %v761
      %v5381 = vmul.f32 %v5349, %v762
      %v5382 = vmul.f32 %v5350, %v763
      %v5383 = vmul.f32 %v5351, %v764
      %v5384 = vmul.f32 %v5352, %v765
      %v5385 = vmul.f32 %v5353, %v766
      %v5386 = vmul.f32 %v5354, %v767
      %v5387 = vmul.f32 %v5355, %v768
      %v5388 = vmul.f32 %v5356, %v769
      %v5389 = vmul.f32 %v5357, %v770
      %v5390 = vmul.f32 %v5358, %v771
      %v5391 = vmul.f32 %v5359, %v772
      %v5392 = vmul.f32 %v5360, %v773
      %v5393 = vmul.f32 %v5361, %v774
      %v5394 = vmul.f32 %v5362, %v775
      %v5395 = vmul.f32 %v5363, %v776
      %v5396 = vmul.f32 %v5364, %v777
      %v5397 = vmul.f32 %v5365, %v778
      %v5398 = vmul.f32 %v5366, %v779
      %v5399 = vmul.f32 %v5367, %v780
      %v5400 = vmul.f32 %v5368, %v781
      %v5401 = vmul.f32 %v5369, %v782
      %v5402 = vmul.f32 %v5370, %v783
      %v5403 = vmul.f32 %v5371, %v784
      %v5404 = vmul.f32 %v5372, %v785
      %v5405 = vmul.f32 %v5373, %v786
      %v5406 = vmul.f32 %v5374, %v787
      %v5407 = vmul.f32 %v5375, %v788
      %v5408 = vmul.f32 %v5376, %v789
      %v5409 = vmul.f32 %v5377, %v790
      %v5410 = vmul.f32 %v5378, %v791
      %s5411 = scalar_lea.vmem %s3, 192
      %v5412 = vld [vmem:[%s5411] sm:$0xff]
      %v5413 = vld [vmem:[%s5411 + $0x8] sm:$0xff]
      %v5414 = vld [vmem:[%s5411 + $0x10] sm:$0xff]
      %v5415 = vld [vmem:[%s5411 + $0x18] sm:$0xff]
      %v5417 = vsel %vm3577, %v5379, 0
      %v5420 = vsel %vm3577, %v5380, 0
      %v5423 = vsel %vm3577, %v5381, 0
      %v5426 = vsel %vm3577, %v5382, 0
      %v5429 = vsel %vm3577, %v5383, 0
      %v5432 = vsel %vm3577, %v5384, 0
      %v5435 = vsel %vm3577, %v5385, 0
      %v5438 = vsel %vm3577, %v5386, 0
      %v5441 = vsel %vm3577, %v5387, 0
      %v5444 = vsel %vm3577, %v5388, 0
      %v5447 = vsel %vm3577, %v5389, 0
      %v5450 = vsel %vm3577, %v5390, 0
      %v5453 = vsel %vm3577, %v5391, 0
      %v5456 = vsel %vm3577, %v5392, 0
      %v5459 = vsel %vm3577, %v5393, 0
      %v5462 = vsel %vm3577, %v5394, 0
      %v5465 = vsel %vm3577, %v5395, 0
      %v5468 = vsel %vm3577, %v5396, 0
      %v5471 = vsel %vm3577, %v5397, 0
      %v5474 = vsel %vm3577, %v5398, 0
      %v5477 = vsel %vm3577, %v5399, 0
      %v5480 = vsel %vm3577, %v5400, 0
      %v5483 = vsel %vm3577, %v5401, 0
      %v5486 = vsel %vm3577, %v5402, 0
      %v5489 = vsel %vm3577, %v5403, 0
      %v5492 = vsel %vm3577, %v5404, 0
      %v5495 = vsel %vm3577, %v5405, 0
      %v5498 = vsel %vm3577, %v5406, 0
      %v5501 = vsel %vm3577, %v5407, 0
      %v5504 = vsel %vm3577, %v5408, 0
      %v5507 = vsel %vm3577, %v5409, 0
      %v5510 = vsel %vm3577, %v5410, 0
      %5512 = vmatpush.msra.mxu0 0.0
      %5513 = vmatpush.msra.mxu0 0.0
      %5514 = vmatpush.msra.mxu0 0.0
      %5515 = vmatpush.msra.mxu0 0.0
      %5516 = vmatpush.msra.mxu0 0.0
      %5517 = vmatpush.msra.mxu0 0.0
      %5518 = vmatpush.msra.mxu0 0.0
      %5519 = vmatpush.msra.mxu0 0.0
      %5520 = vmatpush.msra.mxu0 0.0
      %5521 = vmatpush.msra.mxu0 0.0
      %5522 = vmatpush.msra.mxu0 0.0
      %5523 = vmatpush.msra.mxu0 0.0
      %5524 = vmatpush.msra.mxu0 %v5415
      %5525 = vmatpush.msra.mxu0 %v5414
      %5526 = vmatpush.msra.mxu0 %v5413
      %5527 = vmatpush.msra.mxu0 %v5412
      %5528 = vmatmul.f32.gmra.mxu0 %v5417
      %v5529 = vpop.f32.mrf.mxu0
      %v5530 = vadd.f32 0.0, %v5529
      %5531 = vmatmul.f32.gmra.mxu0 %v5420
      %v5532 = vpop.f32.mrf.mxu0
      %v5533 = vadd.f32 0.0, %v5532
      %5534 = vmatmul.f32.gmra.mxu0 %v5423
      %v5535 = vpop.f32.mrf.mxu0
      %v5536 = vadd.f32 0.0, %v5535
      %5537 = vmatmul.f32.gmra.mxu0 %v5426
      %v5538 = vpop.f32.mrf.mxu0
      %v5539 = vadd.f32 0.0, %v5538
      %5540 = vmatmul.f32.gmra.mxu0 %v5429
      %v5541 = vpop.f32.mrf.mxu0
      %v5542 = vadd.f32 0.0, %v5541
      %5543 = vmatmul.f32.gmra.mxu0 %v5432
      %v5544 = vpop.f32.mrf.mxu0
      %v5545 = vadd.f32 0.0, %v5544
      %5546 = vmatmul.f32.gmra.mxu0 %v5435
      %v5547 = vpop.f32.mrf.mxu0
      %v5548 = vadd.f32 0.0, %v5547
      %5549 = vmatmul.f32.gmra.mxu0 %v5438
      %v5550 = vpop.f32.mrf.mxu0
      %v5551 = vadd.f32 0.0, %v5550
      %5552 = vmatmul.f32.gmra.mxu0 %v5441
      %v5553 = vpop.f32.mrf.mxu0
      %v5554 = vadd.f32 0.0, %v5553
      %5555 = vmatmul.f32.gmra.mxu0 %v5444
      %v5556 = vpop.f32.mrf.mxu0
      %v5557 = vadd.f32 0.0, %v5556
      %5558 = vmatmul.f32.gmra.mxu0 %v5447
      %v5559 = vpop.f32.mrf.mxu0
      %v5560 = vadd.f32 0.0, %v5559
      %5561 = vmatmul.f32.gmra.mxu0 %v5450
      %v5562 = vpop.f32.mrf.mxu0
      %v5563 = vadd.f32 0.0, %v5562
      %5564 = vmatmul.f32.gmra.mxu0 %v5453
      %v5565 = vpop.f32.mrf.mxu0
      %v5566 = vadd.f32 0.0, %v5565
      %5567 = vmatmul.f32.gmra.mxu0 %v5456
      %v5568 = vpop.f32.mrf.mxu0
      %v5569 = vadd.f32 0.0, %v5568
      %5570 = vmatmul.f32.gmra.mxu0 %v5459
      %v5571 = vpop.f32.mrf.mxu0
      %v5572 = vadd.f32 0.0, %v5571
      %5573 = vmatmul.f32.gmra.mxu0 %v5462
      %v5574 = vpop.f32.mrf.mxu0
      %v5575 = vadd.f32 0.0, %v5574
      %5576 = vmatmul.f32.gmra.mxu0 %v5465
      %v5577 = vpop.f32.mrf.mxu0
      %v5578 = vadd.f32 0.0, %v5577
      %5579 = vmatmul.f32.gmra.mxu0 %v5468
      %v5580 = vpop.f32.mrf.mxu0
      %v5581 = vadd.f32 0.0, %v5580
      %5582 = vmatmul.f32.gmra.mxu0 %v5471
      %v5583 = vpop.f32.mrf.mxu0
      %v5584 = vadd.f32 0.0, %v5583
      %5585 = vmatmul.f32.gmra.mxu0 %v5474
      %v5586 = vpop.f32.mrf.mxu0
      %v5587 = vadd.f32 0.0, %v5586
      %5588 = vmatmul.f32.gmra.mxu0 %v5477
      %v5589 = vpop.f32.mrf.mxu0
      %v5590 = vadd.f32 0.0, %v5589
      %5591 = vmatmul.f32.gmra.mxu0 %v5480
      %v5592 = vpop.f32.mrf.mxu0
      %v5593 = vadd.f32 0.0, %v5592
      %5594 = vmatmul.f32.gmra.mxu0 %v5483
      %v5595 = vpop.f32.mrf.mxu0
      %v5596 = vadd.f32 0.0, %v5595
      %5597 = vmatmul.f32.gmra.mxu0 %v5486
      %v5598 = vpop.f32.mrf.mxu0
      %v5599 = vadd.f32 0.0, %v5598
      %5600 = vmatmul.f32.gmra.mxu0 %v5489
      %v5601 = vpop.f32.mrf.mxu0
      %v5602 = vadd.f32 0.0, %v5601
      %5603 = vmatmul.f32.gmra.mxu0 %v5492
      %v5604 = vpop.f32.mrf.mxu0
      %v5605 = vadd.f32 0.0, %v5604
      %5606 = vmatmul.f32.gmra.mxu0 %v5495
      %v5607 = vpop.f32.mrf.mxu0
      %v5608 = vadd.f32 0.0, %v5607
      %5609 = vmatmul.f32.gmra.mxu0 %v5498
      %v5610 = vpop.f32.mrf.mxu0
      %v5611 = vadd.f32 0.0, %v5610
      %5612 = vmatmul.f32.gmra.mxu0 %v5501
      %v5613 = vpop.f32.mrf.mxu0
      %v5614 = vadd.f32 0.0, %v5613
      %5615 = vmatmul.f32.gmra.mxu0 %v5504
      %v5616 = vpop.f32.mrf.mxu0
      %v5617 = vadd.f32 0.0, %v5616
      %5618 = vmatmul.f32.gmra.mxu0 %v5507
      %v5619 = vpop.f32.mrf.mxu0
      %v5620 = vadd.f32 0.0, %v5619
      %5621 = vmatmul.f32.gmra.mxu0 %v5510
      %v5622 = vpop.f32.mrf.mxu0
      %v5623 = vadd.f32 0.0, %v5622
      %5624 = vdwg.mxu0
      %v5625 = vadd.f32 %v5315, %v5530
      %v5626 = vadd.f32 %v5316, %v5533
      %v5627 = vadd.f32 %v5317, %v5536
      %v5628 = vadd.f32 %v5318, %v5539
      %v5629 = vadd.f32 %v5319, %v5542
      %v5630 = vadd.f32 %v5320, %v5545
      %v5631 = vadd.f32 %v5321, %v5548
      %v5632 = vadd.f32 %v5322, %v5551
      %v5633 = vadd.f32 %v5323, %v5554
      %v5634 = vadd.f32 %v5324, %v5557
      %v5635 = vadd.f32 %v5325, %v5560
      %v5636 = vadd.f32 %v5326, %v5563
      %v5637 = vadd.f32 %v5327, %v5566
      %v5638 = vadd.f32 %v5328, %v5569
      %v5639 = vadd.f32 %v5329, %v5572
      %v5640 = vadd.f32 %v5330, %v5575
      %v5641 = vadd.f32 %v5331, %v5578
      %v5642 = vadd.f32 %v5332, %v5581
      %v5643 = vadd.f32 %v5333, %v5584
      %v5644 = vadd.f32 %v5334, %v5587
      %v5645 = vadd.f32 %v5335, %v5590
      %v5646 = vadd.f32 %v5336, %v5593
      %v5647 = vadd.f32 %v5337, %v5596
      %v5648 = vadd.f32 %v5338, %v5599
      %v5649 = vadd.f32 %v5339, %v5602
      %v5650 = vadd.f32 %v5340, %v5605
      %v5651 = vadd.f32 %v5341, %v5608
      %v5652 = vadd.f32 %v5342, %v5611
      %v5653 = vadd.f32 %v5343, %v5614
      %v5654 = vadd.f32 %v5344, %v5617
      %v5655 = vadd.f32 %v5345, %v5620
      %v5656 = vadd.f32 %v5346, %v5623
      %v5657 = vld [vmem:[#allocation2 + $0x28] sm:$0xff]
      %v5658 = vld [vmem:[#allocation2 + $0x30] sm:$0xff]
      %v5659 = vld [vmem:[#allocation2 + $0x38] sm:$0xff]
      %v5660 = vld [vmem:[#allocation2 + $0x40] sm:$0xff]
      %v5661 = vld [vmem:[#allocation2 + $0x48] sm:$0xff]
      %v5662 = vld [vmem:[#allocation2 + $0x50] sm:$0xff]
      %v5663 = vld [vmem:[#allocation2 + $0x58] sm:$0xff]
      %v5664 = vld [vmem:[#allocation2 + $0x60] sm:$0xff]
      %v5665 = vld [vmem:[#allocation2 + $0x68] sm:$0xff]
      %v5666 = vld [vmem:[#allocation2 + $0x70] sm:$0xff]
      %v5667 = vld [vmem:[#allocation2 + $0x78] sm:$0xff]
      %v5668 = vld [vmem:[#allocation2 + $0x80] sm:$0xff]
      %v5669 = vld [vmem:[#allocation2 + $0x88] sm:$0xff]
      %v5670 = vld [vmem:[#allocation2 + $0x90] sm:$0xff]
      %v5671 = vld [vmem:[#allocation2 + $0x98] sm:$0xff]
      %v5672 = vld [vmem:[#allocation2 + $0xa0] sm:$0xff]
      %v5673 = vld [vmem:[#allocation2 + $0xa8] sm:$0xff]
      %v5674 = vld [vmem:[#allocation2 + $0xb0] sm:$0xff]
      %v5675 = vld [vmem:[#allocation2 + $0xb8] sm:$0xff]
      %v5676 = vld [vmem:[#allocation2 + $0xc0] sm:$0xff]
      %v5677 = vld [vmem:[#allocation2 + $0xc8] sm:$0xff]
      %v5678 = vld [vmem:[#allocation2 + $0xd0] sm:$0xff]
      %v5679 = vld [vmem:[#allocation2 + $0xd8] sm:$0xff]
      %v5680 = vld [vmem:[#allocation2 + $0xe0] sm:$0xff]
      %v5681 = vld [vmem:[#allocation2 + $0xe8] sm:$0xff]
      %v5682 = vld [vmem:[#allocation2 + $0xf0] sm:$0xff]
      %v5683 = vld [vmem:[#allocation2 + $0xf8] sm:$0xff]
      %v5684 = vld [vmem:[#allocation2 + $0x100] sm:$0xff]
      %v5685 = vld [vmem:[#allocation2 + $0x108] sm:$0xff]
      %v5686 = vld [vmem:[#allocation2 + $0x110] sm:$0xff]
      %v5687 = vld [vmem:[#allocation2 + $0x118] sm:$0xff]
      %v5688 = vld [vmem:[#allocation2 + $0x120] sm:$0xff]
      %s5689 = scalar_lea.vmem %s3, 224
      %v5690 = vld [vmem:[%s5689] sm:$0xff]
      %v5691 = vld [vmem:[%s5689 + $0x8] sm:$0xff]
      %v5692 = vld [vmem:[%s5689 + $0x10] sm:$0xff]
      %v5693 = vld [vmem:[%s5689 + $0x18] sm:$0xff]
      %v5695 = vsel %vm3577, %v5657, 0
      %v5698 = vsel %vm3577, %v5658, 0
      %v5701 = vsel %vm3577, %v5659, 0
      %v5704 = vsel %vm3577, %v5660, 0
      %v5707 = vsel %vm3577, %v5661, 0
      %v5710 = vsel %vm3577, %v5662, 0
      %v5713 = vsel %vm3577, %v5663, 0
      %v5716 = vsel %vm3577, %v5664, 0
      %v5719 = vsel %vm3577, %v5665, 0
      %v5722 = vsel %vm3577, %v5666, 0
      %v5725 = vsel %vm3577, %v5667, 0
      %v5728 = vsel %vm3577, %v5668, 0
      %v5731 = vsel %vm3577, %v5669, 0
      %v5734 = vsel %vm3577, %v5670, 0
      %v5737 = vsel %vm3577, %v5671, 0
      %v5740 = vsel %vm3577, %v5672, 0
      %v5743 = vsel %vm3577, %v5673, 0
      %v5746 = vsel %vm3577, %v5674, 0
      %v5749 = vsel %vm3577, %v5675, 0
      %v5752 = vsel %vm3577, %v5676, 0
      %v5755 = vsel %vm3577, %v5677, 0
      %v5758 = vsel %vm3577, %v5678, 0
      %v5761 = vsel %vm3577, %v5679, 0
      %v5764 = vsel %vm3577, %v5680, 0
      %v5767 = vsel %vm3577, %v5681, 0
      %v5770 = vsel %vm3577, %v5682, 0
      %v5773 = vsel %vm3577, %v5683, 0
      %v5776 = vsel %vm3577, %v5684, 0
      %v5779 = vsel %vm3577, %v5685, 0
      %v5782 = vsel %vm3577, %v5686, 0
      %v5785 = vsel %vm3577, %v5687, 0
      %v5788 = vsel %vm3577, %v5688, 0
      %5790 = vmatpush.msra.mxu0 0.0
      %5791 = vmatpush.msra.mxu0 0.0
      %5792 = vmatpush.msra.mxu0 0.0
      %5793 = vmatpush.msra.mxu0 0.0
      %5794 = vmatpush.msra.mxu0 0.0
      %5795 = vmatpush.msra.mxu0 0.0
      %5796 = vmatpush.msra.mxu0 0.0
      %5797 = vmatpush.msra.mxu0 0.0
      %5798 = vmatpush.msra.mxu0 0.0
      %5799 = vmatpush.msra.mxu0 0.0
      %5800 = vmatpush.msra.mxu0 0.0
      %5801 = vmatpush.msra.mxu0 0.0
      %5802 = vmatpush.msra.mxu0 %v5693
      %5803 = vmatpush.msra.mxu0 %v5692
      %5804 = vmatpush.msra.mxu0 %v5691
      %5805 = vmatpush.msra.mxu0 %v5690
      %5806 = vmatmul.f32.gmra.mxu0 %v5695
      %v5807 = vpop.f32.mrf.mxu0
      %v5808 = vadd.f32 0.0, %v5807
      %5809 = vmatmul.f32.gmra.mxu0 %v5698
      %v5810 = vpop.f32.mrf.mxu0
      %v5811 = vadd.f32 0.0, %v5810
      %5812 = vmatmul.f32.gmra.mxu0 %v5701
      %v5813 = vpop.f32.mrf.mxu0
      %v5814 = vadd.f32 0.0, %v5813
      %5815 = vmatmul.f32.gmra.mxu0 %v5704
      %v5816 = vpop.f32.mrf.mxu0
      %v5817 = vadd.f32 0.0, %v5816
      %5818 = vmatmul.f32.gmra.mxu0 %v5707
      %v5819 = vpop.f32.mrf.mxu0
      %v5820 = vadd.f32 0.0, %v5819
      %5821 = vmatmul.f32.gmra.mxu0 %v5710
      %v5822 = vpop.f32.mrf.mxu0
      %v5823 = vadd.f32 0.0, %v5822
      %5824 = vmatmul.f32.gmra.mxu0 %v5713
      %v5825 = vpop.f32.mrf.mxu0
      %v5826 = vadd.f32 0.0, %v5825
      %5827 = vmatmul.f32.gmra.mxu0 %v5716
      %v5828 = vpop.f32.mrf.mxu0
      %v5829 = vadd.f32 0.0, %v5828
      %5830 = vmatmul.f32.gmra.mxu0 %v5719
      %v5831 = vpop.f32.mrf.mxu0
      %v5832 = vadd.f32 0.0, %v5831
      %5833 = vmatmul.f32.gmra.mxu0 %v5722
      %v5834 = vpop.f32.mrf.mxu0
      %v5835 = vadd.f32 0.0, %v5834
      %5836 = vmatmul.f32.gmra.mxu0 %v5725
      %v5837 = vpop.f32.mrf.mxu0
      %v5838 = vadd.f32 0.0, %v5837
      %5839 = vmatmul.f32.gmra.mxu0 %v5728
      %v5840 = vpop.f32.mrf.mxu0
      %v5841 = vadd.f32 0.0, %v5840
      %5842 = vmatmul.f32.gmra.mxu0 %v5731
      %v5843 = vpop.f32.mrf.mxu0
      %v5844 = vadd.f32 0.0, %v5843
      %5845 = vmatmul.f32.gmra.mxu0 %v5734
      %v5846 = vpop.f32.mrf.mxu0
      %v5847 = vadd.f32 0.0, %v5846
      %5848 = vmatmul.f32.gmra.mxu0 %v5737
      %v5849 = vpop.f32.mrf.mxu0
      %v5850 = vadd.f32 0.0, %v5849
      %5851 = vmatmul.f32.gmra.mxu0 %v5740
      %v5852 = vpop.f32.mrf.mxu0
      %v5853 = vadd.f32 0.0, %v5852
      %5854 = vmatmul.f32.gmra.mxu0 %v5743
      %v5855 = vpop.f32.mrf.mxu0
      %v5856 = vadd.f32 0.0, %v5855
      %5857 = vmatmul.f32.gmra.mxu0 %v5746
      %v5858 = vpop.f32.mrf.mxu0
      %v5859 = vadd.f32 0.0, %v5858
      %5860 = vmatmul.f32.gmra.mxu0 %v5749
      %v5861 = vpop.f32.mrf.mxu0
      %v5862 = vadd.f32 0.0, %v5861
      %5863 = vmatmul.f32.gmra.mxu0 %v5752
      %v5864 = vpop.f32.mrf.mxu0
      %v5865 = vadd.f32 0.0, %v5864
      %5866 = vmatmul.f32.gmra.mxu0 %v5755
      %v5867 = vpop.f32.mrf.mxu0
      %v5868 = vadd.f32 0.0, %v5867
      %5869 = vmatmul.f32.gmra.mxu0 %v5758
      %v5870 = vpop.f32.mrf.mxu0
      %v5871 = vadd.f32 0.0, %v5870
      %5872 = vmatmul.f32.gmra.mxu0 %v5761
      %v5873 = vpop.f32.mrf.mxu0
      %v5874 = vadd.f32 0.0, %v5873
      %5875 = vmatmul.f32.gmra.mxu0 %v5764
      %v5876 = vpop.f32.mrf.mxu0
      %v5877 = vadd.f32 0.0, %v5876
      %5878 = vmatmul.f32.gmra.mxu0 %v5767
      %v5879 = vpop.f32.mrf.mxu0
      %v5880 = vadd.f32 0.0, %v5879
      %5881 = vmatmul.f32.gmra.mxu0 %v5770
      %v5882 = vpop.f32.mrf.mxu0
      %v5883 = vadd.f32 0.0, %v5882
      %5884 = vmatmul.f32.gmra.mxu0 %v5773
      %v5885 = vpop.f32.mrf.mxu0
      %v5886 = vadd.f32 0.0, %v5885
      %5887 = vmatmul.f32.gmra.mxu0 %v5776
      %v5888 = vpop.f32.mrf.mxu0
      %v5889 = vadd.f32 0.0, %v5888
      %5890 = vmatmul.f32.gmra.mxu0 %v5779
      %v5891 = vpop.f32.mrf.mxu0
      %v5892 = vadd.f32 0.0, %v5891
      %5893 = vmatmul.f32.gmra.mxu0 %v5782
      %v5894 = vpop.f32.mrf.mxu0
      %v5895 = vadd.f32 0.0, %v5894
      %5896 = vmatmul.f32.gmra.mxu0 %v5785
      %v5897 = vpop.f32.mrf.mxu0
      %v5898 = vadd.f32 0.0, %v5897
      %5899 = vmatmul.f32.gmra.mxu0 %v5788
      %v5900 = vpop.f32.mrf.mxu0
      %v5901 = vadd.f32 0.0, %v5900
      %5902 = vdwg.mxu0
      %v5903 = vadd.f32 %v5625, %v5808
      %v5904 = vadd.f32 %v5626, %v5811
      %v5905 = vadd.f32 %v5627, %v5814
      %v5906 = vadd.f32 %v5628, %v5817
      %v5907 = vadd.f32 %v5629, %v5820
      %v5908 = vadd.f32 %v5630, %v5823
      %v5909 = vadd.f32 %v5631, %v5826
      %v5910 = vadd.f32 %v5632, %v5829
      %v5911 = vadd.f32 %v5633, %v5832
      %v5912 = vadd.f32 %v5634, %v5835
      %v5913 = vadd.f32 %v5635, %v5838
      %v5914 = vadd.f32 %v5636, %v5841
      %v5915 = vadd.f32 %v5637, %v5844
      %v5916 = vadd.f32 %v5638, %v5847
      %v5917 = vadd.f32 %v5639, %v5850
      %v5918 = vadd.f32 %v5640, %v5853
      %v5919 = vadd.f32 %v5641, %v5856
      %v5920 = vadd.f32 %v5642, %v5859
      %v5921 = vadd.f32 %v5643, %v5862
      %v5922 = vadd.f32 %v5644, %v5865
      %v5923 = vadd.f32 %v5645, %v5868
      %v5924 = vadd.f32 %v5646, %v5871
      %v5925 = vadd.f32 %v5647, %v5874
      %v5926 = vadd.f32 %v5648, %v5877
      %v5927 = vadd.f32 %v5649, %v5880
      %v5928 = vadd.f32 %v5650, %v5883
      %v5929 = vadd.f32 %v5651, %v5886
      %v5930 = vadd.f32 %v5652, %v5889
      %v5931 = vadd.f32 %v5653, %v5892
      %v5932 = vadd.f32 %v5654, %v5895
      %v5933 = vadd.f32 %v5655, %v5898
      %v5934 = vadd.f32 %v5656, %v5901
      %v5935 = vld [vmem:[#allocation2 + $0x29] sm:$0xff]
      %v5936 = vld [vmem:[#allocation2 + $0x31] sm:$0xff]
      %v5937 = vld [vmem:[#allocation2 + $0x39] sm:$0xff]
      %v5938 = vld [vmem:[#allocation2 + $0x41] sm:$0xff]
      %v5939 = vld [vmem:[#allocation2 + $0x49] sm:$0xff]
      %v5940 = vld [vmem:[#allocation2 + $0x51] sm:$0xff]
      %v5941 = vld [vmem:[#allocation2 + $0x59] sm:$0xff]
      %v5942 = vld [vmem:[#allocation2 + $0x61] sm:$0xff]
      %v5943 = vld [vmem:[#allocation2 + $0x69] sm:$0xff]
      %v5944 = vld [vmem:[#allocation2 + $0x71] sm:$0xff]
      %v5945 = vld [vmem:[#allocation2 + $0x79] sm:$0xff]
      %v5946 = vld [vmem:[#allocation2 + $0x81] sm:$0xff]
      %v5947 = vld [vmem:[#allocation2 + $0x89] sm:$0xff]
      %v5948 = vld [vmem:[#allocation2 + $0x91] sm:$0xff]
      %v5949 = vld [vmem:[#allocation2 + $0x99] sm:$0xff]
      %v5950 = vld [vmem:[#allocation2 + $0xa1] sm:$0xff]
      %v5951 = vld [vmem:[#allocation2 + $0xa9] sm:$0xff]
      %v5952 = vld [vmem:[#allocation2 + $0xb1] sm:$0xff]
      %v5953 = vld [vmem:[#allocation2 + $0xb9] sm:$0xff]
      %v5954 = vld [vmem:[#allocation2 + $0xc1] sm:$0xff]
      %v5955 = vld [vmem:[#allocation2 + $0xc9] sm:$0xff]
      %v5956 = vld [vmem:[#allocation2 + $0xd1] sm:$0xff]
      %v5957 = vld [vmem:[#allocation2 + $0xd9] sm:$0xff]
      %v5958 = vld [vmem:[#allocation2 + $0xe1] sm:$0xff]
      %v5959 = vld [vmem:[#allocation2 + $0xe9] sm:$0xff]
      %v5960 = vld [vmem:[#allocation2 + $0xf1] sm:$0xff]
      %v5961 = vld [vmem:[#allocation2 + $0xf9] sm:$0xff]
      %v5962 = vld [vmem:[#allocation2 + $0x101] sm:$0xff]
      %v5963 = vld [vmem:[#allocation2 + $0x109] sm:$0xff]
      %v5964 = vld [vmem:[#allocation2 + $0x111] sm:$0xff]
      %v5965 = vld [vmem:[#allocation2 + $0x119] sm:$0xff]
      %v5966 = vld [vmem:[#allocation2 + $0x121] sm:$0xff]
      %v5967 = vmul.f32 %v5935, %v856
      %v5968 = vmul.f32 %v5936, %v857
      %v5969 = vmul.f32 %v5937, %v858
      %v5970 = vmul.f32 %v5938, %v859
      %v5971 = vmul.f32 %v5939, %v860
      %v5972 = vmul.f32 %v5940, %v861
      %v5973 = vmul.f32 %v5941, %v862
      %v5974 = vmul.f32 %v5942, %v863
      %v5975 = vmul.f32 %v5943, %v864
      %v5976 = vmul.f32 %v5944, %v865
      %v5977 = vmul.f32 %v5945, %v866
      %v5978 = vmul.f32 %v5946, %v867
      %v5979 = vmul.f32 %v5947, %v868
      %v5980 = vmul.f32 %v5948, %v869
      %v5981 = vmul.f32 %v5949, %v870
      %v5982 = vmul.f32 %v5950, %v871
      %v5983 = vmul.f32 %v5951, %v872
      %v5984 = vmul.f32 %v5952, %v873
      %v5985 = vmul.f32 %v5953, %v874
      %v5986 = vmul.f32 %v5954, %v875
      %v5987 = vmul.f32 %v5955, %v876
      %v5988 = vmul.f32 %v5956, %v877
      %v5989 = vmul.f32 %v5957, %v878
      %v5990 = vmul.f32 %v5958, %v879
      %v5991 = vmul.f32 %v5959, %v880
      %v5992 = vmul.f32 %v5960, %v881
      %v5993 = vmul.f32 %v5961, %v882
      %v5994 = vmul.f32 %v5962, %v883
      %v5995 = vmul.f32 %v5963, %v884
      %v5996 = vmul.f32 %v5964, %v885
      %v5997 = vmul.f32 %v5965, %v886
      %v5998 = vmul.f32 %v5966, %v887
      %s5999 = scalar_lea.vmem %s3, 256
      %v6000 = vld [vmem:[%s5999] sm:$0xff]
      %v6001 = vld [vmem:[%s5999 + $0x8] sm:$0xff]
      %v6002 = vld [vmem:[%s5999 + $0x10] sm:$0xff]
      %v6003 = vld [vmem:[%s5999 + $0x18] sm:$0xff]
      %v6005 = vsel %vm3577, %v5967, 0
      %v6008 = vsel %vm3577, %v5968, 0
      %v6011 = vsel %vm3577, %v5969, 0
      %v6014 = vsel %vm3577, %v5970, 0
      %v6017 = vsel %vm3577, %v5971, 0
      %v6020 = vsel %vm3577, %v5972, 0
      %v6023 = vsel %vm3577, %v5973, 0
      %v6026 = vsel %vm3577, %v5974, 0
      %v6029 = vsel %vm3577, %v5975, 0
      %v6032 = vsel %vm3577, %v5976, 0
      %v6035 = vsel %vm3577, %v5977, 0
      %v6038 = vsel %vm3577, %v5978, 0
      %v6041 = vsel %vm3577, %v5979, 0
      %v6044 = vsel %vm3577, %v5980, 0
      %v6047 = vsel %vm3577, %v5981, 0
      %v6050 = vsel %vm3577, %v5982, 0
      %v6053 = vsel %vm3577, %v5983, 0
      %v6056 = vsel %vm3577, %v5984, 0
      %v6059 = vsel %vm3577, %v5985, 0
      %v6062 = vsel %vm3577, %v5986, 0
      %v6065 = vsel %vm3577, %v5987, 0
      %v6068 = vsel %vm3577, %v5988, 0
      %v6071 = vsel %vm3577, %v5989, 0
      %v6074 = vsel %vm3577, %v5990, 0
      %v6077 = vsel %vm3577, %v5991, 0
      %v6080 = vsel %vm3577, %v5992, 0
      %v6083 = vsel %vm3577, %v5993, 0
      %v6086 = vsel %vm3577, %v5994, 0
      %v6089 = vsel %vm3577, %v5995, 0
      %v6092 = vsel %vm3577, %v5996, 0
      %v6095 = vsel %vm3577, %v5997, 0
      %v6098 = vsel %vm3577, %v5998, 0
      %6100 = vmatpush.msra.mxu0 0.0
      %6101 = vmatpush.msra.mxu0 0.0
      %6102 = vmatpush.msra.mxu0 0.0
      %6103 = vmatpush.msra.mxu0 0.0
      %6104 = vmatpush.msra.mxu0 0.0
      %6105 = vmatpush.msra.mxu0 0.0
      %6106 = vmatpush.msra.mxu0 0.0
      %6107 = vmatpush.msra.mxu0 0.0
      %6108 = vmatpush.msra.mxu0 0.0
      %6109 = vmatpush.msra.mxu0 0.0
      %6110 = vmatpush.msra.mxu0 0.0
      %6111 = vmatpush.msra.mxu0 0.0
      %6112 = vmatpush.msra.mxu0 %v6003
      %6113 = vmatpush.msra.mxu0 %v6002
      %6114 = vmatpush.msra.mxu0 %v6001
      %6115 = vmatpush.msra.mxu0 %v6000
      %6116 = vmatmul.f32.gmra.mxu0 %v6005
      %v6117 = vpop.f32.mrf.mxu0
      %v6118 = vadd.f32 0.0, %v6117
      %6119 = vmatmul.f32.gmra.mxu0 %v6008
      %v6120 = vpop.f32.mrf.mxu0
      %v6121 = vadd.f32 0.0, %v6120
      %6122 = vmatmul.f32.gmra.mxu0 %v6011
      %v6123 = vpop.f32.mrf.mxu0
      %v6124 = vadd.f32 0.0, %v6123
      %6125 = vmatmul.f32.gmra.mxu0 %v6014
      %v6126 = vpop.f32.mrf.mxu0
      %v6127 = vadd.f32 0.0, %v6126
      %6128 = vmatmul.f32.gmra.mxu0 %v6017
      %v6129 = vpop.f32.mrf.mxu0
      %v6130 = vadd.f32 0.0, %v6129
      %6131 = vmatmul.f32.gmra.mxu0 %v6020
      %v6132 = vpop.f32.mrf.mxu0
      %v6133 = vadd.f32 0.0, %v6132
      %6134 = vmatmul.f32.gmra.mxu0 %v6023
      %v6135 = vpop.f32.mrf.mxu0
      %v6136 = vadd.f32 0.0, %v6135
      %6137 = vmatmul.f32.gmra.mxu0 %v6026
      %v6138 = vpop.f32.mrf.mxu0
      %v6139 = vadd.f32 0.0, %v6138
      %6140 = vmatmul.f32.gmra.mxu0 %v6029
      %v6141 = vpop.f32.mrf.mxu0
      %v6142 = vadd.f32 0.0, %v6141
      %6143 = vmatmul.f32.gmra.mxu0 %v6032
      %v6144 = vpop.f32.mrf.mxu0
      %v6145 = vadd.f32 0.0, %v6144
      %6146 = vmatmul.f32.gmra.mxu0 %v6035
      %v6147 = vpop.f32.mrf.mxu0
      %v6148 = vadd.f32 0.0, %v6147
      %6149 = vmatmul.f32.gmra.mxu0 %v6038
      %v6150 = vpop.f32.mrf.mxu0
      %v6151 = vadd.f32 0.0, %v6150
      %6152 = vmatmul.f32.gmra.mxu0 %v6041
      %v6153 = vpop.f32.mrf.mxu0
      %v6154 = vadd.f32 0.0, %v6153
      %6155 = vmatmul.f32.gmra.mxu0 %v6044
      %v6156 = vpop.f32.mrf.mxu0
      %v6157 = vadd.f32 0.0, %v6156
      %6158 = vmatmul.f32.gmra.mxu0 %v6047
      %v6159 = vpop.f32.mrf.mxu0
      %v6160 = vadd.f32 0.0, %v6159
      %6161 = vmatmul.f32.gmra.mxu0 %v6050
      %v6162 = vpop.f32.mrf.mxu0
      %v6163 = vadd.f32 0.0, %v6162
      %6164 = vmatmul.f32.gmra.mxu0 %v6053
      %v6165 = vpop.f32.mrf.mxu0
      %v6166 = vadd.f32 0.0, %v6165
      %6167 = vmatmul.f32.gmra.mxu0 %v6056
      %v6168 = vpop.f32.mrf.mxu0
      %v6169 = vadd.f32 0.0, %v6168
      %6170 = vmatmul.f32.gmra.mxu0 %v6059
      %v6171 = vpop.f32.mrf.mxu0
      %v6172 = vadd.f32 0.0, %v6171
      %6173 = vmatmul.f32.gmra.mxu0 %v6062
      %v6174 = vpop.f32.mrf.mxu0
      %v6175 = vadd.f32 0.0, %v6174
      %6176 = vmatmul.f32.gmra.mxu0 %v6065
      %v6177 = vpop.f32.mrf.mxu0
      %v6178 = vadd.f32 0.0, %v6177
      %6179 = vmatmul.f32.gmra.mxu0 %v6068
      %v6180 = vpop.f32.mrf.mxu0
      %v6181 = vadd.f32 0.0, %v6180
      %6182 = vmatmul.f32.gmra.mxu0 %v6071
      %v6183 = vpop.f32.mrf.mxu0
      %v6184 = vadd.f32 0.0, %v6183
      %6185 = vmatmul.f32.gmra.mxu0 %v6074
      %v6186 = vpop.f32.mrf.mxu0
      %v6187 = vadd.f32 0.0, %v6186
      %6188 = vmatmul.f32.gmra.mxu0 %v6077
      %v6189 = vpop.f32.mrf.mxu0
      %v6190 = vadd.f32 0.0, %v6189
      %6191 = vmatmul.f32.gmra.mxu0 %v6080
      %v6192 = vpop.f32.mrf.mxu0
      %v6193 = vadd.f32 0.0, %v6192
      %6194 = vmatmul.f32.gmra.mxu0 %v6083
      %v6195 = vpop.f32.mrf.mxu0
      %v6196 = vadd.f32 0.0, %v6195
      %6197 = vmatmul.f32.gmra.mxu0 %v6086
      %v6198 = vpop.f32.mrf.mxu0
      %v6199 = vadd.f32 0.0, %v6198
      %6200 = vmatmul.f32.gmra.mxu0 %v6089
      %v6201 = vpop.f32.mrf.mxu0
      %v6202 = vadd.f32 0.0, %v6201
      %6203 = vmatmul.f32.gmra.mxu0 %v6092
      %v6204 = vpop.f32.mrf.mxu0
      %v6205 = vadd.f32 0.0, %v6204
      %6206 = vmatmul.f32.gmra.mxu0 %v6095
      %v6207 = vpop.f32.mrf.mxu0
      %v6208 = vadd.f32 0.0, %v6207
      %6209 = vmatmul.f32.gmra.mxu0 %v6098
      %v6210 = vpop.f32.mrf.mxu0
      %v6211 = vadd.f32 0.0, %v6210
      %6212 = vdwg.mxu0
      %v6213 = vadd.f32 %v5903, %v6118
      %v6214 = vadd.f32 %v5904, %v6121
      %v6215 = vadd.f32 %v5905, %v6124
      %v6216 = vadd.f32 %v5906, %v6127
      %v6217 = vadd.f32 %v5907, %v6130
      %v6218 = vadd.f32 %v5908, %v6133
      %v6219 = vadd.f32 %v5909, %v6136
      %v6220 = vadd.f32 %v5910, %v6139
      %v6221 = vadd.f32 %v5911, %v6142
      %v6222 = vadd.f32 %v5912, %v6145
      %v6223 = vadd.f32 %v5913, %v6148
      %v6224 = vadd.f32 %v5914, %v6151
      %v6225 = vadd.f32 %v5915, %v6154
      %v6226 = vadd.f32 %v5916, %v6157
      %v6227 = vadd.f32 %v5917, %v6160
      %v6228 = vadd.f32 %v5918, %v6163
      %v6229 = vadd.f32 %v5919, %v6166
      %v6230 = vadd.f32 %v5920, %v6169
      %v6231 = vadd.f32 %v5921, %v6172
      %v6232 = vadd.f32 %v5922, %v6175
      %v6233 = vadd.f32 %v5923, %v6178
      %v6234 = vadd.f32 %v5924, %v6181
      %v6235 = vadd.f32 %v5925, %v6184
      %v6236 = vadd.f32 %v5926, %v6187
      %v6237 = vadd.f32 %v5927, %v6190
      %v6238 = vadd.f32 %v5928, %v6193
      %v6239 = vadd.f32 %v5929, %v6196
      %v6240 = vadd.f32 %v5930, %v6199
      %v6241 = vadd.f32 %v5931, %v6202
      %v6242 = vadd.f32 %v5932, %v6205
      %v6243 = vadd.f32 %v5933, %v6208
      %v6244 = vadd.f32 %v5934, %v6211
      %v6245 = vld [vmem:[%s4] sm:$0x1]
      %v6247 = vperm.slane %v6245, 0
      %v6249 = vadd.f32 %v6213, %v6247
      %v6250 = vadd.f32 %v6214, %v6247
      %v6251 = vadd.f32 %v6215, %v6247
      %v6252 = vadd.f32 %v6216, %v6247
      %v6253 = vadd.f32 %v6217, %v6247
      %v6254 = vadd.f32 %v6218, %v6247
      %v6255 = vadd.f32 %v6219, %v6247
      %v6256 = vadd.f32 %v6220, %v6247
      %v6257 = vadd.f32 %v6221, %v6247
      %v6258 = vadd.f32 %v6222, %v6247
      %v6259 = vadd.f32 %v6223, %v6247
      %v6260 = vadd.f32 %v6224, %v6247
      %v6261 = vadd.f32 %v6225, %v6247
      %v6262 = vadd.f32 %v6226, %v6247
      %v6263 = vadd.f32 %v6227, %v6247
      %v6264 = vadd.f32 %v6228, %v6247
      %v6265 = vadd.f32 %v6229, %v6247
      %v6266 = vadd.f32 %v6230, %v6247
      %v6267 = vadd.f32 %v6231, %v6247
      %v6268 = vadd.f32 %v6232, %v6247
      %v6269 = vadd.f32 %v6233, %v6247
      %v6270 = vadd.f32 %v6234, %v6247
      %v6271 = vadd.f32 %v6235, %v6247
      %v6272 = vadd.f32 %v6236, %v6247
      %v6273 = vadd.f32 %v6237, %v6247
      %v6274 = vadd.f32 %v6238, %v6247
      %v6275 = vadd.f32 %v6239, %v6247
      %v6276 = vadd.f32 %v6240, %v6247
      %v6277 = vadd.f32 %v6241, %v6247
      %v6278 = vadd.f32 %v6242, %v6247
      %v6279 = vadd.f32 %v6243, %v6247
      %v6280 = vadd.f32 %v6244, %v6247
      %v6281 = vld [vmem:[%s273 + $0x18] sm:$0xff]
      %v6282 = vld [vmem:[%s273 + $0x20] sm:$0xff]
      %v6283 = vld [vmem:[%s273 + $0x28] sm:$0xff]
      %v6284 = vld [vmem:[%s273 + $0x30] sm:$0xff]
      %v6285 = vld [vmem:[%s273 + $0x38] sm:$0xff]
      %v6286 = vld [vmem:[%s273 + $0x40] sm:$0xff]
      %v6287 = vld [vmem:[%s273 + $0x48] sm:$0xff]
      %v6288 = vld [vmem:[%s273 + $0x50] sm:$0xff]
      %v6289 = vld [vmem:[%s273 + $0x58] sm:$0xff]
      %v6290 = vld [vmem:[%s273 + $0x60] sm:$0xff]
      %v6291 = vld [vmem:[%s273 + $0x68] sm:$0xff]
      %v6292 = vld [vmem:[%s273 + $0x70] sm:$0xff]
      %v6293 = vld [vmem:[%s273 + $0x78] sm:$0xff]
      %v6294 = vld [vmem:[%s273 + $0x80] sm:$0xff]
      %v6295 = vld [vmem:[%s273 + $0x88] sm:$0xff]
      %v6296 = vld [vmem:[%s273 + $0x90] sm:$0xff]
      %v6297 = vld [vmem:[%s273 + $0x98] sm:$0xff]
      %v6298 = vld [vmem:[%s273 + $0xa0] sm:$0xff]
      %v6299 = vld [vmem:[%s273 + $0xa8] sm:$0xff]
      %v6300 = vld [vmem:[%s273 + $0xb0] sm:$0xff]
      %v6301 = vld [vmem:[%s273 + $0xb8] sm:$0xff]
      %v6302 = vld [vmem:[%s273 + $0xc0] sm:$0xff]
      %v6303 = vld [vmem:[%s273 + $0xc8] sm:$0xff]
      %v6304 = vld [vmem:[%s273 + $0xd0] sm:$0xff]
      %v6305 = vld [vmem:[%s273 + $0xd8] sm:$0xff]
      %v6306 = vld [vmem:[%s273 + $0xe0] sm:$0xff]
      %v6307 = vld [vmem:[%s273 + $0xe8] sm:$0xff]
      %v6308 = vld [vmem:[%s273 + $0xf0] sm:$0xff]
      %v6309 = vld [vmem:[%s273 + $0xf8] sm:$0xff]
      %v6310 = vld [vmem:[%s273 + $0x100] sm:$0xff]
      %v6311 = vld [vmem:[%s273 + $0x108] sm:$0xff]
      %v6312 = vld [vmem:[%s273 + $0x110] sm:$0xff]
      %v6313 = vld [vmem:[%s5] sm:$0xff]
      %v6314 = vld [vmem:[%s5 + $0x8] sm:$0xff]
      %v6315 = vld [vmem:[%s5 + $0x10] sm:$0xff]
      %v6316 = vld [vmem:[%s6] sm:$0x1]
      %v6318 = vperm.slane %v6316, 0
      %v6321 = vsel %vm991, %v6281, 0
      %v6324 = vsel %vm991, %v6282, 0
      %v6327 = vsel %vm991, %v6283, 0
      %v6330 = vsel %vm991, %v6284, 0
      %v6333 = vsel %vm991, %v6285, 0
      %v6336 = vsel %vm991, %v6286, 0
      %v6339 = vsel %vm991, %v6287, 0
      %v6342 = vsel %vm991, %v6288, 0
      %v6345 = vsel %vm991, %v6289, 0
      %v6348 = vsel %vm991, %v6290, 0
      %v6351 = vsel %vm991, %v6291, 0
      %v6354 = vsel %vm991, %v6292, 0
      %v6357 = vsel %vm991, %v6293, 0
      %v6360 = vsel %vm991, %v6294, 0
      %v6363 = vsel %vm991, %v6295, 0
      %v6366 = vsel %vm991, %v6296, 0
      %v6369 = vsel %vm991, %v6297, 0
      %v6372 = vsel %vm991, %v6298, 0
      %v6375 = vsel %vm991, %v6299, 0
      %v6378 = vsel %vm991, %v6300, 0
      %v6381 = vsel %vm991, %v6301, 0
      %v6384 = vsel %vm991, %v6302, 0
      %v6387 = vsel %vm991, %v6303, 0
      %v6390 = vsel %vm991, %v6304, 0
      %v6393 = vsel %vm991, %v6305, 0
      %v6396 = vsel %vm991, %v6306, 0
      %v6399 = vsel %vm991, %v6307, 0
      %v6402 = vsel %vm991, %v6308, 0
      %v6405 = vsel %vm991, %v6309, 0
      %v6408 = vsel %vm991, %v6310, 0
      %v6411 = vsel %vm991, %v6311, 0
      %v6414 = vsel %vm991, %v6312, 0
      %6416 = vmatpush.msra.mxu0 0.0
      %6417 = vmatpush.msra.mxu0 0.0
      %6418 = vmatpush.msra.mxu0 0.0
      %6419 = vmatpush.msra.mxu0 0.0
      %6420 = vmatpush.msra.mxu0 0.0
      %6421 = vmatpush.msra.mxu0 0.0
      %6422 = vmatpush.msra.mxu0 0.0
      %6423 = vmatpush.msra.mxu0 0.0
      %6424 = vmatpush.msra.mxu0 0.0
      %6425 = vmatpush.msra.mxu0 0.0
      %6426 = vmatpush.msra.mxu0 0.0
      %6427 = vmatpush.msra.mxu0 0.0
      %6428 = vmatpush.msra.mxu0 0.0
      %6429 = vmatpush.msra.mxu0 %v6315
      %6430 = vmatpush.msra.mxu0 %v6314
      %6431 = vmatpush.msra.mxu0 %v6313
      %6432 = vmatmul.f32.gmra.mxu0 %v6321
      %v6433 = vpop.f32.mrf.mxu0
      %v6434 = vadd.f32 %v6318, %v6433
      %6435 = vmatmul.f32.gmra.mxu0 %v6324
      %v6436 = vpop.f32.mrf.mxu0
      %v6437 = vadd.f32 %v6318, %v6436
      %6438 = vmatmul.f32.gmra.mxu0 %v6327
      %v6439 = vpop.f32.mrf.mxu0
      %v6440 = vadd.f32 %v6318, %v6439
      %6441 = vmatmul.f32.gmra.mxu0 %v6330
      %v6442 = vpop.f32.mrf.mxu0
      %v6443 = vadd.f32 %v6318, %v6442
      %6444 = vmatmul.f32.gmra.mxu0 %v6333
      %v6445 = vpop.f32.mrf.mxu0
      %v6446 = vadd.f32 %v6318, %v6445
      %6447 = vmatmul.f32.gmra.mxu0 %v6336
      %v6448 = vpop.f32.mrf.mxu0
      %v6449 = vadd.f32 %v6318, %v6448
      %6450 = vmatmul.f32.gmra.mxu0 %v6339
      %v6451 = vpop.f32.mrf.mxu0
      %v6452 = vadd.f32 %v6318, %v6451
      %6453 = vmatmul.f32.gmra.mxu0 %v6342
      %v6454 = vpop.f32.mrf.mxu0
      %v6455 = vadd.f32 %v6318, %v6454
      %6456 = vmatmul.f32.gmra.mxu0 %v6345
      %v6457 = vpop.f32.mrf.mxu0
      %v6458 = vadd.f32 %v6318, %v6457
      %6459 = vmatmul.f32.gmra.mxu0 %v6348
      %v6460 = vpop.f32.mrf.mxu0
      %v6461 = vadd.f32 %v6318, %v6460
      %6462 = vmatmul.f32.gmra.mxu0 %v6351
      %v6463 = vpop.f32.mrf.mxu0
      %v6464 = vadd.f32 %v6318, %v6463
      %6465 = vmatmul.f32.gmra.mxu0 %v6354
      %v6466 = vpop.f32.mrf.mxu0
      %v6467 = vadd.f32 %v6318, %v6466
      %6468 = vmatmul.f32.gmra.mxu0 %v6357
      %v6469 = vpop.f32.mrf.mxu0
      %v6470 = vadd.f32 %v6318, %v6469
      %6471 = vmatmul.f32.gmra.mxu0 %v6360
      %v6472 = vpop.f32.mrf.mxu0
      %v6473 = vadd.f32 %v6318, %v6472
      %6474 = vmatmul.f32.gmra.mxu0 %v6363
      %v6475 = vpop.f32.mrf.mxu0
      %v6476 = vadd.f32 %v6318, %v6475
      %6477 = vmatmul.f32.gmra.mxu0 %v6366
      %v6478 = vpop.f32.mrf.mxu0
      %v6479 = vadd.f32 %v6318, %v6478
      %6480 = vmatmul.f32.gmra.mxu0 %v6369
      %v6481 = vpop.f32.mrf.mxu0
      %v6482 = vadd.f32 %v6318, %v6481
      %6483 = vmatmul.f32.gmra.mxu0 %v6372
      %v6484 = vpop.f32.mrf.mxu0
      %v6485 = vadd.f32 %v6318, %v6484
      %6486 = vmatmul.f32.gmra.mxu0 %v6375
      %v6487 = vpop.f32.mrf.mxu0
      %v6488 = vadd.f32 %v6318, %v6487
      %6489 = vmatmul.f32.gmra.mxu0 %v6378
      %v6490 = vpop.f32.mrf.mxu0
      %v6491 = vadd.f32 %v6318, %v6490
      %6492 = vmatmul.f32.gmra.mxu0 %v6381
      %v6493 = vpop.f32.mrf.mxu0
      %v6494 = vadd.f32 %v6318, %v6493
      %6495 = vmatmul.f32.gmra.mxu0 %v6384
      %v6496 = vpop.f32.mrf.mxu0
      %v6497 = vadd.f32 %v6318, %v6496
      %6498 = vmatmul.f32.gmra.mxu0 %v6387
      %v6499 = vpop.f32.mrf.mxu0
      %v6500 = vadd.f32 %v6318, %v6499
      %6501 = vmatmul.f32.gmra.mxu0 %v6390
      %v6502 = vpop.f32.mrf.mxu0
      %v6503 = vadd.f32 %v6318, %v6502
      %6504 = vmatmul.f32.gmra.mxu0 %v6393
      %v6505 = vpop.f32.mrf.mxu0
      %v6506 = vadd.f32 %v6318, %v6505
      %6507 = vmatmul.f32.gmra.mxu0 %v6396
      %v6508 = vpop.f32.mrf.mxu0
      %v6509 = vadd.f32 %v6318, %v6508
      %6510 = vmatmul.f32.gmra.mxu0 %v6399
      %v6511 = vpop.f32.mrf.mxu0
      %v6512 = vadd.f32 %v6318, %v6511
      %6513 = vmatmul.f32.gmra.mxu0 %v6402
      %v6514 = vpop.f32.mrf.mxu0
      %v6515 = vadd.f32 %v6318, %v6514
      %6516 = vmatmul.f32.gmra.mxu0 %v6405
      %v6517 = vpop.f32.mrf.mxu0
      %v6518 = vadd.f32 %v6318, %v6517
      %6519 = vmatmul.f32.gmra.mxu0 %v6408
      %v6520 = vpop.f32.mrf.mxu0
      %v6521 = vadd.f32 %v6318, %v6520
      %6522 = vmatmul.f32.gmra.mxu0 %v6411
      %v6523 = vpop.f32.mrf.mxu0
      %v6524 = vadd.f32 %v6318, %v6523
      %6525 = vmatmul.f32.gmra.mxu0 %v6414
      %v6526 = vpop.f32.mrf.mxu0
      %v6527 = vadd.f32 %v6318, %v6526
      %6528 = vdwg.mxu0
      %v6529 = vadd.f32 %v6249, %v6434
      %v6530 = vadd.f32 %v6250, %v6437
      %v6531 = vadd.f32 %v6251, %v6440
      %v6532 = vadd.f32 %v6252, %v6443
      %v6533 = vadd.f32 %v6253, %v6446
      %v6534 = vadd.f32 %v6254, %v6449
      %v6535 = vadd.f32 %v6255, %v6452
      %v6536 = vadd.f32 %v6256, %v6455
      %v6537 = vadd.f32 %v6257, %v6458
      %v6538 = vadd.f32 %v6258, %v6461
      %v6539 = vadd.f32 %v6259, %v6464
      %v6540 = vadd.f32 %v6260, %v6467
      %v6541 = vadd.f32 %v6261, %v6470
      %v6542 = vadd.f32 %v6262, %v6473
      %v6543 = vadd.f32 %v6263, %v6476
      %v6544 = vadd.f32 %v6264, %v6479
      %v6545 = vadd.f32 %v6265, %v6482
      %v6546 = vadd.f32 %v6266, %v6485
      %v6547 = vadd.f32 %v6267, %v6488
      %v6548 = vadd.f32 %v6268, %v6491
      %v6549 = vadd.f32 %v6269, %v6494
      %v6550 = vadd.f32 %v6270, %v6497
      %v6551 = vadd.f32 %v6271, %v6500
      %v6552 = vadd.f32 %v6272, %v6503
      %v6553 = vadd.f32 %v6273, %v6506
      %v6554 = vadd.f32 %v6274, %v6509
      %v6555 = vadd.f32 %v6275, %v6512
      %v6556 = vadd.f32 %v6276, %v6515
      %v6557 = vadd.f32 %v6277, %v6518
      %v6558 = vadd.f32 %v6278, %v6521
      %v6559 = vadd.f32 %v6279, %v6524
      %v6560 = vadd.f32 %v6280, %v6527
      %v6561 = vmax.f32 %v6529, 0.0
      %v6562 = vmax.f32 %v6530, 0.0
      %v6563 = vmax.f32 %v6531, 0.0
      %v6564 = vmax.f32 %v6532, 0.0
      %v6565 = vmax.f32 %v6533, 0.0
      %v6566 = vmax.f32 %v6534, 0.0
      %v6567 = vmax.f32 %v6535, 0.0
      %v6568 = vmax.f32 %v6536, 0.0
      %v6569 = vmax.f32 %v6537, 0.0
      %v6570 = vmax.f32 %v6538, 0.0
      %v6571 = vmax.f32 %v6539, 0.0
      %v6572 = vmax.f32 %v6540, 0.0
      %v6573 = vmax.f32 %v6541, 0.0
      %v6574 = vmax.f32 %v6542, 0.0
      %v6575 = vmax.f32 %v6543, 0.0
      %v6576 = vmax.f32 %v6544, 0.0
      %v6577 = vmax.f32 %v6545, 0.0
      %v6578 = vmax.f32 %v6546, 0.0
      %v6579 = vmax.f32 %v6547, 0.0
      %v6580 = vmax.f32 %v6548, 0.0
      %v6581 = vmax.f32 %v6549, 0.0
      %v6582 = vmax.f32 %v6550, 0.0
      %v6583 = vmax.f32 %v6551, 0.0
      %v6584 = vmax.f32 %v6552, 0.0
      %v6585 = vmax.f32 %v6553, 0.0
      %v6586 = vmax.f32 %v6554, 0.0
      %v6587 = vmax.f32 %v6555, 0.0
      %v6588 = vmax.f32 %v6556, 0.0
      %v6589 = vmax.f32 %v6557, 0.0
      %v6590 = vmax.f32 %v6558, 0.0
      %v6591 = vmax.f32 %v6559, 0.0
      %v6592 = vmax.f32 %v6560, 0.0
      %6593 = vst.msk [vmem:[%s278] sm:$0xff] %vm3577, %v6561
      %6594 = vst.msk [vmem:[%s278 + $0x8] sm:$0xff] %vm3577, %v6562
      %6595 = vst.msk [vmem:[%s278 + $0x10] sm:$0xff] %vm3577, %v6563
      %6596 = vst.msk [vmem:[%s278 + $0x18] sm:$0xff] %vm3577, %v6564
      %6597 = vst.msk [vmem:[%s278 + $0x20] sm:$0xff] %vm3577, %v6565
      %6598 = vst.msk [vmem:[%s278 + $0x28] sm:$0xff] %vm3577, %v6566
      %6599 = vst.msk [vmem:[%s278 + $0x30] sm:$0xff] %vm3577, %v6567
      %6600 = vst.msk [vmem:[%s278 + $0x38] sm:$0xff] %vm3577, %v6568
      %6601 = vst.msk [vmem:[%s278 + $0x40] sm:$0xff] %vm3577, %v6569
      %6602 = vst.msk [vmem:[%s278 + $0x48] sm:$0xff] %vm3577, %v6570
      %6603 = vst.msk [vmem:[%s278 + $0x50] sm:$0xff] %vm3577, %v6571
      %6604 = vst.msk [vmem:[%s278 + $0x58] sm:$0xff] %vm3577, %v6572
      %6605 = vst.msk [vmem:[%s278 + $0x60] sm:$0xff] %vm3577, %v6573
      %6606 = vst.msk [vmem:[%s278 + $0x68] sm:$0xff] %vm3577, %v6574
      %6607 = vst.msk [vmem:[%s278 + $0x70] sm:$0xff] %vm3577, %v6575
      %6608 = vst.msk [vmem:[%s278 + $0x78] sm:$0xff] %vm3577, %v6576
      %6609 = vst.msk [vmem:[%s278 + $0x80] sm:$0xff] %vm3577, %v6577
      %6610 = vst.msk [vmem:[%s278 + $0x88] sm:$0xff] %vm3577, %v6578
      %6611 = vst.msk [vmem:[%s278 + $0x90] sm:$0xff] %vm3577, %v6579
      %6612 = vst.msk [vmem:[%s278 + $0x98] sm:$0xff] %vm3577, %v6580
      %6613 = vst.msk [vmem:[%s278 + $0xa0] sm:$0xff] %vm3577, %v6581
      %6614 = vst.msk [vmem:[%s278 + $0xa8] sm:$0xff] %vm3577, %v6582
      %6615 = vst.msk [vmem:[%s278 + $0xb0] sm:$0xff] %vm3577, %v6583
      %6616 = vst.msk [vmem:[%s278 + $0xb8] sm:$0xff] %vm3577, %v6584
      %6617 = vst.msk [vmem:[%s278 + $0xc0] sm:$0xff] %vm3577, %v6585
      %6618 = vst.msk [vmem:[%s278 + $0xc8] sm:$0xff] %vm3577, %v6586
      %6619 = vst.msk [vmem:[%s278 + $0xd0] sm:$0xff] %vm3577, %v6587
      %6620 = vst.msk [vmem:[%s278 + $0xd8] sm:$0xff] %vm3577, %v6588
      %6621 = vst.msk [vmem:[%s278 + $0xe0] sm:$0xff] %vm3577, %v6589
      %6622 = vst.msk [vmem:[%s278 + $0xe8] sm:$0xff] %vm3577, %v6590
      %6623 = vst.msk [vmem:[%s278 + $0xf0] sm:$0xff] %vm3577, %v6591
      %6624 = vst.msk [vmem:[%s278 + $0xf8] sm:$0xff] %vm3577, %v6592
      %p6625 = scmp.lt.s32.totalorder %s18, 1
      %s6626 = scalar_select %p6625, %s18, 1
      %s6627 = smul.addr %s6626, 32
      %s6628 = smul.addr %s6627, 8
      %s6629 = scalar_lea.vmem %s7, %s6628
      // Predicated region
      $region49: #{tpu_custom_call.1} parent=47 // pred_check
        %p6630 = pneg %p188
      $region50: #{tpu_custom_call.1} parent=47 // pred_check_branch
        %6632 = sbr.rel (%p6630) target = $region52
      $region51: #{tpu_custom_call.1} parent=47 // pred_region
        _
      $region52: #{tpu_custom_call.1} parent=47 // pred_fallthru
        _
    $region48: #{tpu_custom_call.1} parent=5 // pred_fallthru
      _
    %p6633 = scmp.le.s32.totalorder 2, %s13
    // Predicated region
    $region53: #{tpu_custom_call.1} parent=5 // pred_check
      %p6634 = pneg %p6633
    $region54: #{tpu_custom_call.1} parent=5 // pred_check_branch
      %6636 = sbr.rel (%p6634) target = $region56
    $region55: #{tpu_custom_call.1} parent=5 // pred_region
      %s6637 = ssub.s32 %s13, 2
      // Predicated region
      $region57: #{tpu_custom_call.1} parent=55 // pred_check
        %p6638 = pneg %p194
      $region58: #{tpu_custom_call.1} parent=55 // pred_check_branch
        %6640 = sbr.rel (%p6638) target = $region60
      $region59: #{tpu_custom_call.1} parent=55 // pred_region
        %p6641 = scmp.lt.s32.totalorder %s19, 1
        %s6642 = scalar_select %p6641, %s19, 1
        %s6643 = smul.addr %s6642, 32
        %s6644 = smul.addr %s6643, 8
        %s6645 = scalar_lea.vmem %s7, %s6644
      $region60: #{tpu_custom_call.1} parent=55 // pred_fallthru
        _
    $region56: #{tpu_custom_call.1} parent=5 // pred_fallthru
      _
  $region6: #{tpu_custom_call.1} parent=0 // loop_footer
    %s17 = sadd.s32 1, %s13
  $region7: #{tpu_custom_call.1} parent=0 // loop_footer_branch
    %12 = sbr.rel target = $region3
  $region8: #{tpu_custom_call.1} parent=0 // loop_exit
    _

</llo_original>
